<compile_context>
chip_gen: v7x
topology: tpu7x:2x2x1
jax: 0.10.0
libtpu: 0.0.40
codegen_flags: <defaults>
</compile_context>

<pallas_src>
import math

import jax
import jax.numpy as jnp
from jax.experimental import pallas as pl
from jax.experimental.pallas import tpu as pltpu

# ----------------------------- model dimensions ------------------------------
B, S, H = 2, 8, 128            # batch, seq, hidden (small but lane-dense)
NUM_HEADS, HEAD_DIM = 4, 32    # H = NUM_HEADS * HEAD_DIM
FFN = 4 * H                    # intermediate size
LAYERS = 2                     # encoder layers
VOCAB = 100
MAX_POS = 64
PROJ = 256                     # projection_dim (module default)
EPS = 1e-5
SCALE = 1.0 / math.sqrt(HEAD_DIM)


# ------------------------------ in-kernel math --------------------------------
def _gelu(x):
    # tanh-approx GELU (VPU/EUP friendly).
    # TODO(synk): HF RoBERTa uses exact erf-GELU; tanh approximation deviates slightly.
    return 0.5 * x * (1.0 + jnp.tanh(0.7978845608028654 * (x + 0.044715 * x * x * x)))


def _layernorm(x, g, b):
    mu = jnp.mean(x, axis=-1, keepdims=True)
    var = jnp.mean((x - mu) ** 2, axis=-1, keepdims=True)
    return (x - mu) * jax.lax.rsqrt(var + EPS) * g + b


# ---------- Pallas kernel: one (sample, layer) step; pooler+proj fused at the end ----------
def text_encoder_kernel(x_ref, bias_ref,
                        wqkv_ref, bqkv_ref, wo_ref, bo_ref, ln1g_ref, ln1b_ref,
                        w1_ref, b1_ref, w2_ref, b2_ref, ln2g_ref, ln2b_ref,
                        wp_ref, bp_ref, wproj_ref, bproj_ref,
                        out_ref, h_ref):
    f32, bf16 = jnp.float32, jnp.bfloat16
    l = pl.program_id(1)                       # layer index (inner, "arbitrary" axis)

    @pl.when(l == 0)                           # (re)load this sample's embeddings
    def _():
        h_ref[...] = x_ref[...]

    h = h_ref[...]                             # (S, H) f32 hidden state of this sample
    bias = bias_ref[...]                       # (1, S) additive key mask (0 keep / -1e9 pad)
    hb = h.astype(bf16)

    # fused QKV projection: one lane-dense (S,H)@(H,3H) matmul; SCALE pre-folded into Q.
    qkv = jnp.dot(hb, wqkv_ref[...], preferred_element_type=f32) + bqkv_ref[...]   # (S, 3H)
    q2, k2, v2 = qkv[:, :H], qkv[:, H:2 * H], qkv[:, 2 * H:]

    # per-head attention (static unroll over NUM_HEADS); softmax stays in f32.
    # NOTE: padded *query* rows produce garbage softmax rows (only keys are masked);
    # harmless here because only the [CLS] row is pooled.
    ctx_heads = []
    for n in range(NUM_HEADS):
        sl = slice(n * HEAD_DIM, (n + 1) * HEAD_DIM)
        qn = q2[:, sl].astype(bf16)                                        # (S, HD)
        kn = k2[:, sl].astype(bf16)
        vn = v2[:, sl].astype(bf16)
        s_n = jnp.einsum("qd,kd->qk", qn, kn, preferred_element_type=f32) + bias   # (S, S)
        s_n = s_n - jnp.max(s_n, axis=-1, keepdims=True)
        p_n = jnp.exp(s_n)
        p_n = p_n * pl.reciprocal(jnp.sum(p_n, axis=-1, keepdims=True), approx=True)
        ctx_heads.append(jnp.dot(p_n.astype(bf16), vn, preferred_element_type=f32))

    # concat heads back to a lane-dense (S, H) tile; single fused output projection (K=H).
    ctx = jnp.concatenate(ctx_heads, axis=-1).astype(bf16)                 # (S, H)
    attn = jnp.dot(ctx, wo_ref[...], preferred_element_type=f32) + bo_ref[...]

    h1 = _layernorm(h + attn, ln1g_ref[...], ln1b_ref[...])               # post-LN (RoBERTa)

    ff = _gelu(jnp.dot(h1.astype(bf16), w1_ref[...],
                       preferred_element_type=f32) + b1_ref[...])
    ff = jnp.dot(ff.astype(bf16), w2_ref[...],
                 preferred_element_type=f32) + b2_ref[...]
    h_new = _layernorm(h1 + ff, ln2g_ref[...], ln2b_ref[...])
    h_ref[...] = h_new                                                     # carry to next layer

    # fused pooler (tanh dense on [CLS]) + projection head, only after the last layer.
    @pl.when(l == LAYERS - 1)
    def _():
        cls = h_new[0:1, :]                                                # (1, H) [CLS] row
        pooled = jnp.tanh(jnp.dot(cls.astype(bf16), wp_ref[...],
                                  preferred_element_type=f32) + bp_ref[...])
        out_ref[...] = jnp.dot(pooled.astype(bf16), wproj_ref[...],
                               preferred_element_type=f32) + bproj_ref[...]


def run_text_encoder(x2d, bias3, enc):
    # per-layer weight stacks: stream block l of the leading (LAYERS, ...) dim each grid step
    def layer_w(shape):
        return pl.BlockSpec((None,) + shape, lambda b, l: (l, 0, 0))

    # small fixed tensors (pooler / projection): same block every step
    def fixed(shape):
        return pl.BlockSpec(shape, lambda b, l, nd=len(shape): (0,) * nd)

    grid_spec = pltpu.PrefetchScalarGridSpec(
        num_scalar_prefetch=0,
        grid=(B, LAYERS),                                       # (sample, layer)
        in_specs=[
            pl.BlockSpec((S, H), lambda b, l: (b, 0)),          # embeddings of sample b
            pl.BlockSpec((None, 1, S), lambda b, l: (b, 0, 0)), # key mask of sample b
            layer_w((H, 3 * H)),   # wqkv
            layer_w((1, 3 * H)),   # bqkv
            layer_w((H, H)),       # wo
            layer_w((1, H)),       # bo
            layer_w((1, H)),       # ln1 gamma
            layer_w((1, H)),       # ln1 beta
            layer_w((H, FFN)),     # w1
            layer_w((1, FFN)),     # b1
            layer_w((FFN, H)),     # w2
            layer_w((1, H)),       # b2
            layer_w((1, H)),       # ln2 gamma
            layer_w((1, H)),       # ln2 beta
            fixed((H, H)),         # pooler W
            fixed((1, H)),         # pooler b
            fixed((H, PROJ)),      # projection W
            fixed((1, PROJ)),      # projection b
        ],
        out_specs=pl.BlockSpec((None, 1, PROJ), lambda b, l: (b, 0, 0)),
        scratch_shapes=[pltpu.VMEM((S, H), jnp.float32)],       # persistent hidden state
    )
    out = pl.pallas_call(
        text_encoder_kernel,
        out_shape=jax.ShapeDtypeStruct((B, 1, PROJ), jnp.float32),
        grid_spec=grid_spec,
        compiler_params=pltpu.CompilerParams(
            dimension_semantics=("parallel", "arbitrary"),      # samples parallel, layers sequential
            vmem_limit_bytes=32 * 1024 * 1024),                 # safe on v5e/v6e/v7x
    )(x2d, bias3,
      enc["wqkv"], enc["bqkv"], enc["wo"], enc["bo"], enc["ln1g"], enc["ln1b"],
      enc["w1"], enc["b1"], enc["w2"], enc["b2"], enc["ln2g"], enc["ln2b"],
      enc["wp"], enc["bp"], enc["wproj"], enc["bproj"])
    return out.reshape(B, PROJ)


# ------------------------------- parameters -----------------------------------
def init_params(key):
    std = 0.02
    ks = iter(jax.random.split(key, 64))
    n = lambda shape: (jax.random.normal(next(ks), shape, jnp.float32) * std)
    ones = lambda shape: jnp.ones(shape, jnp.float32)
    zeros = lambda shape: jnp.zeros(shape, jnp.float32)

    return {
        "word_emb": n((VOCAB, H)),
        "pos_emb": n((MAX_POS, H)),
        "type_emb": n((1, H)),
        "emb_ln_g": ones((H,)),
        "emb_ln_b": zeros((H,)),
        "layers": {
            "wq": n((LAYERS, H, H)), "bq": zeros((LAYERS, H)),
            "wk": n((LAYERS, H, H)), "bk": zeros((LAYERS, H)),
            "wv": n((LAYERS, H, H)), "bv": zeros((LAYERS, H)),
            "wo": n((LAYERS, H, H)), "bo": zeros((LAYERS, H)),
            "ln1g": ones((LAYERS, H)), "ln1b": zeros((LAYERS, H)),
            "w1": n((LAYERS, H, FFN)), "b1": zeros((LAYERS, FFN)),
            "w2": n((LAYERS, FFN, H)), "b2": zeros((LAYERS, H)),
            "ln2g": ones((LAYERS, H)), "ln2b": zeros((LAYERS, H)),
        },
        "pooler_w": n((H, H)), "pooler_b": zeros((1, H)),
        "proj_w": n((H, PROJ)), "proj_b": zeros((1, PROJ)),
    }


def _prepare_kernel_weights(params):
    """Host-side one-time layout plumbing: fused QKV (SCALE folded into Q), bf16 matmul weights."""
    lw = params["layers"]
    bf16 = jnp.bfloat16
    wqkv = jnp.concatenate([lw["wq"] * SCALE, lw["wk"], lw["wv"]], axis=-1)   # (L, H, 3H)
    bqkv = jnp.concatenate([lw["bq"] * SCALE, lw["bk"], lw["bv"]], axis=-1)   # (L, 3H)
    return {
        "wqkv": wqkv.astype(bf16),
        "bqkv": bqkv.reshape(LAYERS, 1, 3 * H),
        "wo": lw["wo"].astype(bf16),
        "bo": lw["bo"].reshape(LAYERS, 1, H),
        "ln1g": lw["ln1g"].reshape(LAYERS, 1, H),
        "ln1b": lw["ln1b"].reshape(LAYERS, 1, H),
        "w1": lw["w1"].astype(bf16),
        "b1": lw["b1"].reshape(LAYERS, 1, FFN),
        "w2": lw["w2"].astype(bf16),
        "b2": lw["b2"].reshape(LAYERS, 1, H),
        "ln2g": lw["ln2g"].reshape(LAYERS, 1, H),
        "ln2b": lw["ln2b"].reshape(LAYERS, 1, H),
        "wp": params["pooler_w"].astype(bf16), "bp": params["pooler_b"],
        "wproj": params["proj_w"].astype(bf16), "bproj": params["proj_b"],
    }


# ------------------------------- forward pass ----------------------------------
def text_encoder_forward(input_ids, attention_mask, params):
    # ----- embeddings (plain-JAX glue) -----
    # TODO(synk): embedding-table gathers stay in XLA; encoder/pooler/projection run in Pallas.
    mask_f = attention_mask.astype(jnp.float32)
    # RoBERTa derives position ids from the cumulative count of non-pad tokens (pad idx = 1).
    position_ids = jnp.cumsum(attention_mask, axis=-1) * attention_mask + 1
    emb = (params["word_emb"][input_ids]
           + params["pos_emb"][position_ids]
           + params["type_emb"][0][None, None, :])
    mu = jnp.mean(emb, axis=-1, keepdims=True)
    var = jnp.mean((emb - mu) ** 2, axis=-1, keepdims=True)
    emb = (emb - mu) * jax.lax.rsqrt(var + EPS) * params["emb_ln_g"] + params["emb_ln_b"]
    x2d = emb.reshape(B * S, H).astype(jnp.float32)

    # additive key mask (0 keep, -1e9 masked); per-head broadcast happens inside the kernel.
    bias3 = ((1.0 - mask_f) * -1e9).reshape(B, 1, S)

    enc = _prepare_kernel_weights(params)
    return run_text_encoder(x2d, bias3, enc)                   # (B, PROJ)


# ----------------------------------- main ---------------------------------------
if __name__ == "__main__":
    key = jax.random.PRNGKey(0)
    pkey, ikey = jax.random.split(key)
    params = init_params(pkey)

    input_ids = jax.random.randint(ikey, (B, S), 0, VOCAB, dtype=jnp.int32)
    attention_mask = jnp.ones((B, S), jnp.int32).at[1, S - 2:].set(0)  # pad last 2 of sample 1

    out = text_encoder_forward(input_ids, attention_mask, params)
    jax.block_until_ready(out)
    assert out.shape == (B, PROJ) and out.dtype == jnp.float32
    assert bool(jnp.all(jnp.isfinite(out)))
    print("KERNEL_OK")
</pallas_src>

<mosaic_0001>
module attributes {stable_mosaic.version = 11 : i64} {
  func.func @text_encoder_kernel(%arg0: i32, %arg1: i32, %arg2: memref<8x128xf32, #tpu.memory_space<vmem>>, %arg3: memref<1x1x8xf32, #tpu.memory_space<vmem>>, %arg4: memref<1x128x384xbf16, #tpu.memory_space<vmem>>, %arg5: memref<1x1x384xf32, #tpu.memory_space<vmem>>, %arg6: memref<1x128x128xbf16, #tpu.memory_space<vmem>>, %arg7: memref<1x1x128xf32, #tpu.memory_space<vmem>>, %arg8: memref<1x1x128xf32, #tpu.memory_space<vmem>>, %arg9: memref<1x1x128xf32, #tpu.memory_space<vmem>>, %arg10: memref<1x128x512xbf16, #tpu.memory_space<vmem>>, %arg11: memref<1x1x512xf32, #tpu.memory_space<vmem>>, %arg12: memref<1x512x128xbf16, #tpu.memory_space<vmem>>, %arg13: memref<1x1x128xf32, #tpu.memory_space<vmem>>, %arg14: memref<1x1x128xf32, #tpu.memory_space<vmem>>, %arg15: memref<1x1x128xf32, #tpu.memory_space<vmem>>, %arg16: memref<128x128xbf16, #tpu.memory_space<vmem>>, %arg17: memref<1x128xf32, #tpu.memory_space<vmem>>, %arg18: memref<128x256xbf16, #tpu.memory_space<vmem>>, %arg19: memref<1x256xf32, #tpu.memory_space<vmem>>, %arg20: memref<1x1x256xf32, #tpu.memory_space<vmem>>, %arg21: memref<8x128xf32, #tpu.memory_space<vmem>>) attributes {dimension_semantics = [#tpu.dimension_semantics<parallel>, #tpu.dimension_semantics<arbitrary>], iteration_bounds = array<i64: 2, 2>, scalar_prefetch = 0 : i64, scratch_operands = 1 : i64, tpu.core_type = #tpu.core_type<tc>, window_params = [{transform_indices = @transform_0, window_bounds = array<i64: 8, 128>}, {transform_indices = @transform_1, window_bounds = array<i64: 1, 1, 8>}, {transform_indices = @transform_2, window_bounds = array<i64: 1, 128, 384>}, {transform_indices = @transform_3, window_bounds = array<i64: 1, 1, 384>}, {transform_indices = @transform_4, window_bounds = array<i64: 1, 128, 128>}, {transform_indices = @transform_5, window_bounds = array<i64: 1, 1, 128>}, {transform_indices = @transform_6, window_bounds = array<i64: 1, 1, 128>}, {transform_indices = @transform_7, window_bounds = array<i64: 1, 1, 128>}, {transform_indices = @transform_8, window_bounds = array<i64: 1, 128, 512>}, {transform_indices = @transform_9, window_bounds = array<i64: 1, 1, 512>}, {transform_indices = @transform_10, window_bounds = array<i64: 1, 512, 128>}, {transform_indices = @transform_11, window_bounds = array<i64: 1, 1, 128>}, {transform_indices = @transform_12, window_bounds = array<i64: 1, 1, 128>}, {transform_indices = @transform_13, window_bounds = array<i64: 1, 1, 128>}, {pipeline_mode = #tpu.pipeline_mode<synchronous>, transform_indices = @transform_14, window_bounds = array<i64: 128, 128>}, {pipeline_mode = #tpu.pipeline_mode<synchronous>, transform_indices = @transform_15, window_bounds = array<i64: 1, 128>}, {pipeline_mode = #tpu.pipeline_mode<synchronous>, transform_indices = @transform_16, window_bounds = array<i64: 128, 256>}, {pipeline_mode = #tpu.pipeline_mode<synchronous>, transform_indices = @transform_17, window_bounds = array<i64: 1, 256>}, {transform_indices = @transform_18, window_bounds = array<i64: 1, 1, 256>}]} {
    %c0_i32 = arith.constant 0 : i32
    %0 = arith.cmpi eq, %arg1, %c0_i32 : i32
    %1 = arith.extui %0 : i1 to i32
    %c0_i32_0 = arith.constant 0 : i32
    %2 = arith.cmpi ne, %1, %c0_i32_0 : i32
    scf.if %2 {
      %c0_77 = arith.constant 0 : index
      %c0_78 = arith.constant 0 : index
      %197 = vector.load %arg2[%c0_77, %c0_78] : memref<8x128xf32, #tpu.memory_space<vmem>>, vector<8x128xf32>
      %c0_79 = arith.constant 0 : index
      %c0_80 = arith.constant 0 : index
      %198 = vector.load %arg21[%c0_79, %c0_80] : memref<8x128xf32, #tpu.memory_space<vmem>>, vector<8x128xf32>
      tpu.vector_store %arg21[%c0_79, %c0_80], %197 {strides = array<i32>} : memref<8x128xf32, #tpu.memory_space<vmem>>, vector<8x128xf32>,
    } else {
    }
    %c0 = arith.constant 0 : index
    %c0_1 = arith.constant 0 : index
    %3 = vector.load %arg21[%c0, %c0_1] : memref<8x128xf32, #tpu.memory_space<vmem>>, vector<8x128xf32>
    %c0_2 = arith.constant 0 : index
    %c0_3 = arith.constant 0 : index
    %c0_4 = arith.constant 0 : index
    %4 = vector.load %arg3[%c0_2, %c0_3, %c0_4] : memref<1x1x8xf32, #tpu.memory_space<vmem>>, vector<1x1x8xf32>
    %5 = vector.shape_cast %4 : vector<1x1x8xf32> to vector<1x8xf32>
    %6 = arith.truncf %3 : vector<8x128xf32> to vector<8x128xbf16>
    %c0_5 = arith.constant 0 : index
    %c0_6 = arith.constant 0 : index
    %c0_7 = arith.constant 0 : index
    %7 = vector.load %arg4[%c0_5, %c0_6, %c0_7] : memref<1x128x384xbf16, #tpu.memory_space<vmem>>, vector<1x128x384xbf16>
    %8 = vector.shape_cast %7 : vector<1x128x384xbf16> to vector<128x384xbf16>
    %cst = arith.constant dense<0.000000e+00> : vector<8x384xf32>
    %9 = tpu.matmul %6, %8, %cst {dimension_numbers = #tpu.dot_dimension_numbers<[1], [0], [0], [1], [0, 0, 1, 1], [], []>} : vector<8x128xbf16>, vector<128x384xbf16>, vector<8x384xf32> -> vector<8x384xf32>
    %c0_8 = arith.constant 0 : index
    %c0_9 = arith.constant 0 : index
    %c0_10 = arith.constant 0 : index
    %10 = vector.load %arg5[%c0_8, %c0_9, %c0_10] : memref<1x1x384xf32, #tpu.memory_space<vmem>>, vector<1x1x384xf32>
    %11 = vector.shape_cast %10 : vector<1x1x384xf32> to vector<1x384xf32>
    %12 = vector.broadcast %11 : vector<1x384xf32> to vector<8x384xf32>
    %13 = arith.addf %9, %12 : vector<8x384xf32>
    %14 = vector.extract_strided_slice %13 {offsets = [0, 0], sizes = [8, 128], strides = [1, 1]} : vector<8x384xf32> to vector<8x128xf32>
    %15 = vector.extract_strided_slice %13 {offsets = [0, 128], sizes = [8, 128], strides = [1, 1]} : vector<8x384xf32> to vector<8x128xf32>
    %16 = vector.extract_strided_slice %13 {offsets = [0, 256], sizes = [8, 128], strides = [1, 1]} : vector<8x384xf32> to vector<8x128xf32>
    %17 = vector.extract_strided_slice %14 {offsets = [0, 0], sizes = [8, 32], strides = [1, 1]} : vector<8x128xf32> to vector<8x32xf32>
    %18 = arith.truncf %17 : vector<8x32xf32> to vector<8x32xbf16>
    %19 = vector.extract_strided_slice %15 {offsets = [0, 0], sizes = [8, 32], strides = [1, 1]} : vector<8x128xf32> to vector<8x32xf32>
    %20 = arith.truncf %19 : vector<8x32xf32> to vector<8x32xbf16>
    %21 = vector.extract_strided_slice %16 {offsets = [0, 0], sizes = [8, 32], strides = [1, 1]} : vector<8x128xf32> to vector<8x32xf32>
    %22 = arith.truncf %21 : vector<8x32xf32> to vector<8x32xbf16>
    "tpu.trace_start"() <{level = 10 : i32, message = "qd,kd->qk"}> : () -> ()
    %cst_11 = arith.constant dense<0.000000e+00> : vector<8x8xf32>
    %23 = tpu.matmul %18, %20, %cst_11 {dimension_numbers = #tpu.dot_dimension_numbers<[1], [1], [0], [0], [0, 0, 1, 0], [], []>} : vector<8x32xbf16>, vector<8x32xbf16>, vector<8x8xf32> -> vector<8x8xf32>
    "tpu.trace_stop"() : () -> ()
    %24 = vector.broadcast %5 : vector<1x8xf32> to vector<8x8xf32>
    %25 = arith.addf %23, %24 : vector<8x8xf32>
    %cst_12 = arith.constant dense<0xFF800000> : vector<8xf32>
    %26 = vector.multi_reduction <maximumf>, %25, %cst_12 [1] : vector<8x8xf32> to vector<8xf32>
    %27 = vector.shape_cast %26 : vector<8xf32> to vector<8x1xf32>
    %28 = vector.broadcast %27 : vector<8x1xf32> to vector<8x8xf32>
    %29 = arith.subf %25, %28 : vector<8x8xf32>
    %30 = math.exp %29 : vector<8x8xf32>
    %cst_13 = arith.constant dense<0.000000e+00> : vector<8xf32>
    %31 = vector.multi_reduction <add>, %30, %cst_13 [1] : vector<8x8xf32> to vector<8xf32>
    %32 = vector.shape_cast %31 : vector<8xf32> to vector<8x1xf32>
    %33 = tpu.reciprocal %32 {approx = true} : vector<8x1xf32> -> vector<8x1xf32>
    %34 = vector.broadcast %33 : vector<8x1xf32> to vector<8x8xf32>
    %35 = arith.mulf %30, %34 : vector<8x8xf32>
    %36 = arith.truncf %35 : vector<8x8xf32> to vector<8x8xbf16>
    %cst_14 = arith.constant dense<0.000000e+00> : vector<8x32xf32>
    %37 = tpu.matmul %36, %22, %cst_14 {dimension_numbers = #tpu.dot_dimension_numbers<[1], [0], [0], [1], [0, 0, 1, 1], [], []>} : vector<8x8xbf16>, vector<8x32xbf16>, vector<8x32xf32> -> vector<8x32xf32>
    %38 = vector.extract_strided_slice %14 {offsets = [0, 32], sizes = [8, 32], strides = [1, 1]} : vector<8x128xf32> to vector<8x32xf32>
    %39 = arith.truncf %38 : vector<8x32xf32> to vector<8x32xbf16>
    %40 = vector.extract_strided_slice %15 {offsets = [0, 32], sizes = [8, 32], strides = [1, 1]} : vector<8x128xf32> to vector<8x32xf32>
    %41 = arith.truncf %40 : vector<8x32xf32> to vector<8x32xbf16>
    %42 = vector.extract_strided_slice %16 {offsets = [0, 32], sizes = [8, 32], strides = [1, 1]} : vector<8x128xf32> to vector<8x32xf32>
    %43 = arith.truncf %42 : vector<8x32xf32> to vector<8x32xbf16>
    "tpu.trace_start"() <{level = 10 : i32, message = "qd,kd->qk"}> : () -> ()
    %cst_15 = arith.constant dense<0.000000e+00> : vector<8x8xf32>
    %44 = tpu.matmul %39, %41, %cst_15 {dimension_numbers = #tpu.dot_dimension_numbers<[1], [1], [0], [0], [0, 0, 1, 0], [], []>} : vector<8x32xbf16>, vector<8x32xbf16>, vector<8x8xf32> -> vector<8x8xf32>
    "tpu.trace_stop"() : () -> ()
    %45 = vector.broadcast %5 : vector<1x8xf32> to vector<8x8xf32>
    %46 = arith.addf %44, %45 : vector<8x8xf32>
    %cst_16 = arith.constant dense<0xFF800000> : vector<8xf32>
    %47 = vector.multi_reduction <maximumf>, %46, %cst_16 [1] : vector<8x8xf32> to vector<8xf32>
    %48 = vector.shape_cast %47 : vector<8xf32> to vector<8x1xf32>
    %49 = vector.broadcast %48 : vector<8x1xf32> to vector<8x8xf32>
    %50 = arith.subf %46, %49 : vector<8x8xf32>
    %51 = math.exp %50 : vector<8x8xf32>
    %cst_17 = arith.constant dense<0.000000e+00> : vector<8xf32>
    %52 = vector.multi_reduction <add>, %51, %cst_17 [1] : vector<8x8xf32> to vector<8xf32>
    %53 = vector.shape_cast %52 : vector<8xf32> to vector<8x1xf32>
    %54 = tpu.reciprocal %53 {approx = true} : vector<8x1xf32> -> vector<8x1xf32>
    %55 = vector.broadcast %54 : vector<8x1xf32> to vector<8x8xf32>
    %56 = arith.mulf %51, %55 : vector<8x8xf32>
    %57 = arith.truncf %56 : vector<8x8xf32> to vector<8x8xbf16>
    %cst_18 = arith.constant dense<0.000000e+00> : vector<8x32xf32>
    %58 = tpu.matmul %57, %43, %cst_18 {dimension_numbers = #tpu.dot_dimension_numbers<[1], [0], [0], [1], [0, 0, 1, 1], [], []>} : vector<8x8xbf16>, vector<8x32xbf16>, vector<8x32xf32> -> vector<8x32xf32>
    %59 = vector.extract_strided_slice %14 {offsets = [0, 64], sizes = [8, 32], strides = [1, 1]} : vector<8x128xf32> to vector<8x32xf32>
    %60 = arith.truncf %59 : vector<8x32xf32> to vector<8x32xbf16>
    %61 = vector.extract_strided_slice %15 {offsets = [0, 64], sizes = [8, 32], strides = [1, 1]} : vector<8x128xf32> to vector<8x32xf32>
    %62 = arith.truncf %61 : vector<8x32xf32> to vector<8x32xbf16>
    %63 = vector.extract_strided_slice %16 {offsets = [0, 64], sizes = [8, 32], strides = [1, 1]} : vector<8x128xf32> to vector<8x32xf32>
    %64 = arith.truncf %63 : vector<8x32xf32> to vector<8x32xbf16>
    "tpu.trace_start"() <{level = 10 : i32, message = "qd,kd->qk"}> : () -> ()
    %cst_19 = arith.constant dense<0.000000e+00> : vector<8x8xf32>
    %65 = tpu.matmul %60, %62, %cst_19 {dimension_numbers = #tpu.dot_dimension_numbers<[1], [1], [0], [0], [0, 0, 1, 0], [], []>} : vector<8x32xbf16>, vector<8x32xbf16>, vector<8x8xf32> -> vector<8x8xf32>
    "tpu.trace_stop"() : () -> ()
    %66 = vector.broadcast %5 : vector<1x8xf32> to vector<8x8xf32>
    %67 = arith.addf %65, %66 : vector<8x8xf32>
    %cst_20 = arith.constant dense<0xFF800000> : vector<8xf32>
    %68 = vector.multi_reduction <maximumf>, %67, %cst_20 [1] : vector<8x8xf32> to vector<8xf32>
    %69 = vector.shape_cast %68 : vector<8xf32> to vector<8x1xf32>
    %70 = vector.broadcast %69 : vector<8x1xf32> to vector<8x8xf32>
    %71 = arith.subf %67, %70 : vector<8x8xf32>
    %72 = math.exp %71 : vector<8x8xf32>
    %cst_21 = arith.constant dense<0.000000e+00> : vector<8xf32>
    %73 = vector.multi_reduction <add>, %72, %cst_21 [1] : vector<8x8xf32> to vector<8xf32>
    %74 = vector.shape_cast %73 : vector<8xf32> to vector<8x1xf32>
    %75 = tpu.reciprocal %74 {approx = true} : vector<8x1xf32> -> vector<8x1xf32>
    %76 = vector.broadcast %75 : vector<8x1xf32> to vector<8x8xf32>
    %77 = arith.mulf %72, %76 : vector<8x8xf32>
    %78 = arith.truncf %77 : vector<8x8xf32> to vector<8x8xbf16>
    %cst_22 = arith.constant dense<0.000000e+00> : vector<8x32xf32>
    %79 = tpu.matmul %78, %64, %cst_22 {dimension_numbers = #tpu.dot_dimension_numbers<[1], [0], [0], [1], [0, 0, 1, 1], [], []>} : vector<8x8xbf16>, vector<8x32xbf16>, vector<8x32xf32> -> vector<8x32xf32>
    %80 = vector.extract_strided_slice %14 {offsets = [0, 96], sizes = [8, 32], strides = [1, 1]} : vector<8x128xf32> to vector<8x32xf32>
    %81 = arith.truncf %80 : vector<8x32xf32> to vector<8x32xbf16>
    %82 = vector.extract_strided_slice %15 {offsets = [0, 96], sizes = [8, 32], strides = [1, 1]} : vector<8x128xf32> to vector<8x32xf32>
    %83 = arith.truncf %82 : vector<8x32xf32> to vector<8x32xbf16>
    %84 = vector.extract_strided_slice %16 {offsets = [0, 96], sizes = [8, 32], strides = [1, 1]} : vector<8x128xf32> to vector<8x32xf32>
    %85 = arith.truncf %84 : vector<8x32xf32> to vector<8x32xbf16>
    "tpu.trace_start"() <{level = 10 : i32, message = "qd,kd->qk"}> : () -> ()
    %cst_23 = arith.constant dense<0.000000e+00> : vector<8x8xf32>
    %86 = tpu.matmul %81, %83, %cst_23 {dimension_numbers = #tpu.dot_dimension_numbers<[1], [1], [0], [0], [0, 0, 1, 0], [], []>} : vector<8x32xbf16>, vector<8x32xbf16>, vector<8x8xf32> -> vector<8x8xf32>
    "tpu.trace_stop"() : () -> ()
    %87 = vector.broadcast %5 : vector<1x8xf32> to vector<8x8xf32>
    %88 = arith.addf %86, %87 : vector<8x8xf32>
    %cst_24 = arith.constant dense<0xFF800000> : vector<8xf32>
    %89 = vector.multi_reduction <maximumf>, %88, %cst_24 [1] : vector<8x8xf32> to vector<8xf32>
    %90 = vector.shape_cast %89 : vector<8xf32> to vector<8x1xf32>
    %91 = vector.broadcast %90 : vector<8x1xf32> to vector<8x8xf32>
    %92 = arith.subf %88, %91 : vector<8x8xf32>
    %93 = math.exp %92 : vector<8x8xf32>
    %cst_25 = arith.constant dense<0.000000e+00> : vector<8xf32>
    %94 = vector.multi_reduction <add>, %93, %cst_25 [1] : vector<8x8xf32> to vector<8xf32>
    %95 = vector.shape_cast %94 : vector<8xf32> to vector<8x1xf32>
    %96 = tpu.reciprocal %95 {approx = true} : vector<8x1xf32> -> vector<8x1xf32>
    %97 = vector.broadcast %96 : vector<8x1xf32> to vector<8x8xf32>
    %98 = arith.mulf %93, %97 : vector<8x8xf32>
    %99 = arith.truncf %98 : vector<8x8xf32> to vector<8x8xbf16>
    %cst_26 = arith.constant dense<0.000000e+00> : vector<8x32xf32>
    %100 = tpu.matmul %99, %85, %cst_26 {dimension_numbers = #tpu.dot_dimension_numbers<[1], [0], [0], [1], [0, 0, 1, 1], [], []>} : vector<8x8xbf16>, vector<8x32xbf16>, vector<8x32xf32> -> vector<8x32xf32>
    %101 = tpu.concatenate %37, %58, %79, %100 in 1 : vector<8x32xf32>, vector<8x32xf32>, vector<8x32xf32>, vector<8x32xf32> -> vector<8x128xf32>
    %102 = arith.truncf %101 : vector<8x128xf32> to vector<8x128xbf16>
    %c0_27 = arith.constant 0 : index
    %c0_28 = arith.constant 0 : index
    %c0_29 = arith.constant 0 : index
    %103 = vector.load %arg6[%c0_27, %c0_28, %c0_29] : memref<1x128x128xbf16, #tpu.memory_space<vmem>>, vector<1x128x128xbf16>
    %104 = vector.shape_cast %103 : vector<1x128x128xbf16> to vector<128x128xbf16>
    %cst_30 = arith.constant dense<0.000000e+00> : vector<8x128xf32>
    %105 = tpu.matmul %102, %104, %cst_30 {dimension_numbers = #tpu.dot_dimension_numbers<[1], [0], [0], [1], [0, 0, 1, 1], [], []>} : vector<8x128xbf16>, vector<128x128xbf16>, vector<8x128xf32> -> vector<8x128xf32>
    %c0_31 = arith.constant 0 : index
    %c0_32 = arith.constant 0 : index
    %c0_33 = arith.constant 0 : index
    %106 = vector.load %arg7[%c0_31, %c0_32, %c0_33] : memref<1x1x128xf32, #tpu.memory_space<vmem>>, vector<1x1x128xf32>
    %107 = vector.shape_cast %106 : vector<1x1x128xf32> to vector<1x128xf32>
    %108 = vector.broadcast %107 : vector<1x128xf32> to vector<8x128xf32>
    %109 = arith.addf %105, %108 : vector<8x128xf32>
    %110 = arith.addf %3, %109 : vector<8x128xf32>
    %c0_34 = arith.constant 0 : index
    %c0_35 = arith.constant 0 : index
    %c0_36 = arith.constant 0 : index
    %111 = vector.load %arg8[%c0_34, %c0_35, %c0_36] : memref<1x1x128xf32, #tpu.memory_space<vmem>>, vector<1x1x128xf32>
    %112 = vector.shape_cast %111 : vector<1x1x128xf32> to vector<1x128xf32>
    %c0_37 = arith.constant 0 : index
    %c0_38 = arith.constant 0 : index
    %c0_39 = arith.constant 0 : index
    %113 = vector.load %arg9[%c0_37, %c0_38, %c0_39] : memref<1x1x128xf32, #tpu.memory_space<vmem>>, vector<1x1x128xf32>
    %114 = vector.shape_cast %113 : vector<1x1x128xf32> to vector<1x128xf32>
    %cst_40 = arith.constant dense<0.000000e+00> : vector<8xf32>
    %115 = vector.multi_reduction <add>, %110, %cst_40 [1] : vector<8x128xf32> to vector<8xf32>
    %116 = vector.shape_cast %115 : vector<8xf32> to vector<8x1xf32>
    %cst_41 = arith.constant 1.280000e+02 : f32
    %117 = vector.broadcast %cst_41 : f32 to vector<8x1xf32>
    %118 = arith.divf %116, %117 : vector<8x1xf32>
    %119 = vector.broadcast %118 : vector<8x1xf32> to vector<8x128xf32>
    %120 = arith.subf %110, %119 : vector<8x128xf32>
    %121 = arith.mulf %120, %120 : vector<8x128xf32>
    %cst_42 = arith.constant dense<0.000000e+00> : vector<8xf32>
    %122 = vector.multi_reduction <add>, %121, %cst_42 [1] : vector<8x128xf32> to vector<8xf32>
    %123 = vector.shape_cast %122 : vector<8xf32> to vector<8x1xf32>
    %cst_43 = arith.constant 1.280000e+02 : f32
    %124 = vector.broadcast %cst_43 : f32 to vector<8x1xf32>
    %125 = arith.divf %123, %124 : vector<8x1xf32>
    %126 = vector.broadcast %118 : vector<8x1xf32> to vector<8x128xf32>
    %127 = arith.subf %110, %126 : vector<8x128xf32>
    %cst_44 = arith.constant 9.99999974E-6 : f32
    %128 = vector.broadcast %cst_44 : f32 to vector<8x1xf32>
    %129 = arith.addf %125, %128 : vector<8x1xf32>
    %130 = math.rsqrt %129 : vector<8x1xf32>
    %131 = vector.broadcast %130 : vector<8x1xf32> to vector<8x128xf32>
    %132 = arith.mulf %127, %131 : vector<8x128xf32>
    %133 = vector.broadcast %112 : vector<1x128xf32> to vector<8x128xf32>
    %134 = arith.mulf %132, %133 : vector<8x128xf32>
    %135 = vector.broadcast %114 : vector<1x128xf32> to vector<8x128xf32>
    %136 = arith.addf %134, %135 : vector<8x128xf32>
    %137 = arith.truncf %136 : vector<8x128xf32> to vector<8x128xbf16>
    %c0_45 = arith.constant 0 : index
    %c0_46 = arith.constant 0 : index
    %c0_47 = arith.constant 0 : index
    %138 = vector.load %arg10[%c0_45, %c0_46, %c0_47] : memref<1x128x512xbf16, #tpu.memory_space<vmem>>, vector<1x128x512xbf16>
    %139 = vector.shape_cast %138 : vector<1x128x512xbf16> to vector<128x512xbf16>
    %cst_48 = arith.constant dense<0.000000e+00> : vector<8x512xf32>
    %140 = tpu.matmul %137, %139, %cst_48 {dimension_numbers = #tpu.dot_dimension_numbers<[1], [0], [0], [1], [0, 0, 1, 1], [], []>} : vector<8x128xbf16>, vector<128x512xbf16>, vector<8x512xf32> -> vector<8x512xf32>
    %c0_49 = arith.constant 0 : index
    %c0_50 = arith.constant 0 : index
    %c0_51 = arith.constant 0 : index
    %141 = vector.load %arg11[%c0_49, %c0_50, %c0_51] : memref<1x1x512xf32, #tpu.memory_space<vmem>>, vector<1x1x512xf32>
    %142 = vector.shape_cast %141 : vector<1x1x512xf32> to vector<1x512xf32>
    %143 = vector.broadcast %142 : vector<1x512xf32> to vector<8x512xf32>
    %144 = arith.addf %140, %143 : vector<8x512xf32>
    %cst_52 = arith.constant 5.000000e-01 : f32
    %145 = vector.broadcast %cst_52 : f32 to vector<8x512xf32>
    %146 = arith.mulf %145, %144 : vector<8x512xf32>
    %cst_53 = arith.constant 4.471500e-02 : f32
    %147 = vector.broadcast %cst_53 : f32 to vector<8x512xf32>
    %148 = arith.mulf %147, %144 : vector<8x512xf32>
    %149 = arith.mulf %148, %144 : vector<8x512xf32>
    %150 = arith.mulf %149, %144 : vector<8x512xf32>
    %151 = arith.addf %144, %150 : vector<8x512xf32>
    %cst_54 = arith.constant 0.797884583 : f32
    %152 = vector.broadcast %cst_54 : f32 to vector<8x512xf32>
    %153 = arith.mulf %152, %151 : vector<8x512xf32>
    %154 = math.tanh %153 : vector<8x512xf32>
    %cst_55 = arith.constant 1.000000e+00 : f32
    %155 = vector.broadcast %cst_55 : f32 to vector<8x512xf32>
    %156 = arith.addf %155, %154 : vector<8x512xf32>
    %157 = arith.mulf %146, %156 : vector<8x512xf32>
    %158 = arith.truncf %157 : vector<8x512xf32> to vector<8x512xbf16>
    %c0_56 = arith.constant 0 : index
    %c0_57 = arith.constant 0 : index
    %c0_58 = arith.constant 0 : index
    %159 = vector.load %arg12[%c0_56, %c0_57, %c0_58] : memref<1x512x128xbf16, #tpu.memory_space<vmem>>, vector<1x512x128xbf16>
    %160 = vector.shape_cast %159 : vector<1x512x128xbf16> to vector<512x128xbf16>
    %cst_59 = arith.constant dense<0.000000e+00> : vector<8x128xf32>
    %161 = tpu.matmul %158, %160, %cst_59 {dimension_numbers = #tpu.dot_dimension_numbers<[1], [0], [0], [1], [0, 0, 1, 1], [], []>} : vector<8x512xbf16>, vector<512x128xbf16>, vector<8x128xf32> -> vector<8x128xf32>
    %c0_60 = arith.constant 0 : index
    %c0_61 = arith.constant 0 : index
    %c0_62 = arith.constant 0 : index
    %162 = vector.load %arg13[%c0_60, %c0_61, %c0_62] : memref<1x1x128xf32, #tpu.memory_space<vmem>>, vector<1x1x128xf32>
    %163 = vector.shape_cast %162 : vector<1x1x128xf32> to vector<1x128xf32>
    %164 = vector.broadcast %163 : vector<1x128xf32> to vector<8x128xf32>
    %165 = arith.addf %161, %164 : vector<8x128xf32>
    %166 = arith.addf %136, %165 : vector<8x128xf32>
    %c0_63 = arith.constant 0 : index
    %c0_64 = arith.constant 0 : index
    %c0_65 = arith.constant 0 : index
    %167 = vector.load %arg14[%c0_63, %c0_64, %c0_65] : memref<1x1x128xf32, #tpu.memory_space<vmem>>, vector<1x1x128xf32>
    %168 = vector.shape_cast %167 : vector<1x1x128xf32> to vector<1x128xf32>
    %c0_66 = arith.constant 0 : index
    %c0_67 = arith.constant 0 : index
    %c0_68 = arith.constant 0 : index
    %169 = vector.load %arg15[%c0_66, %c0_67, %c0_68] : memref<1x1x128xf32, #tpu.memory_space<vmem>>, vector<1x1x128xf32>
    %170 = vector.shape_cast %169 : vector<1x1x128xf32> to vector<1x128xf32>
    %cst_69 = arith.constant dense<0.000000e+00> : vector<8xf32>
    %171 = vector.multi_reduction <add>, %166, %cst_69 [1] : vector<8x128xf32> to vector<8xf32>
    %172 = vector.shape_cast %171 : vector<8xf32> to vector<8x1xf32>
    %cst_70 = arith.constant 1.280000e+02 : f32
    %173 = vector.broadcast %cst_70 : f32 to vector<8x1xf32>
    %174 = arith.divf %172, %173 : vector<8x1xf32>
    %175 = vector.broadcast %174 : vector<8x1xf32> to vector<8x128xf32>
    %176 = arith.subf %166, %175 : vector<8x128xf32>
    %177 = arith.mulf %176, %176 : vector<8x128xf32>
    %cst_71 = arith.constant dense<0.000000e+00> : vector<8xf32>
    %178 = vector.multi_reduction <add>, %177, %cst_71 [1] : vector<8x128xf32> to vector<8xf32>
    %179 = vector.shape_cast %178 : vector<8xf32> to vector<8x1xf32>
    %cst_72 = arith.constant 1.280000e+02 : f32
    %180 = vector.broadcast %cst_72 : f32 to vector<8x1xf32>
    %181 = arith.divf %179, %180 : vector<8x1xf32>
    %182 = vector.broadcast %174 : vector<8x1xf32> to vector<8x128xf32>
    %183 = arith.subf %166, %182 : vector<8x128xf32>
    %cst_73 = arith.constant 9.99999974E-6 : f32
    %184 = vector.broadcast %cst_73 : f32 to vector<8x1xf32>
    %185 = arith.addf %181, %184 : vector<8x1xf32>
    %186 = math.rsqrt %185 : vector<8x1xf32>
    %187 = vector.broadcast %186 : vector<8x1xf32> to vector<8x128xf32>
    %188 = arith.mulf %183, %187 : vector<8x128xf32>
    %189 = vector.broadcast %168 : vector<1x128xf32> to vector<8x128xf32>
    %190 = arith.mulf %188, %189 : vector<8x128xf32>
    %191 = vector.broadcast %170 : vector<1x128xf32> to vector<8x128xf32>
    %192 = arith.addf %190, %191 : vector<8x128xf32>
    %c0_74 = arith.constant 0 : index
    %c0_75 = arith.constant 0 : index
    %193 = vector.load %arg21[%c0_74, %c0_75] : memref<8x128xf32, #tpu.memory_space<vmem>>, vector<8x128xf32>
    tpu.vector_store %arg21[%c0_74, %c0_75], %192 {strides = array<i32>} : memref<8x128xf32, #tpu.memory_space<vmem>>, vector<8x128xf32>,
    %c1_i32 = arith.constant 1 : i32
    %194 = arith.cmpi eq, %arg1, %c1_i32 : i32
    %195 = arith.extui %194 : i1 to i32
    %c0_i32_76 = arith.constant 0 : i32
    %196 = arith.cmpi ne, %195, %c0_i32_76 : i32
    scf.if %196 {
      %197 = vector.extract_strided_slice %192 {offsets = [0, 0], sizes = [1, 128], strides = [1, 1]} : vector<8x128xf32> to vector<1x128xf32>
      %198 = arith.truncf %197 : vector<1x128xf32> to vector<1x128xbf16>
      %c0_77 = arith.constant 0 : index
      %c0_78 = arith.constant 0 : index
      %199 = vector.load %arg16[%c0_77, %c0_78] : memref<128x128xbf16, #tpu.memory_space<vmem>>, vector<128x128xbf16>
      %cst_79 = arith.constant dense<0.000000e+00> : vector<1x128xf32>
      %200 = tpu.matmul %198, %199, %cst_79 {dimension_numbers = #tpu.dot_dimension_numbers<[1], [0], [0], [1], [0, 0, 1, 1], [], []>} : vector<1x128xbf16>, vector<128x128xbf16>, vector<1x128xf32> -> vector<1x128xf32>
      %c0_80 = arith.constant 0 : index
      %c0_81 = arith.constant 0 : index
      %201 = vector.load %arg17[%c0_80, %c0_81] : memref<1x128xf32, #tpu.memory_space<vmem>>, vector<1x128xf32>
      %202 = arith.addf %200, %201 : vector<1x128xf32>
      %203 = math.tanh %202 : vector<1x128xf32>
      %204 = arith.truncf %203 : vector<1x128xf32> to vector<1x128xbf16>
      %c0_82 = arith.constant 0 : index
      %c0_83 = arith.constant 0 : index
      %205 = vector.load %arg18[%c0_82, %c0_83] : memref<128x256xbf16, #tpu.memory_space<vmem>>, vector<128x256xbf16>
      %cst_84 = arith.constant dense<0.000000e+00> : vector<1x256xf32>
      %206 = tpu.matmul %204, %205, %cst_84 {dimension_numbers = #tpu.dot_dimension_numbers<[1], [0], [0], [1], [0, 0, 1, 1], [], []>} : vector<1x128xbf16>, vector<128x256xbf16>, vector<1x256xf32> -> vector<1x256xf32>
      %c0_85 = arith.constant 0 : index
      %c0_86 = arith.constant 0 : index
      %207 = vector.load %arg19[%c0_85, %c0_86] : memref<1x256xf32, #tpu.memory_space<vmem>>, vector<1x256xf32>
      %208 = arith.addf %206, %207 : vector<1x256xf32>
      %c0_87 = arith.constant 0 : index
      %c0_88 = arith.constant 0 : index
      %c0_89 = arith.constant 0 : index
      %209 = vector.load %arg20[%c0_87, %c0_88, %c0_89] : memref<1x1x256xf32, #tpu.memory_space<vmem>>, vector<1x1x256xf32>
      %210 = vector.shape_cast %209 : vector<1x1x256xf32> to vector<1x256xf32>
      %211 = vector.shape_cast %208 : vector<1x256xf32> to vector<1x1x256xf32>
      tpu.vector_store %arg20[%c0_87, %c0_88, %c0_89], %211 {strides = array<i32>} : memref<1x1x256xf32, #tpu.memory_space<vmem>>, vector<1x1x256xf32>,
    } else {
    }
    return
  }
  func.func @transform_0(%arg0: i32, %arg1: i32) -> (i32, i32) {
    %c0_i32 = arith.constant 0 : i32
    %c0_i32_0 = arith.constant 0 : i32
    return %arg0, %c0_i32 : i32, i32
  }
  func.func @transform_1(%arg0: i32, %arg1: i32) -> (i32, i32, i32) {
    %c0_i32 = arith.constant 0 : i32
    %c0_i32_0 = arith.constant 0 : i32
    %c0_i32_1 = arith.constant 0 : i32
    return %arg0, %c0_i32, %c0_i32_0 : i32, i32, i32
  }
  func.func @transform_2(%arg0: i32, %arg1: i32) -> (i32, i32, i32) {
    %c0_i32 = arith.constant 0 : i32
    %c0_i32_0 = arith.constant 0 : i32
    %c0_i32_1 = arith.constant 0 : i32
    return %arg1, %c0_i32, %c0_i32_0 : i32, i32, i32
  }
  func.func @transform_3(%arg0: i32, %arg1: i32) -> (i32, i32, i32) {
    %c0_i32 = arith.constant 0 : i32
    %c0_i32_0 = arith.constant 0 : i32
    %c0_i32_1 = arith.constant 0 : i32
    return %arg1, %c0_i32, %c0_i32_0 : i32, i32, i32
  }
  func.func @transform_4(%arg0: i32, %arg1: i32) -> (i32, i32, i32) {
    %c0_i32 = arith.constant 0 : i32
    %c0_i32_0 = arith.constant 0 : i32
    %c0_i32_1 = arith.constant 0 : i32
    return %arg1, %c0_i32, %c0_i32_0 : i32, i32, i32
  }
  func.func @transform_5(%arg0: i32, %arg1: i32) -> (i32, i32, i32) {
    %c0_i32 = arith.constant 0 : i32
    %c0_i32_0 = arith.constant 0 : i32
    %c0_i32_1 = arith.constant 0 : i32
    return %arg1, %c0_i32, %c0_i32_0 : i32, i32, i32
  }
  func.func @transform_6(%arg0: i32, %arg1: i32) -> (i32, i32, i32) {
    %c0_i32 = arith.constant 0 : i32
    %c0_i32_0 = arith.constant 0 : i32
    %c0_i32_1 = arith.constant 0 : i32
    return %arg1, %c0_i32, %c0_i32_0 : i32, i32, i32
  }
  func.func @transform_7(%arg0: i32, %arg1: i32) -> (i32, i32, i32) {
    %c0_i32 = arith.constant 0 : i32
    %c0_i32_0 = arith.constant 0 : i32
    %c0_i32_1 = arith.constant 0 : i32
    return %arg1, %c0_i32, %c0_i32_0 : i32, i32, i32
  }
  func.func @transform_8(%arg0: i32, %arg1: i32) -> (i32, i32, i32) {
    %c0_i32 = arith.constant 0 : i32
    %c0_i32_0 = arith.constant 0 : i32
    %c0_i32_1 = arith.constant 0 : i32
    return %arg1, %c0_i32, %c0_i32_0 : i32, i32, i32
  }
  func.func @transform_9(%arg0: i32, %arg1: i32) -> (i32, i32, i32) {
    %c0_i32 = arith.constant 0 : i32
    %c0_i32_0 = arith.constant 0 : i32
    %c0_i32_1 = arith.constant 0 : i32
    return %arg1, %c0_i32, %c0_i32_0 : i32, i32, i32
  }
  func.func @transform_10(%arg0: i32, %arg1: i32) -> (i32, i32, i32) {
    %c0_i32 = arith.constant 0 : i32
    %c0_i32_0 = arith.constant 0 : i32
    %c0_i32_1 = arith.constant 0 : i32
    return %arg1, %c0_i32, %c0_i32_0 : i32, i32, i32
  }
  func.func @transform_11(%arg0: i32, %arg1: i32) -> (i32, i32, i32) {
    %c0_i32 = arith.constant 0 : i32
    %c0_i32_0 = arith.constant 0 : i32
    %c0_i32_1 = arith.constant 0 : i32
    return %arg1, %c0_i32, %c0_i32_0 : i32, i32, i32
  }
  func.func @transform_12(%arg0: i32, %arg1: i32) -> (i32, i32, i32) {
    %c0_i32 = arith.constant 0 : i32
    %c0_i32_0 = arith.constant 0 : i32
    %c0_i32_1 = arith.constant 0 : i32
    return %arg1, %c0_i32, %c0_i32_0 : i32, i32, i32
  }
  func.func @transform_13(%arg0: i32, %arg1: i32) -> (i32, i32, i32) {
    %c0_i32 = arith.constant 0 : i32
    %c0_i32_0 = arith.constant 0 : i32
    %c0_i32_1 = arith.constant 0 : i32
    return %arg1, %c0_i32, %c0_i32_0 : i32, i32, i32
  }
  func.func @transform_14(%arg0: i32, %arg1: i32) -> (i32, i32) {
    %c0_i32 = arith.constant 0 : i32
    %c0_i32_0 = arith.constant 0 : i32
    %c0_i32_1 = arith.constant 0 : i32
    return %c0_i32, %c0_i32_0 : i32, i32
  }
  func.func @transform_15(%arg0: i32, %arg1: i32) -> (i32, i32) {
    %c0_i32 = arith.constant 0 : i32
    %c0_i32_0 = arith.constant 0 : i32
    %c0_i32_1 = arith.constant 0 : i32
    return %c0_i32, %c0_i32_0 : i32, i32
  }
  func.func @transform_16(%arg0: i32, %arg1: i32) -> (i32, i32) {
    %c0_i32 = arith.constant 0 : i32
    %c0_i32_0 = arith.constant 0 : i32
    %c0_i32_1 = arith.constant 0 : i32
    return %c0_i32, %c0_i32_0 : i32, i32
  }
  func.func @transform_17(%arg0: i32, %arg1: i32) -> (i32, i32) {
    %c0_i32 = arith.constant 0 : i32
    %c0_i32_0 = arith.constant 0 : i32
    %c0_i32_1 = arith.constant 0 : i32
    return %c0_i32, %c0_i32_0 : i32, i32
  }
  func.func @transform_18(%arg0: i32, %arg1: i32) -> (i32, i32, i32) {
    %c0_i32 = arith.constant 0 : i32
    %c0_i32_0 = arith.constant 0 : i32
    %c0_i32_1 = arith.constant 0 : i32
    return %arg0, %c0_i32, %c0_i32_0 : i32, i32, i32
  }
}

</mosaic_0001>

<llo_original>
// kernel: tpu_custom_call.1
$region0: #{tpu_custom_call.1}
  #allocation0 [shape = 'u32[]', space=smem, size = 0x4, offset = 0x4, fixed_abs, tag = 'smem constant byte address 0x4 - core index']
  #allocation1 [shape = 'u32[144,128]{1,0:T(1,128)}', space=vmem, size = 0x12000, scoped, tag = 'internal scratch']
  #allocation2 [shape = 'f32[8,128]{1,0:T(8,128)}', space=vmem, size = 0x1000, scoped, tag = 'scratch operand']
  %s0 = inlined_call_operand.hbm [shape: f32[16,128], index: 0, kind: input, shape index: {}]
  %s1 = inlined_call_operand.hbm [shape: f32[2,1,8], index: 1, kind: input, shape index: {}]
  %s2 = inlined_call_operand.hbm [shape: bf16[2,128,384], index: 2, kind: input, shape index: {}]
  %s3 = inlined_call_operand.vmem [shape: f32[2,1,384], index: 3, kind: input, shape index: {}]
  %s4 = inlined_call_operand.hbm [shape: bf16[2,128,128], index: 4, kind: input, shape index: {}]
  %s5 = inlined_call_operand.vmem [shape: f32[2,1,128], index: 5, kind: input, shape index: {}]
  %s6 = inlined_call_operand.vmem [shape: f32[2,1,128], index: 6, kind: input, shape index: {}]
  %s7 = inlined_call_operand.vmem [shape: f32[2,1,128], index: 7, kind: input, shape index: {}]
  %s8 = inlined_call_operand.hbm [shape: bf16[2,128,512], index: 8, kind: input, shape index: {}]
  %s9 = inlined_call_operand.vmem [shape: f32[2,1,512], index: 9, kind: input, shape index: {}]
  %s10 = inlined_call_operand.hbm [shape: bf16[2,512,128], index: 10, kind: input, shape index: {}]
  %s11 = inlined_call_operand.vmem [shape: f32[2,1,128], index: 11, kind: input, shape index: {}]
  %s12 = inlined_call_operand.vmem [shape: f32[2,1,128], index: 12, kind: input, shape index: {}]
  %s13 = inlined_call_operand.vmem [shape: f32[2,1,128], index: 13, kind: input, shape index: {}]
  %s14 = inlined_call_operand.hbm [shape: bf16[128,128], index: 14, kind: input, shape index: {}]
  %s15 = inlined_call_operand.vmem [shape: f32[1,128], index: 15, kind: input, shape index: {}]
  %s16 = inlined_call_operand.hbm [shape: bf16[128,256], index: 16, kind: input, shape index: {}]
  %s17 = inlined_call_operand.vmem [shape: f32[1,256], index: 17, kind: input, shape index: {}]
  %s18 = inlined_call_operand.hbm [shape: f32[2,1,256], index: 18, kind: output, shape index: {}]
  %s19 = sld [smem:[#allocation0]]
  $region145: #{tpu_custom_call.1} parent=0
    _
  %s21 = ssub.s32 1, %s19
  %s22 = scalar_select 0, %s21, %s19
  $region1: #{tpu_custom_call.1} parent=0
    #allocation3 [shape = 'u8[8192]{0}', space=vmem, size = 0x2000, scoped, tag = 'input window, operand 0']
    #allocation4 [shape = 's32[2]{0}', space=sflag, size = 0x8, scoped, tag = 'scoped memory for tpu_custom_call.1']
    #allocation5 [shape = 's32[2]{0}', space=sflag, size = 0x8, scoped, tag = 'scoped memory for tpu_custom_call.1']
    #allocation6 [shape = 'u8[1024]{0}', space=vmem, size = 0x400, scoped, tag = 'input window, operand 1']
    #allocation7 [shape = 's32[2]{0}', space=sflag, size = 0x8, scoped, tag = 'scoped memory for tpu_custom_call.1']
    #allocation8 [shape = 'u8[196608]{0}', space=vmem, size = 0x30000, scoped, tag = 'input window, operand 2']
    #allocation9 [shape = 'u8[65536]{0}', space=vmem, size = 0x10000, scoped, tag = 'input window, operand 4']
    #allocation10 [shape = 's32[2]{0}', space=sflag, size = 0x8, scoped, tag = 'scoped memory for tpu_custom_call.1']
    #allocation11 [shape = 'u8[262144]{0}', space=vmem, size = 0x40000, scoped, tag = 'input window, operand 8']
    #allocation12 [shape = 'u8[262144]{0}', space=vmem, size = 0x40000, scoped, tag = 'input window, operand 10']
    #allocation13 [shape = 's32[2]{0}', space=sflag, size = 0x8, scoped, tag = 'scoped memory for tpu_custom_call.1']
    #allocation14 [shape = 'u8[32768]{0}', space=vmem, size = 0x8000, scoped, tag = 'input window, operand 14, single buffered']
    #allocation15 [shape = 'u8[65536]{0}', space=vmem, size = 0x10000, scoped, tag = 'input window, operand 16, single buffered']
    #allocation16 [shape = 's32[1]{0}', space=sflag, size = 0x4, scoped, tag = 'scoped memory for tpu_custom_call.1']
    #allocation17 [shape = 'u8[2048]{0}', space=vmem, size = 0x800, scoped, tag = 'output window, operand 0']
    %23 = vsyncpa [#allocation4], 0
    %s24 = scalar_lea.sflag [#allocation4], 1
    %25 = vsyncpa %s24, 0
    %26 = vsyncpa [#allocation7], 0
    %s27 = scalar_lea.sflag [#allocation7], 1
    %28 = vsyncpa %s27, 0
    %29 = vsyncpa [#allocation10], 0
    %s30 = scalar_lea.sflag [#allocation10], 1
    %31 = vsyncpa %s30, 0
    %32 = vsyncpa [#allocation13], 0
    %s33 = scalar_lea.sflag [#allocation13], 1
    %34 = vsyncpa %s33, 0
    %35 = vsyncpa [#allocation16], 0
    %36 = vsyncpa [#allocation5], 0
    %s37 = scalar_lea.sflag [#allocation5], 1
    %38 = vsyncpa %s37, 0
    loop: start=0, step=1, limit=6
    $region2: #{tpu_custom_call.1} parent=1 // loop_pre_header
      _
    $region3: #{tpu_custom_call.1} parent=1 // loop_header
      %s40 = sphi 0, %s44
      %p41 = scmp.ge.s32.totalorder %s40, 6
      %s47 = sphi 0, %s59
      %s48 = sphi 0, %s55
      %s49 = sphi 0, %s47
      %s50 = sphi 0, %s48
      %s51 = sphi 0, %s49
      %s52 = sphi 0, %s50
      %s62 = sphi 0, %s64
      %s65 = sphi 0, %s62
      %s66 = sphi 0, %s65
      %s82 = sphi 0, %s66
      %s88 = sphi 0, %s90
      %s91 = sphi 0, %s88
      %s92 = sphi 0, %s91
      %s108 = sphi 0, %s92
      %s114 = sphi 0, %s116
      %s117 = sphi 0, %s114
      %s118 = sphi 0, %s117
      %s134 = sphi 0, %s118
      %s140 = sphi 0, %s142
      %s143 = sphi 0, %s140
      %s144 = sphi 0, %s143
      %s160 = sphi 0, %s144
      %s166 = sphi 0, %s168
      %s169 = sphi 0, %s166
      %s170 = sphi 0, %s169
      %s186 = sphi 0, %s170
      %s192 = sphi 0, %s194
      %s195 = sphi 0, %s192
      %s196 = sphi 0, %s195
      %s212 = sphi 0, %s196
      %s218 = sphi 0, %s220
      %s221 = sphi 0, %s218
      %s222 = sphi 0, %s221
      %s238 = sphi 0, %s222
      %s244 = sphi 0, %s246
      %s247 = sphi 0, %s244
      %s248 = sphi 0, %s247
      %s264 = sphi 0, %s248
      %s270 = sphi 0, %s272
      %s273 = sphi 0, %s270
      %s274 = sphi 0, %s273
      %s290 = sphi 0, %s274
      %s296 = sphi 0, %s298
      %s299 = sphi 0, %s296
      %s300 = sphi 0, %s299
      %s316 = sphi 0, %s300
      %s322 = sphi 0, %s324
      %s325 = sphi 0, %s322
      %s326 = sphi 0, %s325
      %s342 = sphi 0, %s326
      %s348 = sphi 0, %s350
      %s351 = sphi 0, %s348
      %s352 = sphi 0, %s351
      %s368 = sphi 0, %s352
      %s374 = sphi 0, %s376
      %s377 = sphi 0, %s374
      %s378 = sphi 0, %s377
      %s394 = sphi 0, %s378
      %s400 = sphi 0, %s402
      %s403 = sphi 0, %s400
      %s404 = sphi 0, %s403
      %s420 = sphi 0, %s404
      %s424 = sphi 0, %s424
      %s426 = sphi 0, %s424
      %s427 = sphi 0, %s426
      %s441 = sphi 0, %s427
      %s445 = sphi 0, %s445
      %s447 = sphi 0, %s445
      %s448 = sphi 0, %s447
      %s462 = sphi 0, %s448
      %s466 = sphi 0, %s466
      %s468 = sphi 0, %s466
      %s469 = sphi 0, %s468
      %s483 = sphi 0, %s469
      %s487 = sphi 0, %s487
      %s489 = sphi 0, %s487
      %s490 = sphi 0, %s489
      %s504 = sphi 0, %s490
      %s510 = sphi 0, %s512
      %s513 = sphi 0, %s510
      %s514 = sphi 0, %s513
      %s530 = sphi 0, %s514
    $region4: #{tpu_custom_call.1} parent=1 // loop_header_branch
      %43 = sbr.rel (%p41) target = $region8
    $region5: #{tpu_custom_call.1} parent=1 // loop_body
      %s45 = ssub.s32 %s40, 1
      %s46 = ssub.s32 %s40, 2
      %s53 = sadd.s32 1, %s48
      %p54 = scmp.ge.s32.totalorder %s53, 2
      %s55 = scalar_select %p54, 0, %s53
      %s56 = sadd.s32 1, %s47
      %s57 = scalar_select %p54, %s56, %s47
      %p58 = scmp.ge.s32.totalorder %s57, 2
      %s59 = scalar_select %p58, 0, %s57
      %s60 = ssub.s32 %s47, %s59
      %p61 = scmp.eq.s32.totalorder %s60, 0
      %s63 = sadd.s32 %s62, 1
      %s64 = scalar_select %p61, %s62, %s63
      %p67 = pneg %p61
      %p68 = scmp.eq.s32.totalorder %s40, 3
      %p69 = por %p67, %p68
      %p70 = scmp.ne.s32.totalorder %s62, %s65
      %p71 = scmp.eq.s32.totalorder %s40, 0
      %p72 = por %p70, %p71
      %p73 = scmp.ne.s32.totalorder %s62, %s65
      %p74 = scmp.eq.s32.totalorder %s45, 3
      %p75 = por %p73, %p74
      %p76 = scmp.ne.s32.totalorder %s65, %s66
      %p77 = scmp.eq.s32.totalorder %s45, 0
      %p78 = por %p76, %p77
      %p79 = scmp.ne.s32.totalorder %s65, %s66
      %p80 = scmp.eq.s32.totalorder %s46, 3
      %p81 = por %p79, %p80
      %p83 = scmp.ne.s32.totalorder %s66, %s82
      %p84 = scmp.eq.s32.totalorder %s46, 0
      %p85 = por %p83, %p84
      %s86 = ssub.s32 %s47, %s59
      %p87 = scmp.eq.s32.totalorder %s86, 0
      %s89 = sadd.s32 %s88, 1
      %s90 = scalar_select %p87, %s88, %s89
      %p93 = pneg %p87
      %p94 = scmp.eq.s32.totalorder %s40, 3
      %p95 = por %p93, %p94
      %p96 = scmp.ne.s32.totalorder %s88, %s91
      %p97 = scmp.eq.s32.totalorder %s40, 0
      %p98 = por %p96, %p97
      %p99 = scmp.ne.s32.totalorder %s88, %s91
      %p100 = scmp.eq.s32.totalorder %s45, 3
      %p101 = por %p99, %p100
      %p102 = scmp.ne.s32.totalorder %s91, %s92
      %p103 = scmp.eq.s32.totalorder %s45, 0
      %p104 = por %p102, %p103
      %p105 = scmp.ne.s32.totalorder %s91, %s92
      %p106 = scmp.eq.s32.totalorder %s46, 3
      %p107 = por %p105, %p106
      %p109 = scmp.ne.s32.totalorder %s92, %s108
      %p110 = scmp.eq.s32.totalorder %s46, 0
      %p111 = por %p109, %p110
      %s112 = ssub.s32 %s48, %s55
      %p113 = scmp.eq.s32.totalorder %s112, 0
      %s115 = sadd.s32 %s114, 1
      %s116 = scalar_select %p113, %s114, %s115
      %p119 = pneg %p113
      %p120 = scmp.eq.s32.totalorder %s40, 3
      %p121 = por %p119, %p120
      %p122 = scmp.ne.s32.totalorder %s114, %s117
      %p123 = scmp.eq.s32.totalorder %s40, 0
      %p124 = por %p122, %p123
      %p125 = scmp.ne.s32.totalorder %s114, %s117
      %p126 = scmp.eq.s32.totalorder %s45, 3
      %p127 = por %p125, %p126
      %p128 = scmp.ne.s32.totalorder %s117, %s118
      %p129 = scmp.eq.s32.totalorder %s45, 0
      %p130 = por %p128, %p129
      %p131 = scmp.ne.s32.totalorder %s117, %s118
      %p132 = scmp.eq.s32.totalorder %s46, 3
      %p133 = por %p131, %p132
      %p135 = scmp.ne.s32.totalorder %s118, %s134
      %p136 = scmp.eq.s32.totalorder %s46, 0
      %p137 = por %p135, %p136
      %s138 = ssub.s32 %s48, %s55
      %p139 = scmp.eq.s32.totalorder %s138, 0
      %s141 = sadd.s32 %s140, 1
      %s142 = scalar_select %p139, %s140, %s141
      %p145 = pneg %p139
      %p146 = scmp.eq.s32.totalorder %s40, 3
      %p147 = por %p145, %p146
      %p148 = scmp.ne.s32.totalorder %s140, %s143
      %p149 = scmp.eq.s32.totalorder %s40, 0
      %p150 = por %p148, %p149
      %p151 = scmp.ne.s32.totalorder %s140, %s143
      %p152 = scmp.eq.s32.totalorder %s45, 3
      %p153 = por %p151, %p152
      %p154 = scmp.ne.s32.totalorder %s143, %s144
      %p155 = scmp.eq.s32.totalorder %s45, 0
      %p156 = por %p154, %p155
      %p157 = scmp.ne.s32.totalorder %s143, %s144
      %p158 = scmp.eq.s32.totalorder %s46, 3
      %p159 = por %p157, %p158
      %p161 = scmp.ne.s32.totalorder %s144, %s160
      %p162 = scmp.eq.s32.totalorder %s46, 0
      %p163 = por %p161, %p162
      %s164 = ssub.s32 %s48, %s55
      %p165 = scmp.eq.s32.totalorder %s164, 0
      %s167 = sadd.s32 %s166, 1
      %s168 = scalar_select %p165, %s166, %s167
      %p171 = pneg %p165
      %p172 = scmp.eq.s32.totalorder %s40, 3
      %p173 = por %p171, %p172
      %p174 = scmp.ne.s32.totalorder %s166, %s169
      %p175 = scmp.eq.s32.totalorder %s40, 0
      %p176 = por %p174, %p175
      %p177 = scmp.ne.s32.totalorder %s166, %s169
      %p178 = scmp.eq.s32.totalorder %s45, 3
      %p179 = por %p177, %p178
      %p180 = scmp.ne.s32.totalorder %s169, %s170
      %p181 = scmp.eq.s32.totalorder %s45, 0
      %p182 = por %p180, %p181
      %p183 = scmp.ne.s32.totalorder %s169, %s170
      %p184 = scmp.eq.s32.totalorder %s46, 3
      %p185 = por %p183, %p184
      %p187 = scmp.ne.s32.totalorder %s170, %s186
      %p188 = scmp.eq.s32.totalorder %s46, 0
      %p189 = por %p187, %p188
      %s190 = ssub.s32 %s48, %s55
      %p191 = scmp.eq.s32.totalorder %s190, 0
      %s193 = sadd.s32 %s192, 1
      %s194 = scalar_select %p191, %s192, %s193
      %p197 = pneg %p191
      %p198 = scmp.eq.s32.totalorder %s40, 3
      %p199 = por %p197, %p198
      %p200 = scmp.ne.s32.totalorder %s192, %s195
      %p201 = scmp.eq.s32.totalorder %s40, 0
      %p202 = por %p200, %p201
      %p203 = scmp.ne.s32.totalorder %s192, %s195
      %p204 = scmp.eq.s32.totalorder %s45, 3
      %p205 = por %p203, %p204
      %p206 = scmp.ne.s32.totalorder %s195, %s196
      %p207 = scmp.eq.s32.totalorder %s45, 0
      %p208 = por %p206, %p207
      %p209 = scmp.ne.s32.totalorder %s195, %s196
      %p210 = scmp.eq.s32.totalorder %s46, 3
      %p211 = por %p209, %p210
      %p213 = scmp.ne.s32.totalorder %s196, %s212
      %p214 = scmp.eq.s32.totalorder %s46, 0
      %p215 = por %p213, %p214
      %s216 = ssub.s32 %s48, %s55
      %p217 = scmp.eq.s32.totalorder %s216, 0
      %s219 = sadd.s32 %s218, 1
      %s220 = scalar_select %p217, %s218, %s219
      %p223 = pneg %p217
      %p224 = scmp.eq.s32.totalorder %s40, 3
      %p225 = por %p223, %p224
      %p226 = scmp.ne.s32.totalorder %s218, %s221
      %p227 = scmp.eq.s32.totalorder %s40, 0
      %p228 = por %p226, %p227
      %p229 = scmp.ne.s32.totalorder %s218, %s221
      %p230 = scmp.eq.s32.totalorder %s45, 3
      %p231 = por %p229, %p230
      %p232 = scmp.ne.s32.totalorder %s221, %s222
      %p233 = scmp.eq.s32.totalorder %s45, 0
      %p234 = por %p232, %p233
      %p235 = scmp.ne.s32.totalorder %s221, %s222
      %p236 = scmp.eq.s32.totalorder %s46, 3
      %p237 = por %p235, %p236
      %p239 = scmp.ne.s32.totalorder %s222, %s238
      %p240 = scmp.eq.s32.totalorder %s46, 0
      %p241 = por %p239, %p240
      %s242 = ssub.s32 %s48, %s55
      %p243 = scmp.eq.s32.totalorder %s242, 0
      %s245 = sadd.s32 %s244, 1
      %s246 = scalar_select %p243, %s244, %s245
      %p249 = pneg %p243
      %p250 = scmp.eq.s32.totalorder %s40, 3
      %p251 = por %p249, %p250
      %p252 = scmp.ne.s32.totalorder %s244, %s247
      %p253 = scmp.eq.s32.totalorder %s40, 0
      %p254 = por %p252, %p253
      %p255 = scmp.ne.s32.totalorder %s244, %s247
      %p256 = scmp.eq.s32.totalorder %s45, 3
      %p257 = por %p255, %p256
      %p258 = scmp.ne.s32.totalorder %s247, %s248
      %p259 = scmp.eq.s32.totalorder %s45, 0
      %p260 = por %p258, %p259
      %p261 = scmp.ne.s32.totalorder %s247, %s248
      %p262 = scmp.eq.s32.totalorder %s46, 3
      %p263 = por %p261, %p262
      %p265 = scmp.ne.s32.totalorder %s248, %s264
      %p266 = scmp.eq.s32.totalorder %s46, 0
      %p267 = por %p265, %p266
      %s268 = ssub.s32 %s48, %s55
      %p269 = scmp.eq.s32.totalorder %s268, 0
      %s271 = sadd.s32 %s270, 1
      %s272 = scalar_select %p269, %s270, %s271
      %p275 = pneg %p269
      %p276 = scmp.eq.s32.totalorder %s40, 3
      %p277 = por %p275, %p276
      %p278 = scmp.ne.s32.totalorder %s270, %s273
      %p279 = scmp.eq.s32.totalorder %s40, 0
      %p280 = por %p278, %p279
      %p281 = scmp.ne.s32.totalorder %s270, %s273
      %p282 = scmp.eq.s32.totalorder %s45, 3
      %p283 = por %p281, %p282
      %p284 = scmp.ne.s32.totalorder %s273, %s274
      %p285 = scmp.eq.s32.totalorder %s45, 0
      %p286 = por %p284, %p285
      %p287 = scmp.ne.s32.totalorder %s273, %s274
      %p288 = scmp.eq.s32.totalorder %s46, 3
      %p289 = por %p287, %p288
      %p291 = scmp.ne.s32.totalorder %s274, %s290
      %p292 = scmp.eq.s32.totalorder %s46, 0
      %p293 = por %p291, %p292
      %s294 = ssub.s32 %s48, %s55
      %p295 = scmp.eq.s32.totalorder %s294, 0
      %s297 = sadd.s32 %s296, 1
      %s298 = scalar_select %p295, %s296, %s297
      %p301 = pneg %p295
      %p302 = scmp.eq.s32.totalorder %s40, 3
      %p303 = por %p301, %p302
      %p304 = scmp.ne.s32.totalorder %s296, %s299
      %p305 = scmp.eq.s32.totalorder %s40, 0
      %p306 = por %p304, %p305
      %p307 = scmp.ne.s32.totalorder %s296, %s299
      %p308 = scmp.eq.s32.totalorder %s45, 3
      %p309 = por %p307, %p308
      %p310 = scmp.ne.s32.totalorder %s299, %s300
      %p311 = scmp.eq.s32.totalorder %s45, 0
      %p312 = por %p310, %p311
      %p313 = scmp.ne.s32.totalorder %s299, %s300
      %p314 = scmp.eq.s32.totalorder %s46, 3
      %p315 = por %p313, %p314
      %p317 = scmp.ne.s32.totalorder %s300, %s316
      %p318 = scmp.eq.s32.totalorder %s46, 0
      %p319 = por %p317, %p318
      %s320 = ssub.s32 %s48, %s55
      %p321 = scmp.eq.s32.totalorder %s320, 0
      %s323 = sadd.s32 %s322, 1
      %s324 = scalar_select %p321, %s322, %s323
      %p327 = pneg %p321
      %p328 = scmp.eq.s32.totalorder %s40, 3
      %p329 = por %p327, %p328
      %p330 = scmp.ne.s32.totalorder %s322, %s325
      %p331 = scmp.eq.s32.totalorder %s40, 0
      %p332 = por %p330, %p331
      %p333 = scmp.ne.s32.totalorder %s322, %s325
      %p334 = scmp.eq.s32.totalorder %s45, 3
      %p335 = por %p333, %p334
      %p336 = scmp.ne.s32.totalorder %s325, %s326
      %p337 = scmp.eq.s32.totalorder %s45, 0
      %p338 = por %p336, %p337
      %p339 = scmp.ne.s32.totalorder %s325, %s326
      %p340 = scmp.eq.s32.totalorder %s46, 3
      %p341 = por %p339, %p340
      %p343 = scmp.ne.s32.totalorder %s326, %s342
      %p344 = scmp.eq.s32.totalorder %s46, 0
      %p345 = por %p343, %p344
      %s346 = ssub.s32 %s48, %s55
      %p347 = scmp.eq.s32.totalorder %s346, 0
      %s349 = sadd.s32 %s348, 1
      %s350 = scalar_select %p347, %s348, %s349
      %p353 = pneg %p347
      %p354 = scmp.eq.s32.totalorder %s40, 3
      %p355 = por %p353, %p354
      %p356 = scmp.ne.s32.totalorder %s348, %s351
      %p357 = scmp.eq.s32.totalorder %s40, 0
      %p358 = por %p356, %p357
      %p359 = scmp.ne.s32.totalorder %s348, %s351
      %p360 = scmp.eq.s32.totalorder %s45, 3
      %p361 = por %p359, %p360
      %p362 = scmp.ne.s32.totalorder %s351, %s352
      %p363 = scmp.eq.s32.totalorder %s45, 0
      %p364 = por %p362, %p363
      %p365 = scmp.ne.s32.totalorder %s351, %s352
      %p366 = scmp.eq.s32.totalorder %s46, 3
      %p367 = por %p365, %p366
      %p369 = scmp.ne.s32.totalorder %s352, %s368
      %p370 = scmp.eq.s32.totalorder %s46, 0
      %p371 = por %p369, %p370
      %s372 = ssub.s32 %s48, %s55
      %p373 = scmp.eq.s32.totalorder %s372, 0
      %s375 = sadd.s32 %s374, 1
      %s376 = scalar_select %p373, %s374, %s375
      %p379 = pneg %p373
      %p380 = scmp.eq.s32.totalorder %s40, 3
      %p381 = por %p379, %p380
      %p382 = scmp.ne.s32.totalorder %s374, %s377
      %p383 = scmp.eq.s32.totalorder %s40, 0
      %p384 = por %p382, %p383
      %p385 = scmp.ne.s32.totalorder %s374, %s377
      %p386 = scmp.eq.s32.totalorder %s45, 3
      %p387 = por %p385, %p386
      %p388 = scmp.ne.s32.totalorder %s377, %s378
      %p389 = scmp.eq.s32.totalorder %s45, 0
      %p390 = por %p388, %p389
      %p391 = scmp.ne.s32.totalorder %s377, %s378
      %p392 = scmp.eq.s32.totalorder %s46, 3
      %p393 = por %p391, %p392
      %p395 = scmp.ne.s32.totalorder %s378, %s394
      %p396 = scmp.eq.s32.totalorder %s46, 0
      %p397 = por %p395, %p396
      %s398 = ssub.s32 %s48, %s55
      %p399 = scmp.eq.s32.totalorder %s398, 0
      %s401 = sadd.s32 %s400, 1
      %s402 = scalar_select %p399, %s400, %s401
      %p405 = pneg %p399
      %p406 = scmp.eq.s32.totalorder %s40, 3
      %p407 = por %p405, %p406
      %p408 = scmp.ne.s32.totalorder %s400, %s403
      %p409 = scmp.eq.s32.totalorder %s40, 0
      %p410 = por %p408, %p409
      %p411 = scmp.ne.s32.totalorder %s400, %s403
      %p412 = scmp.eq.s32.totalorder %s45, 3
      %p413 = por %p411, %p412
      %p414 = scmp.ne.s32.totalorder %s403, %s404
      %p415 = scmp.eq.s32.totalorder %s45, 0
      %p416 = por %p414, %p415
      %p417 = scmp.ne.s32.totalorder %s403, %s404
      %p418 = scmp.eq.s32.totalorder %s46, 3
      %p419 = por %p417, %p418
      %p421 = scmp.ne.s32.totalorder %s404, %s420
      %p422 = scmp.eq.s32.totalorder %s46, 0
      %p423 = por %p421, %p422
      %s425 = sadd.s32 %s424, 1
      %p428 = scmp.eq.s32.totalorder %s40, 3
      %p429 = scmp.ne.s32.totalorder %s424, %s426
      %p430 = scmp.eq.s32.totalorder %s40, 0
      %p431 = por %p429, %p430
      %p432 = scmp.ne.s32.totalorder %s424, %s426
      %p433 = scmp.eq.s32.totalorder %s45, 3
      %p434 = por %p432, %p433
      %p435 = scmp.ne.s32.totalorder %s426, %s427
      %p436 = scmp.eq.s32.totalorder %s45, 0
      %p437 = por %p435, %p436
      %p438 = scmp.ne.s32.totalorder %s426, %s427
      %p439 = scmp.eq.s32.totalorder %s46, 3
      %p440 = por %p438, %p439
      %p442 = scmp.ne.s32.totalorder %s427, %s441
      %p443 = scmp.eq.s32.totalorder %s46, 0
      %p444 = por %p442, %p443
      %s446 = sadd.s32 %s445, 1
      %p449 = scmp.eq.s32.totalorder %s40, 3
      %p450 = scmp.ne.s32.totalorder %s445, %s447
      %p451 = scmp.eq.s32.totalorder %s40, 0
      %p452 = por %p450, %p451
      %p453 = scmp.ne.s32.totalorder %s445, %s447
      %p454 = scmp.eq.s32.totalorder %s45, 3
      %p455 = por %p453, %p454
      %p456 = scmp.ne.s32.totalorder %s447, %s448
      %p457 = scmp.eq.s32.totalorder %s45, 0
      %p458 = por %p456, %p457
      %p459 = scmp.ne.s32.totalorder %s447, %s448
      %p460 = scmp.eq.s32.totalorder %s46, 3
      %p461 = por %p459, %p460
      %p463 = scmp.ne.s32.totalorder %s448, %s462
      %p464 = scmp.eq.s32.totalorder %s46, 0
      %p465 = por %p463, %p464
      %s467 = sadd.s32 %s466, 1
      %p470 = scmp.eq.s32.totalorder %s40, 3
      %p471 = scmp.ne.s32.totalorder %s466, %s468
      %p472 = scmp.eq.s32.totalorder %s40, 0
      %p473 = por %p471, %p472
      %p474 = scmp.ne.s32.totalorder %s466, %s468
      %p475 = scmp.eq.s32.totalorder %s45, 3
      %p476 = por %p474, %p475
      %p477 = scmp.ne.s32.totalorder %s468, %s469
      %p478 = scmp.eq.s32.totalorder %s45, 0
      %p479 = por %p477, %p478
      %p480 = scmp.ne.s32.totalorder %s468, %s469
      %p481 = scmp.eq.s32.totalorder %s46, 3
      %p482 = por %p480, %p481
      %p484 = scmp.ne.s32.totalorder %s469, %s483
      %p485 = scmp.eq.s32.totalorder %s46, 0
      %p486 = por %p484, %p485
      %s488 = sadd.s32 %s487, 1
      %p491 = scmp.eq.s32.totalorder %s40, 3
      %p492 = scmp.ne.s32.totalorder %s487, %s489
      %p493 = scmp.eq.s32.totalorder %s40, 0
      %p494 = por %p492, %p493
      %p495 = scmp.ne.s32.totalorder %s487, %s489
      %p496 = scmp.eq.s32.totalorder %s45, 3
      %p497 = por %p495, %p496
      %p498 = scmp.ne.s32.totalorder %s489, %s490
      %p499 = scmp.eq.s32.totalorder %s45, 0
      %p500 = por %p498, %p499
      %p501 = scmp.ne.s32.totalorder %s489, %s490
      %p502 = scmp.eq.s32.totalorder %s46, 3
      %p503 = por %p501, %p502
      %p505 = scmp.ne.s32.totalorder %s490, %s504
      %p506 = scmp.eq.s32.totalorder %s46, 0
      %p507 = por %p505, %p506
      %s508 = ssub.s32 %s47, %s59
      %p509 = scmp.eq.s32.totalorder %s508, 0
      %s511 = sadd.s32 %s510, 1
      %s512 = scalar_select %p509, %s510, %s511
      %p515 = pneg %p509
      %p516 = scmp.eq.s32.totalorder %s40, 3
      %p517 = por %p515, %p516
      %p518 = scmp.ne.s32.totalorder %s510, %s513
      %p519 = scmp.eq.s32.totalorder %s40, 0
      %p520 = por %p518, %p519
      %p521 = scmp.ne.s32.totalorder %s510, %s513
      %p522 = scmp.eq.s32.totalorder %s45, 3
      %p523 = por %p521, %p522
      %p524 = scmp.ne.s32.totalorder %s513, %s514
      %p525 = scmp.eq.s32.totalorder %s45, 0
      %p526 = por %p524, %p525
      %p527 = scmp.ne.s32.totalorder %s513, %s514
      %p528 = scmp.eq.s32.totalorder %s46, 3
      %p529 = por %p527, %p528
      %p531 = scmp.ne.s32.totalorder %s514, %s530
      %p532 = scmp.eq.s32.totalorder %s46, 0
      %p533 = por %p531, %p532
      %p534 = scmp.le.s32.totalorder 1, %s40
      %p535 = scmp.lt.s32.totalorder %s40, 5
      %p536 = pnand %p534, %p535
      %p537 = pneg %p536
      // Predicated region
      $region9: #{tpu_custom_call.1} parent=5 // pred_check
        _
      $region10: #{tpu_custom_call.1} parent=5 // pred_check_branch
        %539 = sbr.rel (%p536) target = $region12
      $region11: #{tpu_custom_call.1} parent=5 // pred_region
        %s540 = ssub.s32 %s40, 1
        // Predicated region
        $region13: #{tpu_custom_call.1} parent=11 // pred_check
          %p541 = pneg %p437
        $region14: #{tpu_custom_call.1} parent=11 // pred_check_branch
          %543 = sbr.rel (%p541) target = $region16
        $region15: #{tpu_custom_call.1} parent=11 // pred_region
          %s545 = ssub.s32 1024, 1024
          %546 = vsyncadd [#allocation13], %s545
          %s547 = sshll.u32 [#allocation14], 4
          %s548 = int_to_ptr.vmem [resolvable:$true] %s547
          %553 = dma.hbm_to_vmem [thread:$0]  %s14, 1024, %s548, [#allocation13], 64, 64, 4
        $region16: #{tpu_custom_call.1} parent=11 // pred_fallthru
          _
        // Predicated region
        $region17: #{tpu_custom_call.1} parent=11 // pred_check
          %p554 = pneg %p458
        $region18: #{tpu_custom_call.1} parent=11 // pred_check_branch
          %556 = sbr.rel (%p554) target = $region20
        $region19: #{tpu_custom_call.1} parent=11 // pred_region
          _
        $region20: #{tpu_custom_call.1} parent=11 // pred_fallthru
          _
        // Predicated region
        $region21: #{tpu_custom_call.1} parent=11 // pred_check
          %p557 = pneg %p479
        $region22: #{tpu_custom_call.1} parent=11 // pred_check_branch
          %559 = sbr.rel (%p557) target = $region24
        $region23: #{tpu_custom_call.1} parent=11 // pred_region
          %s561 = ssub.s32 2048, 2048
          %562 = vsyncadd [#allocation16], %s561
          %s563 = sshll.u32 [#allocation15], 4
          %s564 = int_to_ptr.vmem [resolvable:$true] %s563
          %569 = dma.hbm_to_vmem [thread:$0]  %s16, 2048, %s564, [#allocation16], 128, 128, 8
        $region24: #{tpu_custom_call.1} parent=11 // pred_fallthru
          _
        // Predicated region
        $region25: #{tpu_custom_call.1} parent=11 // pred_check
          %p570 = pneg %p500
        $region26: #{tpu_custom_call.1} parent=11 // pred_check_branch
          %572 = sbr.rel (%p570) target = $region28
        $region27: #{tpu_custom_call.1} parent=11 // pred_region
          _
        $region28: #{tpu_custom_call.1} parent=11 // pred_fallthru
          _
      $region12: #{tpu_custom_call.1} parent=5 // pred_fallthru
        _
      %p573 = scmp.lt.s32.totalorder %s40, 4
      // Predicated region
      $region29: #{tpu_custom_call.1} parent=5 // pred_check
        %p574 = pneg %p573
      $region30: #{tpu_custom_call.1} parent=5 // pred_check_branch
        %576 = sbr.rel (%p574) target = $region32
      $region31: #{tpu_custom_call.1} parent=5 // pred_region
        // Predicated region
        $region33: #{tpu_custom_call.1} parent=31 // pred_check
          %p577 = pneg %p72
        $region34: #{tpu_custom_call.1} parent=31 // pred_check_branch
          %579 = sbr.rel (%p577) target = $region36
        $region35: #{tpu_custom_call.1} parent=31 // pred_region
          %s580 = sand.u32 %s62, 1
          %s581 = scalar_lea.sflag [#allocation4], %s580
          %s582 = sand.u32 %s62, 1
          %s583 = smul.addr %s582, 8
          %s584 = scalar_lea.vmem [#allocation3], %s583
          %s586 = ssub.s32 128, 128
          %587 = vsyncadd %s581, %s586
          %s588 = smul.addr %s47, 128
          %s589 = scalar_lea.hbm %s0, %s588
          %s591 = sshll.u32 %s584, 4
          %s592 = int_to_ptr.vmem [resolvable:$true] %s591
          %594 = dma.hbm_to_vmem [thread:$0]  %s589, 128, %s592, %s581
        $region36: #{tpu_custom_call.1} parent=31 // pred_fallthru
          _
        // Predicated region
        $region37: #{tpu_custom_call.1} parent=31 // pred_check
          %p595 = pneg %p98
        $region38: #{tpu_custom_call.1} parent=31 // pred_check_branch
          %597 = sbr.rel (%p595) target = $region40
        $region39: #{tpu_custom_call.1} parent=31 // pred_region
          %s598 = sand.u32 %s40, 1
          %s599 = scalar_lea.sflag [#allocation7], %s598
          %s600 = sand.u32 %s88, 1
          %s601 = scalar_lea.vmem [#allocation6], %s600
          %s603 = ssub.s32 16, 16
          %604 = vsyncadd %s599, %s603
          %s605 = smul.addr %s47, 16
          %s606 = scalar_lea.hbm %s1, %s605
          %s608 = sshll.u32 %s601, 4
          %s609 = int_to_ptr.vmem [resolvable:$true] %s608
          %611 = dma.hbm_to_vmem [thread:$0]  %s606, 16, %s609, %s599
        $region40: #{tpu_custom_call.1} parent=31 // pred_fallthru
          _
        // Predicated region
        $region41: #{tpu_custom_call.1} parent=31 // pred_check
          %p612 = pneg %p124
        $region42: #{tpu_custom_call.1} parent=31 // pred_check_branch
          %614 = sbr.rel (%p612) target = $region44
        $region43: #{tpu_custom_call.1} parent=31 // pred_region
          %s615 = sand.u32 %s40, 1
          %s616 = scalar_lea.sflag [#allocation7], %s615
          %s617 = sand.u32 %s114, 1
          %s618 = smul.addr %s617, 192
          %s619 = scalar_lea.vmem [#allocation8], %s618
          %s621 = ssub.s32 3072, 3072
          %622 = vsyncadd %s616, %s621
          %s623 = smul.addr %s48, 48
          %s624 = smul.addr %s623, 64
          %s625 = scalar_lea.hbm %s2, %s624
          %s626 = sshll.u32 %s619, 4
          %s627 = int_to_ptr.vmem [resolvable:$true] %s626
          %632 = dma.hbm_to_vmem [thread:$0]  %s625, 3072, %s627, %s616, 192, 192, 12
        $region44: #{tpu_custom_call.1} parent=31 // pred_fallthru
          _
        // Predicated region
        $region45: #{tpu_custom_call.1} parent=31 // pred_check
          %p633 = pneg %p150
        $region46: #{tpu_custom_call.1} parent=31 // pred_check_branch
          %635 = sbr.rel (%p633) target = $region48
        $region47: #{tpu_custom_call.1} parent=31 // pred_region
          %p636 = scmp.lt.s32.totalorder %s48, 1
          %s637 = scalar_select %p636, %s48, 1
          %s638 = smul.addr %s637, 3
          %s639 = scalar_lea.vmem %s3, %s638
        $region48: #{tpu_custom_call.1} parent=31 // pred_fallthru
          _
        // Predicated region
        $region49: #{tpu_custom_call.1} parent=31 // pred_check
          %p640 = pneg %p176
        $region50: #{tpu_custom_call.1} parent=31 // pred_check_branch
          %642 = sbr.rel (%p640) target = $region52
        $region51: #{tpu_custom_call.1} parent=31 // pred_region
          %s643 = sand.u32 %s40, 1
          %s644 = scalar_lea.sflag [#allocation10], %s643
          %s645 = sand.u32 %s166, 1
          %s646 = smul.addr %s645, 64
          %s647 = scalar_lea.vmem [#allocation9], %s646
          %s649 = ssub.s32 1024, 1024
          %650 = vsyncadd %s644, %s649
          %s651 = smul.addr %s48, 16
          %s652 = smul.addr %s651, 64
          %s653 = scalar_lea.hbm %s4, %s652
          %s654 = sshll.u32 %s647, 4
          %s655 = int_to_ptr.vmem [resolvable:$true] %s654
          %660 = dma.hbm_to_vmem [thread:$0]  %s653, 1024, %s655, %s644, 64, 64, 4
        $region52: #{tpu_custom_call.1} parent=31 // pred_fallthru
          _
        // Predicated region
        $region53: #{tpu_custom_call.1} parent=31 // pred_check
          %p661 = pneg %p202
        $region54: #{tpu_custom_call.1} parent=31 // pred_check_branch
          %663 = sbr.rel (%p661) target = $region56
        $region55: #{tpu_custom_call.1} parent=31 // pred_region
          %p664 = scmp.lt.s32.totalorder %s48, 1
          %s665 = scalar_select %p664, %s48, 1
          %s666 = scalar_lea.vmem %s5, %s665
        $region56: #{tpu_custom_call.1} parent=31 // pred_fallthru
          _
        // Predicated region
        $region57: #{tpu_custom_call.1} parent=31 // pred_check
          %p667 = pneg %p228
        $region58: #{tpu_custom_call.1} parent=31 // pred_check_branch
          %669 = sbr.rel (%p667) target = $region60
        $region59: #{tpu_custom_call.1} parent=31 // pred_region
          %p670 = scmp.lt.s32.totalorder %s48, 1
          %s671 = scalar_select %p670, %s48, 1
          %s672 = scalar_lea.vmem %s6, %s671
        $region60: #{tpu_custom_call.1} parent=31 // pred_fallthru
          _
        // Predicated region
        $region61: #{tpu_custom_call.1} parent=31 // pred_check
          %p673 = pneg %p254
        $region62: #{tpu_custom_call.1} parent=31 // pred_check_branch
          %675 = sbr.rel (%p673) target = $region64
        $region63: #{tpu_custom_call.1} parent=31 // pred_region
          %p676 = scmp.lt.s32.totalorder %s48, 1
          %s677 = scalar_select %p676, %s48, 1
          %s678 = scalar_lea.vmem %s7, %s677
        $region64: #{tpu_custom_call.1} parent=31 // pred_fallthru
          _
        // Predicated region
        $region65: #{tpu_custom_call.1} parent=31 // pred_check
          %p679 = pneg %p280
        $region66: #{tpu_custom_call.1} parent=31 // pred_check_branch
          %681 = sbr.rel (%p679) target = $region68
        $region67: #{tpu_custom_call.1} parent=31 // pred_region
          %s682 = sand.u32 %s40, 1
          %s683 = scalar_lea.sflag [#allocation10], %s682
          %s684 = sand.u32 %s270, 1
          %s685 = smul.addr %s684, 256
          %s686 = scalar_lea.vmem [#allocation11], %s685
          %s688 = ssub.s32 4096, 4096
          %689 = vsyncadd %s683, %s688
          %s690 = smul.addr %s48, 64
          %s691 = smul.addr %s690, 64
          %s692 = scalar_lea.hbm %s8, %s691
          %s693 = sshll.u32 %s686, 4
          %s694 = int_to_ptr.vmem [resolvable:$true] %s693
          %699 = dma.hbm_to_vmem [thread:$0]  %s692, 4096, %s694, %s683, 256, 256, 16
        $region68: #{tpu_custom_call.1} parent=31 // pred_fallthru
          _
        // Predicated region
        $region69: #{tpu_custom_call.1} parent=31 // pred_check
          %p700 = pneg %p306
        $region70: #{tpu_custom_call.1} parent=31 // pred_check_branch
          %702 = sbr.rel (%p700) target = $region72
        $region71: #{tpu_custom_call.1} parent=31 // pred_region
          %p703 = scmp.lt.s32.totalorder %s48, 1
          %s704 = scalar_select %p703, %s48, 1
          %s705 = smul.addr %s704, 4
          %s706 = scalar_lea.vmem %s9, %s705
        $region72: #{tpu_custom_call.1} parent=31 // pred_fallthru
          _
        // Predicated region
        $region73: #{tpu_custom_call.1} parent=31 // pred_check
          %p707 = pneg %p332
        $region74: #{tpu_custom_call.1} parent=31 // pred_check_branch
          %709 = sbr.rel (%p707) target = $region76
        $region75: #{tpu_custom_call.1} parent=31 // pred_region
          %s710 = sand.u32 %s40, 1
          %s711 = scalar_lea.sflag [#allocation13], %s710
          %s712 = sand.u32 %s322, 1
          %s713 = smul.addr %s712, 256
          %s714 = scalar_lea.vmem [#allocation12], %s713
          %s716 = ssub.s32 4096, 4096
          %717 = vsyncadd %s711, %s716
          %s718 = smul.addr %s48, 64
          %s719 = smul.addr %s718, 64
          %s720 = scalar_lea.hbm %s10, %s719
          %s721 = sshll.u32 %s714, 4
          %s722 = int_to_ptr.vmem [resolvable:$true] %s721
          %727 = dma.hbm_to_vmem [thread:$0]  %s720, 4096, %s722, %s711, 64, 64, 4
        $region76: #{tpu_custom_call.1} parent=31 // pred_fallthru
          _
        // Predicated region
        $region77: #{tpu_custom_call.1} parent=31 // pred_check
          %p728 = pneg %p358
        $region78: #{tpu_custom_call.1} parent=31 // pred_check_branch
          %730 = sbr.rel (%p728) target = $region80
        $region79: #{tpu_custom_call.1} parent=31 // pred_region
          %p731 = scmp.lt.s32.totalorder %s48, 1
          %s732 = scalar_select %p731, %s48, 1
          %s733 = scalar_lea.vmem %s11, %s732
        $region80: #{tpu_custom_call.1} parent=31 // pred_fallthru
          _
        // Predicated region
        $region81: #{tpu_custom_call.1} parent=31 // pred_check
          %p734 = pneg %p384
        $region82: #{tpu_custom_call.1} parent=31 // pred_check_branch
          %736 = sbr.rel (%p734) target = $region84
        $region83: #{tpu_custom_call.1} parent=31 // pred_region
          %p737 = scmp.lt.s32.totalorder %s48, 1
          %s738 = scalar_select %p737, %s48, 1
          %s739 = scalar_lea.vmem %s12, %s738
        $region84: #{tpu_custom_call.1} parent=31 // pred_fallthru
          _
        // Predicated region
        $region85: #{tpu_custom_call.1} parent=31 // pred_check
          %p740 = pneg %p410
        $region86: #{tpu_custom_call.1} parent=31 // pred_check_branch
          %742 = sbr.rel (%p740) target = $region88
        $region87: #{tpu_custom_call.1} parent=31 // pred_region
          %p743 = scmp.lt.s32.totalorder %s48, 1
          %s744 = scalar_select %p743, %s48, 1
          %s745 = scalar_lea.vmem %s13, %s744
        $region88: #{tpu_custom_call.1} parent=31 // pred_fallthru
          _
      $region32: #{tpu_custom_call.1} parent=5 // pred_fallthru
        _
      %p746 = scmp.le.s32.totalorder 1, %s40
      %p747 = scmp.lt.s32.totalorder %s40, 5
      %p748 = pnand %p746, %p747
      %p749 = pneg %p748
      // Predicated region
      $region89: #{tpu_custom_call.1} parent=5 // pred_check
        _
      $region90: #{tpu_custom_call.1} parent=5 // pred_check_branch
        %751 = sbr.rel (%p748) target = $region92
      $region91: #{tpu_custom_call.1} parent=5 // pred_region
        %s752 = ssub.s32 %s40, 1
        %s753 = sand.u32 %s65, 1
        %s754 = scalar_lea.sflag [#allocation4], %s753
        %s755 = sand.u32 %s65, 1
        %s756 = smul.addr %s755, 8
        %s757 = scalar_lea.vmem [#allocation3], %s756
        // Predicated region
        $region93: #{tpu_custom_call.1} parent=91 // pred_check
          %p758 = pneg %p78
        $region94: #{tpu_custom_call.1} parent=91 // pred_check_branch
          %760 = sbr.rel (%p758) target = $region96
        $region95: #{tpu_custom_call.1} parent=91 // pred_region
          %761 = dma.done %s754, 128
        $region96: #{tpu_custom_call.1} parent=91 // pred_fallthru
          _
        %s762 = sand.u32 %s45, 1
        %s763 = scalar_lea.sflag [#allocation7], %s762
        %s764 = sand.u32 %s91, 1
        %s765 = scalar_lea.vmem [#allocation6], %s764
        // Predicated region
        $region97: #{tpu_custom_call.1} parent=91 // pred_check
          %p766 = pneg %p104
        $region98: #{tpu_custom_call.1} parent=91 // pred_check_branch
          %768 = sbr.rel (%p766) target = $region100
        $region99: #{tpu_custom_call.1} parent=91 // pred_region
          %769 = dma.done %s763, 16
        $region100: #{tpu_custom_call.1} parent=91 // pred_fallthru
          _
        %s770 = sand.u32 %s45, 1
        %s771 = scalar_lea.sflag [#allocation7], %s770
        %s772 = sand.u32 %s117, 1
        %s773 = smul.addr %s772, 192
        %s774 = scalar_lea.vmem [#allocation8], %s773
        // Predicated region
        $region101: #{tpu_custom_call.1} parent=91 // pred_check
          %p775 = pneg %p130
        $region102: #{tpu_custom_call.1} parent=91 // pred_check_branch
          %777 = sbr.rel (%p775) target = $region104
        $region103: #{tpu_custom_call.1} parent=91 // pred_region
          %778 = dma.done %s771, 3072
        $region104: #{tpu_custom_call.1} parent=91 // pred_fallthru
          _
        %s779 = sand.u32 %s45, 1
        %s780 = scalar_lea.sflag [#allocation10], %s779
        %s781 = sand.u32 %s169, 1
        %s782 = smul.addr %s781, 64
        %s783 = scalar_lea.vmem [#allocation9], %s782
        // Predicated region
        $region105: #{tpu_custom_call.1} parent=91 // pred_check
          %p784 = pneg %p182
        $region106: #{tpu_custom_call.1} parent=91 // pred_check_branch
          %786 = sbr.rel (%p784) target = $region108
        $region107: #{tpu_custom_call.1} parent=91 // pred_region
          %787 = dma.done %s780, 1024
        $region108: #{tpu_custom_call.1} parent=91 // pred_fallthru
          _
        %s788 = sand.u32 %s45, 1
        %s789 = scalar_lea.sflag [#allocation10], %s788
        %s790 = sand.u32 %s273, 1
        %s791 = smul.addr %s790, 256
        %s792 = scalar_lea.vmem [#allocation11], %s791
        // Predicated region
        $region109: #{tpu_custom_call.1} parent=91 // pred_check
          %p793 = pneg %p286
        $region110: #{tpu_custom_call.1} parent=91 // pred_check_branch
          %795 = sbr.rel (%p793) target = $region112
        $region111: #{tpu_custom_call.1} parent=91 // pred_region
          %796 = dma.done %s789, 4096
        $region112: #{tpu_custom_call.1} parent=91 // pred_fallthru
          _
        %s797 = sand.u32 %s45, 1
        %s798 = scalar_lea.sflag [#allocation13], %s797
        %s799 = sand.u32 %s325, 1
        %s800 = smul.addr %s799, 256
        %s801 = scalar_lea.vmem [#allocation12], %s800
        // Predicated region
        $region113: #{tpu_custom_call.1} parent=91 // pred_check
          %p802 = pneg %p338
        $region114: #{tpu_custom_call.1} parent=91 // pred_check_branch
          %804 = sbr.rel (%p802) target = $region116
        $region115: #{tpu_custom_call.1} parent=91 // pred_region
          %805 = dma.done %s798, 4096
        $region116: #{tpu_custom_call.1} parent=91 // pred_fallthru
          _
        // Predicated region
        $region117: #{tpu_custom_call.1} parent=91 // pred_check
          %p806 = pneg %p437
        $region118: #{tpu_custom_call.1} parent=91 // pred_check_branch
          %808 = sbr.rel (%p806) target = $region120
        $region119: #{tpu_custom_call.1} parent=91 // pred_region
          %809 = dma.done [#allocation13], 1024
        $region120: #{tpu_custom_call.1} parent=91 // pred_fallthru
          _
        // Predicated region
        $region121: #{tpu_custom_call.1} parent=91 // pred_check
          %p810 = pneg %p479
        $region122: #{tpu_custom_call.1} parent=91 // pred_check_branch
          %812 = sbr.rel (%p810) target = $region124
        $region123: #{tpu_custom_call.1} parent=91 // pred_region
          %813 = dma.done [#allocation16], 2048
        $region124: #{tpu_custom_call.1} parent=91 // pred_fallthru
          _
        %s814 = sand.u32 %s65, 1
        %s815 = scalar_lea.sflag [#allocation4], %s814
        %s816 = sand.u32 %s65, 1
        %s817 = smul.addr %s816, 8
        %s818 = scalar_lea.vmem [#allocation3], %s817
        %p819 = pneg %p78
        %p820 = pneg %p75
        %s821 = sand.u32 %s45, 1
        %s822 = scalar_lea.sflag [#allocation7], %s821
        %s823 = sand.u32 %s91, 1
        %s824 = scalar_lea.vmem [#allocation6], %s823
        %p825 = pneg %p104
        %p826 = pneg %p101
        %s827 = sand.u32 %s45, 1
        %s828 = scalar_lea.sflag [#allocation7], %s827
        %s829 = sand.u32 %s117, 1
        %s830 = smul.addr %s829, 192
        %s831 = scalar_lea.vmem [#allocation8], %s830
        %p832 = pneg %p130
        %p833 = pneg %p127
        %p834 = scmp.lt.s32.totalorder %s50, 1
        %s835 = scalar_select %p834, %s50, 1
        %s836 = smul.addr %s835, 3
        %s837 = scalar_lea.vmem %s3, %s836
        %p838 = pneg %p156
        %p839 = pneg %p153
        %s840 = sand.u32 %s45, 1
        %s841 = scalar_lea.sflag [#allocation10], %s840
        %s842 = sand.u32 %s169, 1
        %s843 = smul.addr %s842, 64
        %s844 = scalar_lea.vmem [#allocation9], %s843
        %p845 = pneg %p182
        %p846 = pneg %p179
        %p847 = scmp.lt.s32.totalorder %s50, 1
        %s848 = scalar_select %p847, %s50, 1
        %s849 = scalar_lea.vmem %s5, %s848
        %p850 = pneg %p208
        %p851 = pneg %p205
        %p852 = scmp.lt.s32.totalorder %s50, 1
        %s853 = scalar_select %p852, %s50, 1
        %s854 = scalar_lea.vmem %s6, %s853
        %p855 = pneg %p234
        %p856 = pneg %p231
        %p857 = scmp.lt.s32.totalorder %s50, 1
        %s858 = scalar_select %p857, %s50, 1
        %s859 = scalar_lea.vmem %s7, %s858
        %p860 = pneg %p260
        %p861 = pneg %p257
        %s862 = sand.u32 %s45, 1
        %s863 = scalar_lea.sflag [#allocation10], %s862
        %s864 = sand.u32 %s273, 1
        %s865 = smul.addr %s864, 256
        %s866 = scalar_lea.vmem [#allocation11], %s865
        %p867 = pneg %p286
        %p868 = pneg %p283
        %p869 = scmp.lt.s32.totalorder %s50, 1
        %s870 = scalar_select %p869, %s50, 1
        %s871 = smul.addr %s870, 4
        %s872 = scalar_lea.vmem %s9, %s871
        %p873 = pneg %p312
        %p874 = pneg %p309
        %s875 = sand.u32 %s45, 1
        %s876 = scalar_lea.sflag [#allocation13], %s875
        %s877 = sand.u32 %s325, 1
        %s878 = smul.addr %s877, 256
        %s879 = scalar_lea.vmem [#allocation12], %s878
        %p880 = pneg %p338
        %p881 = pneg %p335
        %p882 = scmp.lt.s32.totalorder %s50, 1
        %s883 = scalar_select %p882, %s50, 1
        %s884 = scalar_lea.vmem %s11, %s883
        %p885 = pneg %p364
        %p886 = pneg %p361
        %p887 = scmp.lt.s32.totalorder %s50, 1
        %s888 = scalar_select %p887, %s50, 1
        %s889 = scalar_lea.vmem %s12, %s888
        %p890 = pneg %p390
        %p891 = pneg %p387
        %p892 = scmp.lt.s32.totalorder %s50, 1
        %s893 = scalar_select %p892, %s50, 1
        %s894 = scalar_lea.vmem %s13, %s893
        %p895 = pneg %p416
        %p896 = pneg %p413
        %p897 = pneg %p437
        %p898 = pneg %p434
        %p899 = pneg %p458
        %p900 = pneg %p455
        %p901 = pneg %p479
        %p902 = pneg %p476
        %p903 = pneg %p500
        %p904 = pneg %p497
        %p905 = pneg %p526
        %p906 = pneg %p523
        %s907 = sand.u32 %s513, 1
        %s908 = scalar_lea.sflag [#allocation5], %s907
        %s909 = sand.u32 %s513, 1
        %s910 = smul.addr %s909, 2
        %s911 = scalar_lea.vmem [#allocation17], %s910
        %p912 = scmp.lt.s32.totalorder %s50, 1
        %s913 = scalar_select %p912, %s50, 1
        %s914 = smul.addr %s913, 3
        %s915 = scalar_lea.vmem %s3, %s914
        %p916 = scmp.lt.s32.totalorder %s50, 1
        %s917 = scalar_select %p916, %s50, 1
        %s918 = scalar_lea.vmem %s5, %s917
        %p919 = scmp.lt.s32.totalorder %s50, 1
        %s920 = scalar_select %p919, %s50, 1
        %s921 = scalar_lea.vmem %s6, %s920
        %p922 = scmp.lt.s32.totalorder %s50, 1
        %s923 = scalar_select %p922, %s50, 1
        %s924 = scalar_lea.vmem %s7, %s923
        %p925 = scmp.lt.s32.totalorder %s50, 1
        %s926 = scalar_select %p925, %s50, 1
        %s927 = smul.addr %s926, 4
        %s928 = scalar_lea.vmem %s9, %s927
        %p929 = scmp.lt.s32.totalorder %s50, 1
        %s930 = scalar_select %p929, %s50, 1
        %s931 = scalar_lea.vmem %s11, %s930
        %p932 = scmp.lt.s32.totalorder %s50, 1
        %s933 = scalar_select %p932, %s50, 1
        %s934 = scalar_lea.vmem %s12, %s933
        %p935 = scmp.lt.s32.totalorder %s50, 1
        %s936 = scalar_select %p935, %s50, 1
        %s937 = scalar_lea.vmem %s13, %s936
        %p939 = scmp.eq.s32.totalorder %s50, 0
        // Predicated region
        $region125: #{tpu_custom_call.1} parent=91 // pred_check
          %p940 = pneg %p939
        $region126: #{tpu_custom_call.1} parent=91 // pred_check_branch
          %942 = sbr.rel (%p940) target = $region128
        $region127: #{tpu_custom_call.1} parent=91 // pred_region
          %v943 = vld [vmem:[%s757] sm:$0xff]
          %944 = vst [vmem:[#allocation2] sm:$0xff] %v943
        $region128: #{tpu_custom_call.1} parent=91 // pred_fallthru
          _
        %v945 = vld [vmem:[#allocation2] sm:$0xff]
        %v946 = vld [vmem:[%s765] sm:$0x1]
        %v947 = vpack.c.bf16 %v945, %v945
        %v948 = vld [vmem:[%s774] sm:$0xff]
        %v949 = vld [vmem:[%s774 + $0x8] sm:$0xf]
        %v950 = vld [vmem:[%s774 + $0xc] sm:$0xff]
        %v951 = vld [vmem:[%s774 + $0x14] sm:$0xf]
        %v952 = vld [vmem:[%s774 + $0x18] sm:$0xff]
        %v953 = vld [vmem:[%s774 + $0x20] sm:$0xf]
        %v954 = vld [vmem:[%s774 + $0x24] sm:$0xff]
        %v955 = vld [vmem:[%s774 + $0x2c] sm:$0xf]
        %v956 = vld [vmem:[%s774 + $0x30] sm:$0xff]
        %v957 = vld [vmem:[%s774 + $0x38] sm:$0xf]
        %v958 = vld [vmem:[%s774 + $0x3c] sm:$0xff]
        %v959 = vld [vmem:[%s774 + $0x44] sm:$0xf]
        %v960 = vld [vmem:[%s774 + $0x48] sm:$0xff]
        %v961 = vld [vmem:[%s774 + $0x50] sm:$0xf]
        %v962 = vld [vmem:[%s774 + $0x54] sm:$0xff]
        %v963 = vld [vmem:[%s774 + $0x5c] sm:$0xf]
        %v964 = vld [vmem:[%s774 + $0x60] sm:$0xff]
        %v965 = vld [vmem:[%s774 + $0x68] sm:$0xf]
        %v966 = vld [vmem:[%s774 + $0x6c] sm:$0xff]
        %v967 = vld [vmem:[%s774 + $0x74] sm:$0xf]
        %v968 = vld [vmem:[%s774 + $0x78] sm:$0xff]
        %v969 = vld [vmem:[%s774 + $0x80] sm:$0xf]
        %v970 = vld [vmem:[%s774 + $0x84] sm:$0xff]
        %v971 = vld [vmem:[%s774 + $0x8c] sm:$0xf]
        %v972 = vld [vmem:[%s774 + $0x90] sm:$0xff]
        %v973 = vld [vmem:[%s774 + $0x98] sm:$0xf]
        %v974 = vld [vmem:[%s774 + $0x9c] sm:$0xff]
        %v975 = vld [vmem:[%s774 + $0xa4] sm:$0xf]
        %v976 = vld [vmem:[%s774 + $0xa8] sm:$0xff]
        %v977 = vld [vmem:[%s774 + $0xb0] sm:$0xf]
        %v978 = vld [vmem:[%s774 + $0xb4] sm:$0xff]
        %v979 = vld [vmem:[%s774 + $0xbc] sm:$0xf]
        %v980 = vld [vmem:[%s915] sm:$0x7]
        %v982 = vlaneseq
        %v983 = vshrl.u32 %v982, 7
        %v984 = vsub.s32 0, %v983
        %v985 = vrot.slane %v980, %v984
        %v986 = vlaneseq
        %v987 = vshrl.u32 %v986, 7
        %v988 = vsub.s32 1, %v987
        %v989 = vrot.slane %v980, %v988
        %v990 = vlaneseq
        %v991 = vshrl.u32 %v990, 7
        %v992 = vsub.s32 2, %v991
        %v993 = vrot.slane %v980, %v992
        %v1029 = vunpack.c.l.b16 %v948
        %v1030 = vunpack.c.h.b16 %v948
        %v1031 = vunpack.c.l.b16 %v949
        %v1032 = vunpack.c.l.b16 %v950
        %v1033 = vunpack.c.h.b16 %v950
        %v1034 = vunpack.c.l.b16 %v951
        %v1035 = vunpack.c.l.b16 %v952
        %v1036 = vunpack.c.h.b16 %v952
        %v1037 = vunpack.c.l.b16 %v953
        %v1038 = vunpack.c.l.b16 %v954
        %v1039 = vunpack.c.h.b16 %v954
        %v1040 = vunpack.c.l.b16 %v955
        %v1041 = vunpack.c.l.b16 %v956
        %v1042 = vunpack.c.h.b16 %v956
        %v1043 = vunpack.c.l.b16 %v957
        %v1044 = vunpack.c.l.b16 %v958
        %v1045 = vunpack.c.h.b16 %v958
        %v1046 = vunpack.c.l.b16 %v959
        %v1047 = vunpack.c.l.b16 %v960
        %v1048 = vunpack.c.h.b16 %v960
        %v1049 = vunpack.c.l.b16 %v961
        %v1050 = vunpack.c.l.b16 %v962
        %v1051 = vunpack.c.h.b16 %v962
        %v1052 = vunpack.c.l.b16 %v963
        %v1053 = vunpack.c.l.b16 %v964
        %v1054 = vunpack.c.h.b16 %v964
        %v1055 = vunpack.c.l.b16 %v965
        %v1056 = vunpack.c.l.b16 %v966
        %v1057 = vunpack.c.h.b16 %v966
        %v1058 = vunpack.c.l.b16 %v967
        %v1059 = vunpack.c.l.b16 %v968
        %v1060 = vunpack.c.h.b16 %v968
        %v1061 = vunpack.c.l.b16 %v969
        %v1062 = vunpack.c.l.b16 %v970
        %v1063 = vunpack.c.h.b16 %v970
        %v1064 = vunpack.c.l.b16 %v971
        %v1065 = vunpack.c.l.b16 %v972
        %v1066 = vunpack.c.h.b16 %v972
        %v1067 = vunpack.c.l.b16 %v973
        %v1068 = vunpack.c.l.b16 %v974
        %v1069 = vunpack.c.h.b16 %v974
        %v1070 = vunpack.c.l.b16 %v975
        %v1071 = vunpack.c.l.b16 %v976
        %v1072 = vunpack.c.h.b16 %v976
        %v1073 = vunpack.c.l.b16 %v977
        %v1074 = vunpack.c.l.b16 %v978
        %v1075 = vunpack.c.h.b16 %v978
        %v1076 = vunpack.c.l.b16 %v979
        %v1077 = vpack.c.b16 %v1032, %v1029
        %v1078 = vpack.c.b16 %v1033, %v1030
        %v1079 = vpack.c.b16 %v1034, %v1031
        %v1080 = vpack.c.b16 %v1038, %v1035
        %v1081 = vpack.c.b16 %v1039, %v1036
        %v1082 = vpack.c.b16 %v1040, %v1037
        %v1083 = vpack.c.b16 %v1044, %v1041
        %v1084 = vpack.c.b16 %v1045, %v1042
        %v1085 = vpack.c.b16 %v1046, %v1043
        %v1086 = vpack.c.b16 %v1050, %v1047
        %v1087 = vpack.c.b16 %v1051, %v1048
        %v1088 = vpack.c.b16 %v1052, %v1049
        %v1089 = vpack.c.b16 %v1056, %v1053
        %v1090 = vpack.c.b16 %v1057, %v1054
        %v1091 = vpack.c.b16 %v1058, %v1055
        %v1092 = vpack.c.b16 %v1062, %v1059
        %v1093 = vpack.c.b16 %v1063, %v1060
        %v1094 = vpack.c.b16 %v1064, %v1061
        %v1095 = vpack.c.b16 %v1068, %v1065
        %v1096 = vpack.c.b16 %v1069, %v1066
        %v1097 = vpack.c.b16 %v1070, %v1067
        %v1098 = vpack.c.b16 %v1074, %v1071
        %v1099 = vpack.c.b16 %v1075, %v1072
        %v1100 = vpack.c.b16 %v1076, %v1073
        %1125 = vmatprep.subr.bf16.mxu0 %v1078
        %1126 = vmatpush1.bf16.msra.mxu0 %v1077
        %1127 = vmatprep.subr.bf16.mxu0 %v1081
        %1128 = vmatpush1.bf16.msra.mxu0 %v1080
        %1129 = vmatprep.subr.bf16.mxu0 %v1084
        %1130 = vmatpush1.bf16.msra.mxu0 %v1083
        %1131 = vmatprep.subr.bf16.mxu0 %v1087
        %1132 = vmatpush1.bf16.msra.mxu0 %v1086
        %1133 = vmatprep.subr.bf16.mxu0 %v1090
        %1134 = vmatpush1.bf16.msra.mxu0 %v1089
        %1135 = vmatprep.subr.bf16.mxu0 %v1093
        %1136 = vmatpush1.bf16.msra.mxu0 %v1092
        %1137 = vmatprep.subr.bf16.mxu0 %v1096
        %1138 = vmatpush1.bf16.msra.mxu0 %v1095
        %1139 = vmatprep.subr.bf16.mxu0 %v1099
        %1140 = vmatpush1.bf16.msra.mxu0 %v1098
        %1141 = vmatprep.subr.bf16.mxu0 0
        %1142 = vmatpush1.bf16.msra.mxu0 0
        %1143 = vmatprep.subr.bf16.mxu0 0
        %1144 = vmatpush1.bf16.msra.mxu0 0
        %1145 = vmatprep.subr.bf16.mxu0 0
        %1146 = vmatpush1.bf16.msra.mxu0 0
        %1147 = vmatprep.subr.bf16.mxu0 0
        %1148 = vmatpush1.bf16.msra.mxu0 0
        %1149 = vmatprep.subr.bf16.mxu0 0
        %1150 = vmatpush1.bf16.msra.mxu0 0
        %1151 = vmatprep.subr.bf16.mxu0 0
        %1152 = vmatpush1.bf16.msra.mxu0 0
        %1153 = vmatprep.subr.bf16.mxu0 0
        %1154 = vmatpush1.bf16.msra.mxu0 0
        %1155 = vmatprep.subr.bf16.mxu0 0
        %1156 = vmatpush1.bf16.msra.mxu0 0
        %1157 = vmatprep.mubr.bf16.mxu0 0
        %1158 = vmatmul.mubr.bf16.gmra.mrb[0].mxu0 %v947
        %v1159 = vpop.f32.mrb[0].mxu0
        %v1160 = vadd.f32 %v985, %v1159
        %v1161 = vpop.f32.mrb[0].mxu0
        %v1162 = vadd.f32 %v989, %v1161
        %v1163 = vpop.f32.mrb[0].mxu0
        %v1164 = vpop.f32.mrb[0].mxu0
        %1165 = vdwg.mxu0
        %1166 = vmatprep.subr.bf16.mxu0 0
        %1167 = vmatpush1.bf16.msra.mxu0 %v1079
        %1168 = vmatprep.subr.bf16.mxu0 0
        %1169 = vmatpush1.bf16.msra.mxu0 %v1082
        %1170 = vmatprep.subr.bf16.mxu0 0
        %1171 = vmatpush1.bf16.msra.mxu0 %v1085
        %1172 = vmatprep.subr.bf16.mxu0 0
        %1173 = vmatpush1.bf16.msra.mxu0 %v1088
        %1174 = vmatprep.subr.bf16.mxu0 0
        %1175 = vmatpush1.bf16.msra.mxu0 %v1091
        %1176 = vmatprep.subr.bf16.mxu0 0
        %1177 = vmatpush1.bf16.msra.mxu0 %v1094
        %1178 = vmatprep.subr.bf16.mxu0 0
        %1179 = vmatpush1.bf16.msra.mxu0 %v1097
        %1180 = vmatprep.subr.bf16.mxu0 0
        %1181 = vmatpush1.bf16.msra.mxu0 %v1100
        %1182 = vmatprep.subr.bf16.mxu0 0
        %1183 = vmatpush1.bf16.msra.mxu0 0
        %1184 = vmatprep.subr.bf16.mxu0 0
        %1185 = vmatpush1.bf16.msra.mxu0 0
        %1186 = vmatprep.subr.bf16.mxu0 0
        %1187 = vmatpush1.bf16.msra.mxu0 0
        %1188 = vmatprep.subr.bf16.mxu0 0
        %1189 = vmatpush1.bf16.msra.mxu0 0
        %1190 = vmatprep.subr.bf16.mxu0 0
        %1191 = vmatpush1.bf16.msra.mxu0 0
        %1192 = vmatprep.subr.bf16.mxu0 0
        %1193 = vmatpush1.bf16.msra.mxu0 0
        %1194 = vmatprep.subr.bf16.mxu0 0
        %1195 = vmatpush1.bf16.msra.mxu0 0
        %1196 = vmatprep.subr.bf16.mxu0 0
        %1197 = vmatpush1.bf16.msra.mxu0 0
        %1198 = vmatprep.mubr.bf16.mxu0 0
        %1199 = vmatmul.mubr.bf16.gmra.mrb[0].mxu0 %v947
        %v1200 = vpop.f32.mrb[0].mxu0
        %v1201 = vadd.f32 %v993, %v1200
        %v1202 = vpop.f32.mrb[0].mxu0
        %v1203 = vpop.f32.mrb[0].mxu0
        %v1204 = vpop.f32.mrb[0].mxu0
        %1205 = vdwg.mxu0
        %v1206 = vpack.c.bf16 %v1160, %v1160
        %v1207 = vpack.c.bf16 %v1162, %v1162
        %v1208 = vpack.c.bf16 %v1201, %v1201
        %v1210 = vlaneseq
        %v1211 = vshrl.u32 %v1210, 7
        %v1212 = vsub.s32 0, %v1211
        %v1213 = vrot.slane %v946, %v1212
        %vm1215 = vcmask 261120
        %v1217 = vsel %vm1215, %v1206, 0
        %v1220 = vsel %vm1215, %v1207, 0
        %1222 = vmatprep.subr.bf16.mxu0 0
        %1223 = vmatpush1.bf16.xpose.msra.mxu0 %v1220
        %1224 = vmatprep.subr.bf16.mxu0 0
        %1225 = vmatpush1.bf16.xpose.msra.mxu0 0
        %1226 = vmatprep.subr.bf16.mxu0 0
        %1227 = vmatpush1.bf16.xpose.msra.mxu0 0
        %1228 = vmatprep.subr.bf16.mxu0 0
        %1229 = vmatpush1.bf16.xpose.msra.mxu0 0
        %1230 = vmatprep.subr.bf16.mxu0 0
        %1231 = vmatpush1.bf16.xpose.msra.mxu0 0
        %1232 = vmatprep.subr.bf16.mxu0 0
        %1233 = vmatpush1.bf16.xpose.msra.mxu0 0
        %1234 = vmatprep.subr.bf16.mxu0 0
        %1235 = vmatpush1.bf16.xpose.msra.mxu0 0
        %1236 = vmatprep.subr.bf16.mxu0 0
        %1237 = vmatpush1.bf16.xpose.msra.mxu0 0
        %1238 = vmatprep.subr.bf16.mxu0 0
        %1239 = vmatpush1.bf16.xpose.msra.mxu0 0
        %1240 = vmatprep.subr.bf16.mxu0 0
        %1241 = vmatpush1.bf16.xpose.msra.mxu0 0
        %1242 = vmatprep.subr.bf16.mxu0 0
        %1243 = vmatpush1.bf16.xpose.msra.mxu0 0
        %1244 = vmatprep.subr.bf16.mxu0 0
        %1245 = vmatpush1.bf16.xpose.msra.mxu0 0
        %1246 = vmatprep.subr.bf16.mxu0 0
        %1247 = vmatpush1.bf16.xpose.msra.mxu0 0
        %1248 = vmatprep.subr.bf16.mxu0 0
        %1249 = vmatpush1.bf16.xpose.msra.mxu0 0
        %1250 = vmatprep.subr.bf16.mxu0 0
        %1251 = vmatpush1.bf16.xpose.msra.mxu0 0
        %1252 = vmatprep.subr.bf16.mxu0 0
        %1253 = vmatpush1.bf16.xpose.msra.mxu0 0
        %1254 = vmatprep.mubr.bf16.mxu0 0
        %1255 = vmatmul.mubr.bf16.gmra.mrb[0].mxu0 %v1217
        %v1256 = vpop.f32.mrb[0].mxu0
        %v1257 = vadd.f32 %v1213, %v1256
        %v1258 = vpop.f32.mrb[0].mxu0
        %v1259 = vpop.f32.mrb[0].mxu0
        %v1260 = vpop.f32.mrb[0].mxu0
        %1261 = vdwg.mxu0
        %vm1262 = vcmask 64512
        %v1263 = vsel %vm1262, %v1257, -inf
        %1264 = vmax.xlane.f32.xlu0 %v1263
        %v1265 = vpop.xlane.xlu0 %1264
        %v1266 = vsub.f32 %v1257, %v1265
        %v1267 = vmul.f32 %v1266, 1.442695
        %v1268 = vpow.pop %v1267
        %v1269 = vsel %vm1262, %v1268, 0.0
        %1270 = vadd.xlane.f32.xlu0 %v1269
        %v1271 = vpop.xlane.xlu0 %1270
        %v1272 = vrcp.pop %v1271
        %v1273 = vmul.f32 %v1268, %v1272
        %v1274 = vpack.c.bf16 %v1273, %v1273
        %v1276 = vsel %vm1262, %v1274, 0
        %vm1278 = vcmask 1043456
        %v1280 = vsel %vm1278, %v1208, 0
        %1282 = vmatprep.subr.bf16.mxu0 0
        %1283 = vmatpush1.bf16.msra.mxu0 %v1280
        %1284 = vmatprep.subr.bf16.mxu0 0
        %1285 = vmatpush1.bf16.msra.mxu0 0
        %1286 = vmatprep.subr.bf16.mxu0 0
        %1287 = vmatpush1.bf16.msra.mxu0 0
        %1288 = vmatprep.subr.bf16.mxu0 0
        %1289 = vmatpush1.bf16.msra.mxu0 0
        %1290 = vmatprep.subr.bf16.mxu0 0
        %1291 = vmatpush1.bf16.msra.mxu0 0
        %1292 = vmatprep.subr.bf16.mxu0 0
        %1293 = vmatpush1.bf16.msra.mxu0 0
        %1294 = vmatprep.subr.bf16.mxu0 0
        %1295 = vmatpush1.bf16.msra.mxu0 0
        %1296 = vmatprep.subr.bf16.mxu0 0
        %1297 = vmatpush1.bf16.msra.mxu0 0
        %1298 = vmatprep.subr.bf16.mxu0 0
        %1299 = vmatpush1.bf16.msra.mxu0 0
        %1300 = vmatprep.subr.bf16.mxu0 0
        %1301 = vmatpush1.bf16.msra.mxu0 0
        %1302 = vmatprep.subr.bf16.mxu0 0
        %1303 = vmatpush1.bf16.msra.mxu0 0
        %1304 = vmatprep.subr.bf16.mxu0 0
        %1305 = vmatpush1.bf16.msra.mxu0 0
        %1306 = vmatprep.subr.bf16.mxu0 0
        %1307 = vmatpush1.bf16.msra.mxu0 0
        %1308 = vmatprep.subr.bf16.mxu0 0
        %1309 = vmatpush1.bf16.msra.mxu0 0
        %1310 = vmatprep.subr.bf16.mxu0 0
        %1311 = vmatpush1.bf16.msra.mxu0 0
        %1312 = vmatprep.subr.bf16.mxu0 0
        %1313 = vmatpush1.bf16.msra.mxu0 0
        %1314 = vmatprep.mubr.bf16.mxu0 0
        %1315 = vmatmul.mubr.bf16.gmra.mrb[0].mxu0 %v1276
        %v1316 = vpop.f32.mrb[0].mxu0
        %v1317 = vadd.f32 0.0, %v1316
        %v1318 = vpop.f32.mrb[0].mxu0
        %v1319 = vpop.f32.mrb[0].mxu0
        %v1320 = vpop.f32.mrb[0].mxu0
        %1321 = vdwg.mxu0
        %1323 = vrot.lane.b32.xlu0 %v1206, 96
        %v1324 = vpop.permute.xlu0 %1323
        %1326 = vrot.lane.b32.xlu0 %v1207, 96
        %v1327 = vpop.permute.xlu0 %1326
        %v1329 = vsel %vm1215, %v1324, 0
        %v1332 = vsel %vm1215, %v1327, 0
        %1334 = vmatprep.subr.bf16.mxu0 0
        %1335 = vmatpush1.bf16.xpose.msra.mxu0 %v1332
        %1336 = vmatprep.subr.bf16.mxu0 0
        %1337 = vmatpush1.bf16.xpose.msra.mxu0 0
        %1338 = vmatprep.subr.bf16.mxu0 0
        %1339 = vmatpush1.bf16.xpose.msra.mxu0 0
        %1340 = vmatprep.subr.bf16.mxu0 0
        %1341 = vmatpush1.bf16.xpose.msra.mxu0 0
        %1342 = vmatprep.subr.bf16.mxu0 0
        %1343 = vmatpush1.bf16.xpose.msra.mxu0 0
        %1344 = vmatprep.subr.bf16.mxu0 0
        %1345 = vmatpush1.bf16.xpose.msra.mxu0 0
        %1346 = vmatprep.subr.bf16.mxu0 0
        %1347 = vmatpush1.bf16.xpose.msra.mxu0 0
        %1348 = vmatprep.subr.bf16.mxu0 0
        %1349 = vmatpush1.bf16.xpose.msra.mxu0 0
        %1350 = vmatprep.subr.bf16.mxu0 0
        %1351 = vmatpush1.bf16.xpose.msra.mxu0 0
        %1352 = vmatprep.subr.bf16.mxu0 0
        %1353 = vmatpush1.bf16.xpose.msra.mxu0 0
        %1354 = vmatprep.subr.bf16.mxu0 0
        %1355 = vmatpush1.bf16.xpose.msra.mxu0 0
        %1356 = vmatprep.subr.bf16.mxu0 0
        %1357 = vmatpush1.bf16.xpose.msra.mxu0 0
        %1358 = vmatprep.subr.bf16.mxu0 0
        %1359 = vmatpush1.bf16.xpose.msra.mxu0 0
        %1360 = vmatprep.subr.bf16.mxu0 0
        %1361 = vmatpush1.bf16.xpose.msra.mxu0 0
        %1362 = vmatprep.subr.bf16.mxu0 0
        %1363 = vmatpush1.bf16.xpose.msra.mxu0 0
        %1364 = vmatprep.subr.bf16.mxu0 0
        %1365 = vmatpush1.bf16.xpose.msra.mxu0 0
        %1366 = vmatprep.mubr.bf16.mxu0 0
        %1367 = vmatmul.mubr.bf16.gmra.mrb[0].mxu0 %v1329
        %v1368 = vpop.f32.mrb[0].mxu0
        %v1369 = vadd.f32 %v1213, %v1368
        %v1370 = vpop.f32.mrb[0].mxu0
        %v1371 = vpop.f32.mrb[0].mxu0
        %v1372 = vpop.f32.mrb[0].mxu0
        %1373 = vdwg.mxu0
        %v1374 = vsel %vm1262, %v1369, -inf
        %1375 = vmax.xlane.f32.xlu0 %v1374
        %v1376 = vpop.xlane.xlu0 %1375
        %v1377 = vsub.f32 %v1369, %v1376
        %v1378 = vmul.f32 %v1377, 1.442695
        %v1379 = vpow.pop %v1378
        %v1380 = vsel %vm1262, %v1379, 0.0
        %1381 = vadd.xlane.f32.xlu0 %v1380
        %v1382 = vpop.xlane.xlu0 %1381
        %v1383 = vrcp.pop %v1382
        %v1384 = vmul.f32 %v1379, %v1383
        %v1385 = vpack.c.bf16 %v1384, %v1384
        %1387 = vrot.lane.b32.xlu0 %v1208, 96
        %v1388 = vpop.permute.xlu0 %1387
        %v1390 = vsel %vm1262, %v1385, 0
        %v1393 = vsel %vm1278, %v1388, 0
        %1395 = vmatprep.subr.bf16.mxu0 0
        %1396 = vmatpush1.bf16.msra.mxu0 %v1393
        %1397 = vmatprep.subr.bf16.mxu0 0
        %1398 = vmatpush1.bf16.msra.mxu0 0
        %1399 = vmatprep.subr.bf16.mxu0 0
        %1400 = vmatpush1.bf16.msra.mxu0 0
        %1401 = vmatprep.subr.bf16.mxu0 0
        %1402 = vmatpush1.bf16.msra.mxu0 0
        %1403 = vmatprep.subr.bf16.mxu0 0
        %1404 = vmatpush1.bf16.msra.mxu0 0
        %1405 = vmatprep.subr.bf16.mxu0 0
        %1406 = vmatpush1.bf16.msra.mxu0 0
        %1407 = vmatprep.subr.bf16.mxu0 0
        %1408 = vmatpush1.bf16.msra.mxu0 0
        %1409 = vmatprep.subr.bf16.mxu0 0
        %1410 = vmatpush1.bf16.msra.mxu0 0
        %1411 = vmatprep.subr.bf16.mxu0 0
        %1412 = vmatpush1.bf16.msra.mxu0 0
        %1413 = vmatprep.subr.bf16.mxu0 0
        %1414 = vmatpush1.bf16.msra.mxu0 0
        %1415 = vmatprep.subr.bf16.mxu0 0
        %1416 = vmatpush1.bf16.msra.mxu0 0
        %1417 = vmatprep.subr.bf16.mxu0 0
        %1418 = vmatpush1.bf16.msra.mxu0 0
        %1419 = vmatprep.subr.bf16.mxu0 0
        %1420 = vmatpush1.bf16.msra.mxu0 0
        %1421 = vmatprep.subr.bf16.mxu0 0
        %1422 = vmatpush1.bf16.msra.mxu0 0
        %1423 = vmatprep.subr.bf16.mxu0 0
        %1424 = vmatpush1.bf16.msra.mxu0 0
        %1425 = vmatprep.subr.bf16.mxu0 0
        %1426 = vmatpush1.bf16.msra.mxu0 0
        %1427 = vmatprep.mubr.bf16.mxu0 0
        %1428 = vmatmul.mubr.bf16.gmra.mrb[0].mxu0 %v1390
        %v1429 = vpop.f32.mrb[0].mxu0
        %v1430 = vadd.f32 0.0, %v1429
        %v1431 = vpop.f32.mrb[0].mxu0
        %v1432 = vpop.f32.mrb[0].mxu0
        %v1433 = vpop.f32.mrb[0].mxu0
        %1434 = vdwg.mxu0
        %1435 = vrot.lane.b32.xlu0 %v1206, 64
        %v1436 = vpop.permute.xlu0 %1435
        %1437 = vrot.lane.b32.xlu0 %v1207, 64
        %v1438 = vpop.permute.xlu0 %1437
        %v1440 = vsel %vm1215, %v1436, 0
        %v1443 = vsel %vm1215, %v1438, 0
        %1445 = vmatprep.subr.bf16.mxu0 0
        %1446 = vmatpush1.bf16.xpose.msra.mxu0 %v1443
        %1447 = vmatprep.subr.bf16.mxu0 0
        %1448 = vmatpush1.bf16.xpose.msra.mxu0 0
        %1449 = vmatprep.subr.bf16.mxu0 0
        %1450 = vmatpush1.bf16.xpose.msra.mxu0 0
        %1451 = vmatprep.subr.bf16.mxu0 0
        %1452 = vmatpush1.bf16.xpose.msra.mxu0 0
        %1453 = vmatprep.subr.bf16.mxu0 0
        %1454 = vmatpush1.bf16.xpose.msra.mxu0 0
        %1455 = vmatprep.subr.bf16.mxu0 0
        %1456 = vmatpush1.bf16.xpose.msra.mxu0 0
        %1457 = vmatprep.subr.bf16.mxu0 0
        %1458 = vmatpush1.bf16.xpose.msra.mxu0 0
        %1459 = vmatprep.subr.bf16.mxu0 0
        %1460 = vmatpush1.bf16.xpose.msra.mxu0 0
        %1461 = vmatprep.subr.bf16.mxu0 0
        %1462 = vmatpush1.bf16.xpose.msra.mxu0 0
        %1463 = vmatprep.subr.bf16.mxu0 0
        %1464 = vmatpush1.bf16.xpose.msra.mxu0 0
        %1465 = vmatprep.subr.bf16.mxu0 0
        %1466 = vmatpush1.bf16.xpose.msra.mxu0 0
        %1467 = vmatprep.subr.bf16.mxu0 0
        %1468 = vmatpush1.bf16.xpose.msra.mxu0 0
        %1469 = vmatprep.subr.bf16.mxu0 0
        %1470 = vmatpush1.bf16.xpose.msra.mxu0 0
        %1471 = vmatprep.subr.bf16.mxu0 0
        %1472 = vmatpush1.bf16.xpose.msra.mxu0 0
        %1473 = vmatprep.subr.bf16.mxu0 0
        %1474 = vmatpush1.bf16.xpose.msra.mxu0 0
        %1475 = vmatprep.subr.bf16.mxu0 0
        %1476 = vmatpush1.bf16.xpose.msra.mxu0 0
        %1477 = vmatprep.mubr.bf16.mxu0 0
        %1478 = vmatmul.mubr.bf16.gmra.mrb[0].mxu0 %v1440
        %v1479 = vpop.f32.mrb[0].mxu0
        %v1480 = vadd.f32 %v1213, %v1479
        %v1481 = vpop.f32.mrb[0].mxu0
        %v1482 = vpop.f32.mrb[0].mxu0
        %v1483 = vpop.f32.mrb[0].mxu0
        %1484 = vdwg.mxu0
        %v1485 = vsel %vm1262, %v1480, -inf
        %1486 = vmax.xlane.f32.xlu0 %v1485
        %v1487 = vpop.xlane.xlu0 %1486
        %v1488 = vsub.f32 %v1480, %v1487
        %v1489 = vmul.f32 %v1488, 1.442695
        %v1490 = vpow.pop %v1489
        %v1491 = vsel %vm1262, %v1490, 0.0
        %1492 = vadd.xlane.f32.xlu0 %v1491
        %v1493 = vpop.xlane.xlu0 %1492
        %v1494 = vrcp.pop %v1493
        %v1495 = vmul.f32 %v1490, %v1494
        %v1496 = vpack.c.bf16 %v1495, %v1495
        %1497 = vrot.lane.b32.xlu0 %v1208, 64
        %v1498 = vpop.permute.xlu0 %1497
        %v1500 = vsel %vm1262, %v1496, 0
        %v1503 = vsel %vm1278, %v1498, 0
        %1505 = vmatprep.subr.bf16.mxu0 0
        %1506 = vmatpush1.bf16.msra.mxu0 %v1503
        %1507 = vmatprep.subr.bf16.mxu0 0
        %1508 = vmatpush1.bf16.msra.mxu0 0
        %1509 = vmatprep.subr.bf16.mxu0 0
        %1510 = vmatpush1.bf16.msra.mxu0 0
        %1511 = vmatprep.subr.bf16.mxu0 0
        %1512 = vmatpush1.bf16.msra.mxu0 0
        %1513 = vmatprep.subr.bf16.mxu0 0
        %1514 = vmatpush1.bf16.msra.mxu0 0
        %1515 = vmatprep.subr.bf16.mxu0 0
        %1516 = vmatpush1.bf16.msra.mxu0 0
        %1517 = vmatprep.subr.bf16.mxu0 0
        %1518 = vmatpush1.bf16.msra.mxu0 0
        %1519 = vmatprep.subr.bf16.mxu0 0
        %1520 = vmatpush1.bf16.msra.mxu0 0
        %1521 = vmatprep.subr.bf16.mxu0 0
        %1522 = vmatpush1.bf16.msra.mxu0 0
        %1523 = vmatprep.subr.bf16.mxu0 0
        %1524 = vmatpush1.bf16.msra.mxu0 0
        %1525 = vmatprep.subr.bf16.mxu0 0
        %1526 = vmatpush1.bf16.msra.mxu0 0
        %1527 = vmatprep.subr.bf16.mxu0 0
        %1528 = vmatpush1.bf16.msra.mxu0 0
        %1529 = vmatprep.subr.bf16.mxu0 0
        %1530 = vmatpush1.bf16.msra.mxu0 0
        %1531 = vmatprep.subr.bf16.mxu0 0
        %1532 = vmatpush1.bf16.msra.mxu0 0
        %1533 = vmatprep.subr.bf16.mxu0 0
        %1534 = vmatpush1.bf16.msra.mxu0 0
        %1535 = vmatprep.subr.bf16.mxu0 0
        %1536 = vmatpush1.bf16.msra.mxu0 0
        %1537 = vmatprep.mubr.bf16.mxu0 0
        %1538 = vmatmul.mubr.bf16.gmra.mrb[0].mxu0 %v1500
        %v1539 = vpop.f32.mrb[0].mxu0
        %v1540 = vadd.f32 0.0, %v1539
        %v1541 = vpop.f32.mrb[0].mxu0
        %v1542 = vpop.f32.mrb[0].mxu0
        %v1543 = vpop.f32.mrb[0].mxu0
        %1544 = vdwg.mxu0
        %1545 = vrot.lane.b32.xlu0 %v1206, 32
        %v1546 = vpop.permute.xlu0 %1545
        %1547 = vrot.lane.b32.xlu0 %v1207, 32
        %v1548 = vpop.permute.xlu0 %1547
        %v1550 = vsel %vm1215, %v1546, 0
        %v1553 = vsel %vm1215, %v1548, 0
        %1555 = vmatprep.subr.bf16.mxu0 0
        %1556 = vmatpush1.bf16.xpose.msra.mxu0 %v1553
        %1557 = vmatprep.subr.bf16.mxu0 0
        %1558 = vmatpush1.bf16.xpose.msra.mxu0 0
        %1559 = vmatprep.subr.bf16.mxu0 0
        %1560 = vmatpush1.bf16.xpose.msra.mxu0 0
        %1561 = vmatprep.subr.bf16.mxu0 0
        %1562 = vmatpush1.bf16.xpose.msra.mxu0 0
        %1563 = vmatprep.subr.bf16.mxu0 0
        %1564 = vmatpush1.bf16.xpose.msra.mxu0 0
        %1565 = vmatprep.subr.bf16.mxu0 0
        %1566 = vmatpush1.bf16.xpose.msra.mxu0 0
        %1567 = vmatprep.subr.bf16.mxu0 0
        %1568 = vmatpush1.bf16.xpose.msra.mxu0 0
        %1569 = vmatprep.subr.bf16.mxu0 0
        %1570 = vmatpush1.bf16.xpose.msra.mxu0 0
        %1571 = vmatprep.subr.bf16.mxu0 0
        %1572 = vmatpush1.bf16.xpose.msra.mxu0 0
        %1573 = vmatprep.subr.bf16.mxu0 0
        %1574 = vmatpush1.bf16.xpose.msra.mxu0 0
        %1575 = vmatprep.subr.bf16.mxu0 0
        %1576 = vmatpush1.bf16.xpose.msra.mxu0 0
        %1577 = vmatprep.subr.bf16.mxu0 0
        %1578 = vmatpush1.bf16.xpose.msra.mxu0 0
        %1579 = vmatprep.subr.bf16.mxu0 0
        %1580 = vmatpush1.bf16.xpose.msra.mxu0 0
        %1581 = vmatprep.subr.bf16.mxu0 0
        %1582 = vmatpush1.bf16.xpose.msra.mxu0 0
        %1583 = vmatprep.subr.bf16.mxu0 0
        %1584 = vmatpush1.bf16.xpose.msra.mxu0 0
        %1585 = vmatprep.subr.bf16.mxu0 0
        %1586 = vmatpush1.bf16.xpose.msra.mxu0 0
        %1587 = vmatprep.mubr.bf16.mxu0 0
        %1588 = vmatmul.mubr.bf16.gmra.mrb[0].mxu0 %v1550
        %v1589 = vpop.f32.mrb[0].mxu0
        %v1590 = vadd.f32 %v1213, %v1589
        %v1591 = vpop.f32.mrb[0].mxu0
        %v1592 = vpop.f32.mrb[0].mxu0
        %v1593 = vpop.f32.mrb[0].mxu0
        %1594 = vdwg.mxu0
        %v1595 = vsel %vm1262, %v1590, -inf
        %1596 = vmax.xlane.f32.xlu0 %v1595
        %v1597 = vpop.xlane.xlu0 %1596
        %v1598 = vsub.f32 %v1590, %v1597
        %v1599 = vmul.f32 %v1598, 1.442695
        %v1600 = vpow.pop %v1599
        %v1601 = vsel %vm1262, %v1600, 0.0
        %1602 = vadd.xlane.f32.xlu0 %v1601
        %v1603 = vpop.xlane.xlu0 %1602
        %v1604 = vrcp.pop %v1603
        %v1605 = vmul.f32 %v1600, %v1604
        %v1606 = vpack.c.bf16 %v1605, %v1605
        %1607 = vrot.lane.b32.xlu0 %v1208, 32
        %v1608 = vpop.permute.xlu0 %1607
        %v1610 = vsel %vm1262, %v1606, 0
        %v1613 = vsel %vm1278, %v1608, 0
        %1615 = vmatprep.subr.bf16.mxu0 0
        %1616 = vmatpush1.bf16.msra.mxu0 %v1613
        %1617 = vmatprep.subr.bf16.mxu0 0
        %1618 = vmatpush1.bf16.msra.mxu0 0
        %1619 = vmatprep.subr.bf16.mxu0 0
        %1620 = vmatpush1.bf16.msra.mxu0 0
        %1621 = vmatprep.subr.bf16.mxu0 0
        %1622 = vmatpush1.bf16.msra.mxu0 0
        %1623 = vmatprep.subr.bf16.mxu0 0
        %1624 = vmatpush1.bf16.msra.mxu0 0
        %1625 = vmatprep.subr.bf16.mxu0 0
        %1626 = vmatpush1.bf16.msra.mxu0 0
        %1627 = vmatprep.subr.bf16.mxu0 0
        %1628 = vmatpush1.bf16.msra.mxu0 0
        %1629 = vmatprep.subr.bf16.mxu0 0
        %1630 = vmatpush1.bf16.msra.mxu0 0
        %1631 = vmatprep.subr.bf16.mxu0 0
        %1632 = vmatpush1.bf16.msra.mxu0 0
        %1633 = vmatprep.subr.bf16.mxu0 0
        %1634 = vmatpush1.bf16.msra.mxu0 0
        %1635 = vmatprep.subr.bf16.mxu0 0
        %1636 = vmatpush1.bf16.msra.mxu0 0
        %1637 = vmatprep.subr.bf16.mxu0 0
        %1638 = vmatpush1.bf16.msra.mxu0 0
        %1639 = vmatprep.subr.bf16.mxu0 0
        %1640 = vmatpush1.bf16.msra.mxu0 0
        %1641 = vmatprep.subr.bf16.mxu0 0
        %1642 = vmatpush1.bf16.msra.mxu0 0
        %1643 = vmatprep.subr.bf16.mxu0 0
        %1644 = vmatpush1.bf16.msra.mxu0 0
        %1645 = vmatprep.subr.bf16.mxu0 0
        %1646 = vmatpush1.bf16.msra.mxu0 0
        %1647 = vmatprep.mubr.bf16.mxu0 0
        %1648 = vmatmul.mubr.bf16.gmra.mrb[0].mxu0 %v1610
        %v1649 = vpop.f32.mrb[0].mxu0
        %v1650 = vadd.f32 0.0, %v1649
        %v1651 = vpop.f32.mrb[0].mxu0
        %v1652 = vpop.f32.mrb[0].mxu0
        %v1653 = vpop.f32.mrb[0].mxu0
        %1654 = vdwg.mxu0
        %1656 = vrot.lane.b32.xlu0 %v1430, 32
        %v1657 = vpop.permute.xlu0 %1656
        %1660 = vrot.lane.b32.xlu0 %v1540, 64
        %v1661 = vpop.permute.xlu0 %1660
        %1664 = vrot.lane.b32.xlu0 %v1650, 96
        %v1665 = vpop.permute.xlu0 %1664
        %v1667 = vsel %vm1215, %v1317, %v1657
        %vm1668 = vcmask 523264
        %v1669 = vsel %vm1668, %v1667, %v1661
        %vm1670 = vcmask 785408
        %v1671 = vsel %vm1670, %v1669, %v1665
        %v1672 = vpack.c.bf16 %v1671, %v1671
        %v1673 = vld [vmem:[%s783] sm:$0xf]
        %v1674 = vld [vmem:[%s783 + $0x4] sm:$0xf]
        %v1675 = vld [vmem:[%s783 + $0x8] sm:$0xf]
        %v1676 = vld [vmem:[%s783 + $0xc] sm:$0xf]
        %v1677 = vld [vmem:[%s783 + $0x10] sm:$0xf]
        %v1678 = vld [vmem:[%s783 + $0x14] sm:$0xf]
        %v1679 = vld [vmem:[%s783 + $0x18] sm:$0xf]
        %v1680 = vld [vmem:[%s783 + $0x1c] sm:$0xf]
        %v1681 = vld [vmem:[%s783 + $0x20] sm:$0xf]
        %v1682 = vld [vmem:[%s783 + $0x24] sm:$0xf]
        %v1683 = vld [vmem:[%s783 + $0x28] sm:$0xf]
        %v1684 = vld [vmem:[%s783 + $0x2c] sm:$0xf]
        %v1685 = vld [vmem:[%s783 + $0x30] sm:$0xf]
        %v1686 = vld [vmem:[%s783 + $0x34] sm:$0xf]
        %v1687 = vld [vmem:[%s783 + $0x38] sm:$0xf]
        %v1688 = vld [vmem:[%s783 + $0x3c] sm:$0xf]
        %v1689 = vld [vmem:[%s918] sm:$0x1]
        %v1691 = vlaneseq
        %v1692 = vshrl.u32 %v1691, 7
        %v1693 = vsub.s32 0, %v1692
        %v1694 = vrot.slane %v1689, %v1693
        %v1712 = vunpack.c.l.b16 %v1673
        %v1713 = vunpack.c.l.b16 %v1674
        %v1714 = vunpack.c.l.b16 %v1675
        %v1715 = vunpack.c.l.b16 %v1676
        %v1716 = vunpack.c.l.b16 %v1677
        %v1717 = vunpack.c.l.b16 %v1678
        %v1718 = vunpack.c.l.b16 %v1679
        %v1719 = vunpack.c.l.b16 %v1680
        %v1720 = vunpack.c.l.b16 %v1681
        %v1721 = vunpack.c.l.b16 %v1682
        %v1722 = vunpack.c.l.b16 %v1683
        %v1723 = vunpack.c.l.b16 %v1684
        %v1724 = vunpack.c.l.b16 %v1685
        %v1725 = vunpack.c.l.b16 %v1686
        %v1726 = vunpack.c.l.b16 %v1687
        %v1727 = vunpack.c.l.b16 %v1688
        %v1728 = vpack.c.b16 %v1713, %v1712
        %v1729 = vpack.c.b16 %v1715, %v1714
        %v1730 = vpack.c.b16 %v1717, %v1716
        %v1731 = vpack.c.b16 %v1719, %v1718
        %v1732 = vpack.c.b16 %v1721, %v1720
        %v1733 = vpack.c.b16 %v1723, %v1722
        %v1734 = vpack.c.b16 %v1725, %v1724
        %v1735 = vpack.c.b16 %v1727, %v1726
        %1744 = vmatprep.subr.bf16.mxu0 0
        %1745 = vmatpush1.bf16.msra.mxu0 %v1728
        %1746 = vmatprep.subr.bf16.mxu0 0
        %1747 = vmatpush1.bf16.msra.mxu0 %v1729
        %1748 = vmatprep.subr.bf16.mxu0 0
        %1749 = vmatpush1.bf16.msra.mxu0 %v1730
        %1750 = vmatprep.subr.bf16.mxu0 0
        %1751 = vmatpush1.bf16.msra.mxu0 %v1731
        %1752 = vmatprep.subr.bf16.mxu0 0
        %1753 = vmatpush1.bf16.msra.mxu0 %v1732
        %1754 = vmatprep.subr.bf16.mxu0 0
        %1755 = vmatpush1.bf16.msra.mxu0 %v1733
        %1756 = vmatprep.subr.bf16.mxu0 0
        %1757 = vmatpush1.bf16.msra.mxu0 %v1734
        %1758 = vmatprep.subr.bf16.mxu0 0
        %1759 = vmatpush1.bf16.msra.mxu0 %v1735
        %1760 = vmatprep.subr.bf16.mxu0 0
        %1761 = vmatpush1.bf16.msra.mxu0 0
        %1762 = vmatprep.subr.bf16.mxu0 0
        %1763 = vmatpush1.bf16.msra.mxu0 0
        %1764 = vmatprep.subr.bf16.mxu0 0
        %1765 = vmatpush1.bf16.msra.mxu0 0
        %1766 = vmatprep.subr.bf16.mxu0 0
        %1767 = vmatpush1.bf16.msra.mxu0 0
        %1768 = vmatprep.subr.bf16.mxu0 0
        %1769 = vmatpush1.bf16.msra.mxu0 0
        %1770 = vmatprep.subr.bf16.mxu0 0
        %1771 = vmatpush1.bf16.msra.mxu0 0
        %1772 = vmatprep.subr.bf16.mxu0 0
        %1773 = vmatpush1.bf16.msra.mxu0 0
        %1774 = vmatprep.subr.bf16.mxu0 0
        %1775 = vmatpush1.bf16.msra.mxu0 0
        %1776 = vmatprep.mubr.bf16.mxu0 0
        %1777 = vmatmul.mubr.bf16.gmra.mrb[0].mxu0 %v1672
        %v1778 = vpop.f32.mrb[0].mxu0
        %v1779 = vadd.f32 %v1694, %v1778
        %v1780 = vpop.f32.mrb[0].mxu0
        %v1781 = vpop.f32.mrb[0].mxu0
        %v1782 = vpop.f32.mrb[0].mxu0
        %1783 = vdwg.mxu0
        %v1784 = vadd.f32 %v945, %v1779
        %v1785 = vld [vmem:[%s921] sm:$0x1]
        %v1786 = vld [vmem:[%s924] sm:$0x1]
        %1787 = vadd.xlane.f32.xlu0 %v1784
        %v1788 = vpop.xlane.xlu0 %1787
        %v1789 = vrcp.pop 128.0
        %v1790 = vmul.f32 %v1788, %v1789
        %v1791 = vsub.f32 %v1784, %v1790
        %v1792 = vmul.f32 %v1791, %v1791
        %1793 = vadd.xlane.f32.xlu0 %v1792
        %v1794 = vpop.xlane.xlu0 %1793
        %v1795 = vmul.f32 %v1794, %v1789
        %v1796 = vadd.f32 %v1795, 1e-05
        %v1797 = vrsqrt.pop %v1796
        %v1798 = vmul.f32 %v1791, %v1797
        %v1800 = vlaneseq
        %v1801 = vshrl.u32 %v1800, 7
        %v1802 = vsub.s32 0, %v1801
        %v1803 = vrot.slane %v1785, %v1802
        %v1805 = vmul.f32 %v1798, %v1803
        %v1807 = vlaneseq
        %v1808 = vshrl.u32 %v1807, 7
        %v1809 = vsub.s32 0, %v1808
        %v1810 = vrot.slane %v1786, %v1809
        %v1812 = vadd.f32 %v1805, %v1810
        %v1813 = vpack.c.bf16 %v1812, %v1812
        %v1814 = vld [vmem:[%s792] sm:$0xff]
        %v1815 = vld [vmem:[%s792 + $0x8] sm:$0xff]
        %v1816 = vld [vmem:[%s792 + $0x10] sm:$0xff]
        %v1817 = vld [vmem:[%s792 + $0x18] sm:$0xff]
        %v1818 = vld [vmem:[%s792 + $0x20] sm:$0xff]
        %v1819 = vld [vmem:[%s792 + $0x28] sm:$0xff]
        %v1820 = vld [vmem:[%s792 + $0x30] sm:$0xff]
        %v1821 = vld [vmem:[%s792 + $0x38] sm:$0xff]
        %v1822 = vld [vmem:[%s792 + $0x40] sm:$0xff]
        %v1823 = vld [vmem:[%s792 + $0x48] sm:$0xff]
        %v1824 = vld [vmem:[%s792 + $0x50] sm:$0xff]
        %v1825 = vld [vmem:[%s792 + $0x58] sm:$0xff]
        %v1826 = vld [vmem:[%s792 + $0x60] sm:$0xff]
        %v1827 = vld [vmem:[%s792 + $0x68] sm:$0xff]
        %v1828 = vld [vmem:[%s792 + $0x70] sm:$0xff]
        %v1829 = vld [vmem:[%s792 + $0x78] sm:$0xff]
        %v1830 = vld [vmem:[%s792 + $0x80] sm:$0xff]
        %v1831 = vld [vmem:[%s792 + $0x88] sm:$0xff]
        %v1832 = vld [vmem:[%s792 + $0x90] sm:$0xff]
        %v1833 = vld [vmem:[%s792 + $0x98] sm:$0xff]
        %v1834 = vld [vmem:[%s792 + $0xa0] sm:$0xff]
        %v1835 = vld [vmem:[%s792 + $0xa8] sm:$0xff]
        %v1836 = vld [vmem:[%s792 + $0xb0] sm:$0xff]
        %v1837 = vld [vmem:[%s792 + $0xb8] sm:$0xff]
        %v1838 = vld [vmem:[%s792 + $0xc0] sm:$0xff]
        %v1839 = vld [vmem:[%s792 + $0xc8] sm:$0xff]
        %v1840 = vld [vmem:[%s792 + $0xd0] sm:$0xff]
        %v1841 = vld [vmem:[%s792 + $0xd8] sm:$0xff]
        %v1842 = vld [vmem:[%s792 + $0xe0] sm:$0xff]
        %v1843 = vld [vmem:[%s792 + $0xe8] sm:$0xff]
        %v1844 = vld [vmem:[%s792 + $0xf0] sm:$0xff]
        %v1845 = vld [vmem:[%s792 + $0xf8] sm:$0xff]
        %v1846 = vld [vmem:[%s928] sm:$0xf]
        %v1848 = vlaneseq
        %v1849 = vshrl.u32 %v1848, 7
        %v1850 = vsub.s32 0, %v1849
        %v1851 = vrot.slane %v1846, %v1850
        %v1852 = vlaneseq
        %v1853 = vshrl.u32 %v1852, 7
        %v1854 = vsub.s32 1, %v1853
        %v1855 = vrot.slane %v1846, %v1854
        %v1856 = vlaneseq
        %v1857 = vshrl.u32 %v1856, 7
        %v1858 = vsub.s32 2, %v1857
        %v1859 = vrot.slane %v1846, %v1858
        %v1860 = vlaneseq
        %v1861 = vshrl.u32 %v1860, 7
        %v1862 = vsub.s32 3, %v1861
        %v1863 = vrot.slane %v1846, %v1862
        %v1900 = vunpack.c.l.b16 %v1814
        %v1901 = vunpack.c.h.b16 %v1814
        %v1902 = vunpack.c.l.b16 %v1815
        %v1903 = vunpack.c.h.b16 %v1815
        %v1904 = vunpack.c.l.b16 %v1816
        %v1905 = vunpack.c.h.b16 %v1816
        %v1906 = vunpack.c.l.b16 %v1817
        %v1907 = vunpack.c.h.b16 %v1817
        %v1908 = vunpack.c.l.b16 %v1818
        %v1909 = vunpack.c.h.b16 %v1818
        %v1910 = vunpack.c.l.b16 %v1819
        %v1911 = vunpack.c.h.b16 %v1819
        %v1912 = vunpack.c.l.b16 %v1820
        %v1913 = vunpack.c.h.b16 %v1820
        %v1914 = vunpack.c.l.b16 %v1821
        %v1915 = vunpack.c.h.b16 %v1821
        %v1916 = vunpack.c.l.b16 %v1822
        %v1917 = vunpack.c.h.b16 %v1822
        %v1918 = vunpack.c.l.b16 %v1823
        %v1919 = vunpack.c.h.b16 %v1823
        %v1920 = vunpack.c.l.b16 %v1824
        %v1921 = vunpack.c.h.b16 %v1824
        %v1922 = vunpack.c.l.b16 %v1825
        %v1923 = vunpack.c.h.b16 %v1825
        %v1924 = vunpack.c.l.b16 %v1826
        %v1925 = vunpack.c.h.b16 %v1826
        %v1926 = vunpack.c.l.b16 %v1827
        %v1927 = vunpack.c.h.b16 %v1827
        %v1928 = vunpack.c.l.b16 %v1828
        %v1929 = vunpack.c.h.b16 %v1828
        %v1930 = vunpack.c.l.b16 %v1829
        %v1931 = vunpack.c.h.b16 %v1829
        %v1932 = vunpack.c.l.b16 %v1830
        %v1933 = vunpack.c.h.b16 %v1830
        %v1934 = vunpack.c.l.b16 %v1831
        %v1935 = vunpack.c.h.b16 %v1831
        %v1936 = vunpack.c.l.b16 %v1832
        %v1937 = vunpack.c.h.b16 %v1832
        %v1938 = vunpack.c.l.b16 %v1833
        %v1939 = vunpack.c.h.b16 %v1833
        %v1940 = vunpack.c.l.b16 %v1834
        %v1941 = vunpack.c.h.b16 %v1834
        %v1942 = vunpack.c.l.b16 %v1835
        %v1943 = vunpack.c.h.b16 %v1835
        %v1944 = vunpack.c.l.b16 %v1836
        %v1945 = vunpack.c.h.b16 %v1836
        %v1946 = vunpack.c.l.b16 %v1837
        %v1947 = vunpack.c.h.b16 %v1837
        %v1948 = vunpack.c.l.b16 %v1838
        %v1949 = vunpack.c.h.b16 %v1838
        %v1950 = vunpack.c.l.b16 %v1839
        %v1951 = vunpack.c.h.b16 %v1839
        %v1952 = vunpack.c.l.b16 %v1840
        %v1953 = vunpack.c.h.b16 %v1840
        %v1954 = vunpack.c.l.b16 %v1841
        %v1955 = vunpack.c.h.b16 %v1841
        %v1956 = vunpack.c.l.b16 %v1842
        %v1957 = vunpack.c.h.b16 %v1842
        %v1958 = vunpack.c.l.b16 %v1843
        %v1959 = vunpack.c.h.b16 %v1843
        %v1960 = vunpack.c.l.b16 %v1844
        %v1961 = vunpack.c.h.b16 %v1844
        %v1962 = vunpack.c.l.b16 %v1845
        %v1963 = vunpack.c.h.b16 %v1845
        %v1964 = vpack.c.b16 %v1904, %v1900
        %v1965 = vpack.c.b16 %v1905, %v1901
        %v1966 = vpack.c.b16 %v1906, %v1902
        %v1967 = vpack.c.b16 %v1907, %v1903
        %v1968 = vpack.c.b16 %v1912, %v1908
        %v1969 = vpack.c.b16 %v1913, %v1909
        %v1970 = vpack.c.b16 %v1914, %v1910
        %v1971 = vpack.c.b16 %v1915, %v1911
        %v1972 = vpack.c.b16 %v1920, %v1916
        %v1973 = vpack.c.b16 %v1921, %v1917
        %v1974 = vpack.c.b16 %v1922, %v1918
        %v1975 = vpack.c.b16 %v1923, %v1919
        %v1976 = vpack.c.b16 %v1928, %v1924
        %v1977 = vpack.c.b16 %v1929, %v1925
        %v1978 = vpack.c.b16 %v1930, %v1926
        %v1979 = vpack.c.b16 %v1931, %v1927
        %v1980 = vpack.c.b16 %v1936, %v1932
        %v1981 = vpack.c.b16 %v1937, %v1933
        %v1982 = vpack.c.b16 %v1938, %v1934
        %v1983 = vpack.c.b16 %v1939, %v1935
        %v1984 = vpack.c.b16 %v1944, %v1940
        %v1985 = vpack.c.b16 %v1945, %v1941
        %v1986 = vpack.c.b16 %v1946, %v1942
        %v1987 = vpack.c.b16 %v1947, %v1943
        %v1988 = vpack.c.b16 %v1952, %v1948
        %v1989 = vpack.c.b16 %v1953, %v1949
        %v1990 = vpack.c.b16 %v1954, %v1950
        %v1991 = vpack.c.b16 %v1955, %v1951
        %v1992 = vpack.c.b16 %v1960, %v1956
        %v1993 = vpack.c.b16 %v1961, %v1957
        %v1994 = vpack.c.b16 %v1962, %v1958
        %v1995 = vpack.c.b16 %v1963, %v1959
        %2028 = vmatprep.subr.bf16.mxu0 %v1965
        %2029 = vmatpush1.bf16.msra.mxu0 %v1964
        %2030 = vmatprep.subr.bf16.mxu0 %v1969
        %2031 = vmatpush1.bf16.msra.mxu0 %v1968
        %2032 = vmatprep.subr.bf16.mxu0 %v1973
        %2033 = vmatpush1.bf16.msra.mxu0 %v1972
        %2034 = vmatprep.subr.bf16.mxu0 %v1977
        %2035 = vmatpush1.bf16.msra.mxu0 %v1976
        %2036 = vmatprep.subr.bf16.mxu0 %v1981
        %2037 = vmatpush1.bf16.msra.mxu0 %v1980
        %2038 = vmatprep.subr.bf16.mxu0 %v1985
        %2039 = vmatpush1.bf16.msra.mxu0 %v1984
        %2040 = vmatprep.subr.bf16.mxu0 %v1989
        %2041 = vmatpush1.bf16.msra.mxu0 %v1988
        %2042 = vmatprep.subr.bf16.mxu0 %v1993
        %2043 = vmatpush1.bf16.msra.mxu0 %v1992
        %2044 = vmatprep.subr.bf16.mxu0 0
        %2045 = vmatpush1.bf16.msra.mxu0 0
        %2046 = vmatprep.subr.bf16.mxu0 0
        %2047 = vmatpush1.bf16.msra.mxu0 0
        %2048 = vmatprep.subr.bf16.mxu0 0
        %2049 = vmatpush1.bf16.msra.mxu0 0
        %2050 = vmatprep.subr.bf16.mxu0 0
        %2051 = vmatpush1.bf16.msra.mxu0 0
        %2052 = vmatprep.subr.bf16.mxu0 0
        %2053 = vmatpush1.bf16.msra.mxu0 0
        %2054 = vmatprep.subr.bf16.mxu0 0
        %2055 = vmatpush1.bf16.msra.mxu0 0
        %2056 = vmatprep.subr.bf16.mxu0 0
        %2057 = vmatpush1.bf16.msra.mxu0 0
        %2058 = vmatprep.subr.bf16.mxu0 0
        %2059 = vmatpush1.bf16.msra.mxu0 0
        %2060 = vmatprep.mubr.bf16.mxu0 0
        %2061 = vmatmul.mubr.bf16.gmra.mrb[0].mxu0 %v1813
        %v2062 = vpop.f32.mrb[0].mxu0
        %v2063 = vadd.f32 %v1851, %v2062
        %v2064 = vpop.f32.mrb[0].mxu0
        %v2065 = vadd.f32 %v1855, %v2064
        %v2066 = vpop.f32.mrb[0].mxu0
        %v2067 = vpop.f32.mrb[0].mxu0
        %2068 = vdwg.mxu0
        %2069 = vmatprep.subr.bf16.mxu0 %v1967
        %2070 = vmatpush1.bf16.msra.mxu0 %v1966
        %2071 = vmatprep.subr.bf16.mxu0 %v1971
        %2072 = vmatpush1.bf16.msra.mxu0 %v1970
        %2073 = vmatprep.subr.bf16.mxu0 %v1975
        %2074 = vmatpush1.bf16.msra.mxu0 %v1974
        %2075 = vmatprep.subr.bf16.mxu0 %v1979
        %2076 = vmatpush1.bf16.msra.mxu0 %v1978
        %2077 = vmatprep.subr.bf16.mxu0 %v1983
        %2078 = vmatpush1.bf16.msra.mxu0 %v1982
        %2079 = vmatprep.subr.bf16.mxu0 %v1987
        %2080 = vmatpush1.bf16.msra.mxu0 %v1986
        %2081 = vmatprep.subr.bf16.mxu0 %v1991
        %2082 = vmatpush1.bf16.msra.mxu0 %v1990
        %2083 = vmatprep.subr.bf16.mxu0 %v1995
        %2084 = vmatpush1.bf16.msra.mxu0 %v1994
        %2085 = vmatprep.subr.bf16.mxu0 0
        %2086 = vmatpush1.bf16.msra.mxu0 0
        %2087 = vmatprep.subr.bf16.mxu0 0
        %2088 = vmatpush1.bf16.msra.mxu0 0
        %2089 = vmatprep.subr.bf16.mxu0 0
        %2090 = vmatpush1.bf16.msra.mxu0 0
        %2091 = vmatprep.subr.bf16.mxu0 0
        %2092 = vmatpush1.bf16.msra.mxu0 0
        %2093 = vmatprep.subr.bf16.mxu0 0
        %2094 = vmatpush1.bf16.msra.mxu0 0
        %2095 = vmatprep.subr.bf16.mxu0 0
        %2096 = vmatpush1.bf16.msra.mxu0 0
        %2097 = vmatprep.subr.bf16.mxu0 0
        %2098 = vmatpush1.bf16.msra.mxu0 0
        %2099 = vmatprep.subr.bf16.mxu0 0
        %2100 = vmatpush1.bf16.msra.mxu0 0
        %2101 = vmatprep.mubr.bf16.mxu0 0
        %2102 = vmatmul.mubr.bf16.gmra.mrb[0].mxu0 %v1813
        %v2103 = vpop.f32.mrb[0].mxu0
        %v2104 = vadd.f32 %v1859, %v2103
        %v2105 = vpop.f32.mrb[0].mxu0
        %v2106 = vadd.f32 %v1863, %v2105
        %v2107 = vpop.f32.mrb[0].mxu0
        %v2108 = vpop.f32.mrb[0].mxu0
        %2109 = vdwg.mxu0
        %v2110 = vmul.f32 %v2063, 0.5
        %v2111 = vmul.f32 %v2065, 0.5
        %v2112 = vmul.f32 %v2104, 0.5
        %v2113 = vmul.f32 %v2106, 0.5
        %v2114 = vmul.f32 %v2063, 0.044715
        %v2115 = vmul.f32 %v2065, 0.044715
        %v2116 = vmul.f32 %v2104, 0.044715
        %v2117 = vmul.f32 %v2106, 0.044715
        %v2118 = vmul.f32 %v2114, %v2063
        %v2119 = vmul.f32 %v2115, %v2065
        %v2120 = vmul.f32 %v2116, %v2104
        %v2121 = vmul.f32 %v2117, %v2106
        %v2122 = vmul.f32 %v2118, %v2063
        %v2123 = vmul.f32 %v2119, %v2065
        %v2124 = vmul.f32 %v2120, %v2104
        %v2125 = vmul.f32 %v2121, %v2106
        %v2126 = vadd.f32 %v2063, %v2122
        %v2127 = vadd.f32 %v2065, %v2123
        %v2128 = vadd.f32 %v2104, %v2124
        %v2129 = vadd.f32 %v2106, %v2125
        %v2130 = vmul.f32 %v2126, 0.7978846
        %v2131 = vmul.f32 %v2127, 0.7978846
        %v2132 = vmul.f32 %v2128, 0.7978846
        %v2133 = vmul.f32 %v2129, 0.7978846
        %v2134 = vtanh.pop %v2130
        %v2135 = vtanh.pop %v2131
        %v2136 = vtanh.pop %v2132
        %v2137 = vtanh.pop %v2133
        %v2138 = vadd.f32 %v2134, 1.0
        %v2139 = vadd.f32 %v2135, 1.0
        %v2140 = vadd.f32 %v2136, 1.0
        %v2141 = vadd.f32 %v2137, 1.0
        %v2142 = vmul.f32 %v2110, %v2138
        %v2143 = vmul.f32 %v2111, %v2139
        %v2144 = vmul.f32 %v2112, %v2140
        %v2145 = vmul.f32 %v2113, %v2141
        %v2146 = vpack.c.bf16 %v2142, %v2142
        %v2147 = vpack.c.bf16 %v2143, %v2143
        %v2148 = vpack.c.bf16 %v2144, %v2144
        %v2149 = vpack.c.bf16 %v2145, %v2145
        %v2150 = vld [vmem:[%s801] sm:$0xf]
        %v2151 = vld [vmem:[%s801 + $0x4] sm:$0xf]
        %v2152 = vld [vmem:[%s801 + $0x8] sm:$0xf]
        %v2153 = vld [vmem:[%s801 + $0xc] sm:$0xf]
        %v2154 = vld [vmem:[%s801 + $0x10] sm:$0xf]
        %v2155 = vld [vmem:[%s801 + $0x14] sm:$0xf]
        %v2156 = vld [vmem:[%s801 + $0x18] sm:$0xf]
        %v2157 = vld [vmem:[%s801 + $0x1c] sm:$0xf]
        %v2158 = vld [vmem:[%s801 + $0x20] sm:$0xf]
        %v2159 = vld [vmem:[%s801 + $0x24] sm:$0xf]
        %v2160 = vld [vmem:[%s801 + $0x28] sm:$0xf]
        %v2161 = vld [vmem:[%s801 + $0x2c] sm:$0xf]
        %v2162 = vld [vmem:[%s801 + $0x30] sm:$0xf]
        %v2163 = vld [vmem:[%s801 + $0x34] sm:$0xf]
        %v2164 = vld [vmem:[%s801 + $0x38] sm:$0xf]
        %v2165 = vld [vmem:[%s801 + $0x3c] sm:$0xf]
        %v2166 = vld [vmem:[%s801 + $0x40] sm:$0xf]
        %v2167 = vld [vmem:[%s801 + $0x44] sm:$0xf]
        %v2168 = vld [vmem:[%s801 + $0x48] sm:$0xf]
        %v2169 = vld [vmem:[%s801 + $0x4c] sm:$0xf]
        %v2170 = vld [vmem:[%s801 + $0x50] sm:$0xf]
        %v2171 = vld [vmem:[%s801 + $0x54] sm:$0xf]
        %v2172 = vld [vmem:[%s801 + $0x58] sm:$0xf]
        %v2173 = vld [vmem:[%s801 + $0x5c] sm:$0xf]
        %v2174 = vld [vmem:[%s801 + $0x60] sm:$0xf]
        %v2175 = vld [vmem:[%s801 + $0x64] sm:$0xf]
        %v2176 = vld [vmem:[%s801 + $0x68] sm:$0xf]
        %v2177 = vld [vmem:[%s801 + $0x6c] sm:$0xf]
        %v2178 = vld [vmem:[%s801 + $0x70] sm:$0xf]
        %v2179 = vld [vmem:[%s801 + $0x74] sm:$0xf]
        %v2180 = vld [vmem:[%s801 + $0x78] sm:$0xf]
        %v2181 = vld [vmem:[%s801 + $0x7c] sm:$0xf]
        %v2182 = vld [vmem:[%s801 + $0x80] sm:$0xf]
        %v2183 = vld [vmem:[%s801 + $0x84] sm:$0xf]
        %v2184 = vld [vmem:[%s801 + $0x88] sm:$0xf]
        %v2185 = vld [vmem:[%s801 + $0x8c] sm:$0xf]
        %v2186 = vld [vmem:[%s801 + $0x90] sm:$0xf]
        %v2187 = vld [vmem:[%s801 + $0x94] sm:$0xf]
        %v2188 = vld [vmem:[%s801 + $0x98] sm:$0xf]
        %v2189 = vld [vmem:[%s801 + $0x9c] sm:$0xf]
        %v2190 = vld [vmem:[%s801 + $0xa0] sm:$0xf]
        %v2191 = vld [vmem:[%s801 + $0xa4] sm:$0xf]
        %v2192 = vld [vmem:[%s801 + $0xa8] sm:$0xf]
        %v2193 = vld [vmem:[%s801 + $0xac] sm:$0xf]
        %v2194 = vld [vmem:[%s801 + $0xb0] sm:$0xf]
        %v2195 = vld [vmem:[%s801 + $0xb4] sm:$0xf]
        %v2196 = vld [vmem:[%s801 + $0xb8] sm:$0xf]
        %v2197 = vld [vmem:[%s801 + $0xbc] sm:$0xf]
        %v2198 = vld [vmem:[%s801 + $0xc0] sm:$0xf]
        %v2199 = vld [vmem:[%s801 + $0xc4] sm:$0xf]
        %v2200 = vld [vmem:[%s801 + $0xc8] sm:$0xf]
        %v2201 = vld [vmem:[%s801 + $0xcc] sm:$0xf]
        %v2202 = vld [vmem:[%s801 + $0xd0] sm:$0xf]
        %v2203 = vld [vmem:[%s801 + $0xd4] sm:$0xf]
        %v2204 = vld [vmem:[%s801 + $0xd8] sm:$0xf]
        %v2205 = vld [vmem:[%s801 + $0xdc] sm:$0xf]
        %v2206 = vld [vmem:[%s801 + $0xe0] sm:$0xf]
        %v2207 = vld [vmem:[%s801 + $0xe4] sm:$0xf]
        %v2208 = vld [vmem:[%s801 + $0xe8] sm:$0xf]
        %v2209 = vld [vmem:[%s801 + $0xec] sm:$0xf]
        %v2210 = vld [vmem:[%s801 + $0xf0] sm:$0xf]
        %v2211 = vld [vmem:[%s801 + $0xf4] sm:$0xf]
        %v2212 = vld [vmem:[%s801 + $0xf8] sm:$0xf]
        %v2213 = vld [vmem:[%s801 + $0xfc] sm:$0xf]
        %v2214 = vld [vmem:[%s931] sm:$0x1]
        %v2216 = vlaneseq
        %v2217 = vshrl.u32 %v2216, 7
        %v2218 = vsub.s32 0, %v2217
        %v2219 = vrot.slane %v2214, %v2218
        %v2285 = vunpack.c.l.b16 %v2150
        %v2286 = vunpack.c.l.b16 %v2151
        %v2287 = vunpack.c.l.b16 %v2152
        %v2288 = vunpack.c.l.b16 %v2153
        %v2289 = vunpack.c.l.b16 %v2154
        %v2290 = vunpack.c.l.b16 %v2155
        %v2291 = vunpack.c.l.b16 %v2156
        %v2292 = vunpack.c.l.b16 %v2157
        %v2293 = vunpack.c.l.b16 %v2158
        %v2294 = vunpack.c.l.b16 %v2159
        %v2295 = vunpack.c.l.b16 %v2160
        %v2296 = vunpack.c.l.b16 %v2161
        %v2297 = vunpack.c.l.b16 %v2162
        %v2298 = vunpack.c.l.b16 %v2163
        %v2299 = vunpack.c.l.b16 %v2164
        %v2300 = vunpack.c.l.b16 %v2165
        %v2301 = vunpack.c.l.b16 %v2166
        %v2302 = vunpack.c.l.b16 %v2167
        %v2303 = vunpack.c.l.b16 %v2168
        %v2304 = vunpack.c.l.b16 %v2169
        %v2305 = vunpack.c.l.b16 %v2170
        %v2306 = vunpack.c.l.b16 %v2171
        %v2307 = vunpack.c.l.b16 %v2172
        %v2308 = vunpack.c.l.b16 %v2173
        %v2309 = vunpack.c.l.b16 %v2174
        %v2310 = vunpack.c.l.b16 %v2175
        %v2311 = vunpack.c.l.b16 %v2176
        %v2312 = vunpack.c.l.b16 %v2177
        %v2313 = vunpack.c.l.b16 %v2178
        %v2314 = vunpack.c.l.b16 %v2179
        %v2315 = vunpack.c.l.b16 %v2180
        %v2316 = vunpack.c.l.b16 %v2181
        %v2317 = vunpack.c.l.b16 %v2182
        %v2318 = vunpack.c.l.b16 %v2183
        %v2319 = vunpack.c.l.b16 %v2184
        %v2320 = vunpack.c.l.b16 %v2185
        %v2321 = vunpack.c.l.b16 %v2186
        %v2322 = vunpack.c.l.b16 %v2187
        %v2323 = vunpack.c.l.b16 %v2188
        %v2324 = vunpack.c.l.b16 %v2189
        %v2325 = vunpack.c.l.b16 %v2190
        %v2326 = vunpack.c.l.b16 %v2191
        %v2327 = vunpack.c.l.b16 %v2192
        %v2328 = vunpack.c.l.b16 %v2193
        %v2329 = vunpack.c.l.b16 %v2194
        %v2330 = vunpack.c.l.b16 %v2195
        %v2331 = vunpack.c.l.b16 %v2196
        %v2332 = vunpack.c.l.b16 %v2197
        %v2333 = vunpack.c.l.b16 %v2198
        %v2334 = vunpack.c.l.b16 %v2199
        %v2335 = vunpack.c.l.b16 %v2200
        %v2336 = vunpack.c.l.b16 %v2201
        %v2337 = vunpack.c.l.b16 %v2202
        %v2338 = vunpack.c.l.b16 %v2203
        %v2339 = vunpack.c.l.b16 %v2204
        %v2340 = vunpack.c.l.b16 %v2205
        %v2341 = vunpack.c.l.b16 %v2206
        %v2342 = vunpack.c.l.b16 %v2207
        %v2343 = vunpack.c.l.b16 %v2208
        %v2344 = vunpack.c.l.b16 %v2209
        %v2345 = vunpack.c.l.b16 %v2210
        %v2346 = vunpack.c.l.b16 %v2211
        %v2347 = vunpack.c.l.b16 %v2212
        %v2348 = vunpack.c.l.b16 %v2213
        %v2349 = vpack.c.b16 %v2286, %v2285
        %v2350 = vpack.c.b16 %v2288, %v2287
        %v2351 = vpack.c.b16 %v2290, %v2289
        %v2352 = vpack.c.b16 %v2292, %v2291
        %v2353 = vpack.c.b16 %v2294, %v2293
        %v2354 = vpack.c.b16 %v2296, %v2295
        %v2355 = vpack.c.b16 %v2298, %v2297
        %v2356 = vpack.c.b16 %v2300, %v2299
        %v2357 = vpack.c.b16 %v2302, %v2301
        %v2358 = vpack.c.b16 %v2304, %v2303
        %v2359 = vpack.c.b16 %v2306, %v2305
        %v2360 = vpack.c.b16 %v2308, %v2307
        %v2361 = vpack.c.b16 %v2310, %v2309
        %v2362 = vpack.c.b16 %v2312, %v2311
        %v2363 = vpack.c.b16 %v2314, %v2313
        %v2364 = vpack.c.b16 %v2316, %v2315
        %v2365 = vpack.c.b16 %v2318, %v2317
        %v2366 = vpack.c.b16 %v2320, %v2319
        %v2367 = vpack.c.b16 %v2322, %v2321
        %v2368 = vpack.c.b16 %v2324, %v2323
        %v2369 = vpack.c.b16 %v2326, %v2325
        %v2370 = vpack.c.b16 %v2328, %v2327
        %v2371 = vpack.c.b16 %v2330, %v2329
        %v2372 = vpack.c.b16 %v2332, %v2331
        %v2373 = vpack.c.b16 %v2334, %v2333
        %v2374 = vpack.c.b16 %v2336, %v2335
        %v2375 = vpack.c.b16 %v2338, %v2337
        %v2376 = vpack.c.b16 %v2340, %v2339
        %v2377 = vpack.c.b16 %v2342, %v2341
        %v2378 = vpack.c.b16 %v2344, %v2343
        %v2379 = vpack.c.b16 %v2346, %v2345
        %v2380 = vpack.c.b16 %v2348, %v2347
        %2413 = vmatprep.subr.bf16.mxu0 0
        %2414 = vmatpush1.bf16.msra.mxu0 %v2349
        %2415 = vmatprep.subr.bf16.mxu0 0
        %2416 = vmatpush1.bf16.msra.mxu0 %v2350
        %2417 = vmatprep.subr.bf16.mxu0 0
        %2418 = vmatpush1.bf16.msra.mxu0 %v2351
        %2419 = vmatprep.subr.bf16.mxu0 0
        %2420 = vmatpush1.bf16.msra.mxu0 %v2352
        %2421 = vmatprep.subr.bf16.mxu0 0
        %2422 = vmatpush1.bf16.msra.mxu0 %v2353
        %2423 = vmatprep.subr.bf16.mxu0 0
        %2424 = vmatpush1.bf16.msra.mxu0 %v2354
        %2425 = vmatprep.subr.bf16.mxu0 0
        %2426 = vmatpush1.bf16.msra.mxu0 %v2355
        %2427 = vmatprep.subr.bf16.mxu0 0
        %2428 = vmatpush1.bf16.msra.mxu0 %v2356
        %2429 = vmatprep.subr.bf16.mxu0 0
        %2430 = vmatpush1.bf16.msra.mxu0 %v2357
        %2431 = vmatprep.subr.bf16.mxu0 0
        %2432 = vmatpush1.bf16.msra.mxu0 %v2358
        %2433 = vmatprep.subr.bf16.mxu0 0
        %2434 = vmatpush1.bf16.msra.mxu0 %v2359
        %2435 = vmatprep.subr.bf16.mxu0 0
        %2436 = vmatpush1.bf16.msra.mxu0 %v2360
        %2437 = vmatprep.subr.bf16.mxu0 0
        %2438 = vmatpush1.bf16.msra.mxu0 %v2361
        %2439 = vmatprep.subr.bf16.mxu0 0
        %2440 = vmatpush1.bf16.msra.mxu0 %v2362
        %2441 = vmatprep.subr.bf16.mxu0 0
        %2442 = vmatpush1.bf16.msra.mxu0 %v2363
        %2443 = vmatprep.subr.bf16.mxu0 0
        %2444 = vmatpush1.bf16.msra.mxu0 %v2364
        %2445 = vmatprep.mubr.bf16.mxu0 %v2147
        %2446 = vmatmul.mubr.bf16.gmra.mrb[0].mxu0 %v2146
        %v2447 = vpop.f32.mrb[0].mxu0
        %v2448 = vadd.f32 %v2219, %v2447
        %v2449 = vpop.f32.mrb[0].mxu0
        %v2450 = vpop.f32.mrb[0].mxu0
        %v2451 = vpop.f32.mrb[0].mxu0
        %2452 = vdwg.mxu0
        %2453 = vmatprep.subr.bf16.mxu0 0
        %2454 = vmatpush1.bf16.msra.mxu0 %v2365
        %2455 = vmatprep.subr.bf16.mxu0 0
        %2456 = vmatpush1.bf16.msra.mxu0 %v2366
        %2457 = vmatprep.subr.bf16.mxu0 0
        %2458 = vmatpush1.bf16.msra.mxu0 %v2367
        %2459 = vmatprep.subr.bf16.mxu0 0
        %2460 = vmatpush1.bf16.msra.mxu0 %v2368
        %2461 = vmatprep.subr.bf16.mxu0 0
        %2462 = vmatpush1.bf16.msra.mxu0 %v2369
        %2463 = vmatprep.subr.bf16.mxu0 0
        %2464 = vmatpush1.bf16.msra.mxu0 %v2370
        %2465 = vmatprep.subr.bf16.mxu0 0
        %2466 = vmatpush1.bf16.msra.mxu0 %v2371
        %2467 = vmatprep.subr.bf16.mxu0 0
        %2468 = vmatpush1.bf16.msra.mxu0 %v2372
        %2469 = vmatprep.subr.bf16.mxu0 0
        %2470 = vmatpush1.bf16.msra.mxu0 %v2373
        %2471 = vmatprep.subr.bf16.mxu0 0
        %2472 = vmatpush1.bf16.msra.mxu0 %v2374
        %2473 = vmatprep.subr.bf16.mxu0 0
        %2474 = vmatpush1.bf16.msra.mxu0 %v2375
        %2475 = vmatprep.subr.bf16.mxu0 0
        %2476 = vmatpush1.bf16.msra.mxu0 %v2376
        %2477 = vmatprep.subr.bf16.mxu0 0
        %2478 = vmatpush1.bf16.msra.mxu0 %v2377
        %2479 = vmatprep.subr.bf16.mxu0 0
        %2480 = vmatpush1.bf16.msra.mxu0 %v2378
        %2481 = vmatprep.subr.bf16.mxu0 0
        %2482 = vmatpush1.bf16.msra.mxu0 %v2379
        %2483 = vmatprep.subr.bf16.mxu0 0
        %2484 = vmatpush1.bf16.msra.mxu0 %v2380
        %2485 = vmatprep.mubr.bf16.mxu0 %v2149
        %2486 = vmatmul.mubr.bf16.gmra.mrb[0].mxu0 %v2148
        %v2487 = vpop.f32.mrb[0].mxu0
        %v2488 = vadd.f32 %v2448, %v2487
        %v2489 = vpop.f32.mrb[0].mxu0
        %v2490 = vpop.f32.mrb[0].mxu0
        %v2491 = vpop.f32.mrb[0].mxu0
        %2492 = vdwg.mxu0
        %v2493 = vadd.f32 %v1812, %v2488
        %v2494 = vld [vmem:[%s934] sm:$0x1]
        %v2495 = vld [vmem:[%s937] sm:$0x1]
        %2496 = vadd.xlane.f32.xlu0 %v2493
        %v2497 = vpop.xlane.xlu0 %2496
        %v2498 = vmul.f32 %v2497, %v1789
        %v2499 = vsub.f32 %v2493, %v2498
        %v2500 = vmul.f32 %v2499, %v2499
        %2501 = vadd.xlane.f32.xlu0 %v2500
        %v2502 = vpop.xlane.xlu0 %2501
        %v2503 = vmul.f32 %v2502, %v1789
        %v2504 = vadd.f32 %v2503, 1e-05
        %v2505 = vrsqrt.pop %v2504
        %v2506 = vmul.f32 %v2499, %v2505
        %v2508 = vlaneseq
        %v2509 = vshrl.u32 %v2508, 7
        %v2510 = vsub.s32 0, %v2509
        %v2511 = vrot.slane %v2494, %v2510
        %v2513 = vmul.f32 %v2506, %v2511
        %v2515 = vlaneseq
        %v2516 = vshrl.u32 %v2515, 7
        %v2517 = vsub.s32 0, %v2516
        %v2518 = vrot.slane %v2495, %v2517
        %v2520 = vadd.f32 %v2513, %v2518
        %2521 = vst [vmem:[#allocation2] sm:$0xff] %v2520
        %p2522 = scmp.eq.s32.totalorder %s50, 1
        // Predicated region
        $region129: #{tpu_custom_call.1} parent=91 // pred_check
          %p2523 = pneg %p2522
        $region130: #{tpu_custom_call.1} parent=91 // pred_check_branch
          %2525 = sbr.rel (%p2523) target = $region132
        $region131: #{tpu_custom_call.1} parent=91 // pred_region
          %v2526 = vpack.c.bf16 %v2520, %v2520
          %v2527 = vld [vmem:[#allocation14] sm:$0xf]
          %v2528 = vld [vmem:[#allocation14 + $0x4] sm:$0xf]
          %v2529 = vld [vmem:[#allocation14 + $0x8] sm:$0xf]
          %v2530 = vld [vmem:[#allocation14 + $0xc] sm:$0xf]
          %v2531 = vld [vmem:[#allocation14 + $0x10] sm:$0xf]
          %v2532 = vld [vmem:[#allocation14 + $0x14] sm:$0xf]
          %v2533 = vld [vmem:[#allocation14 + $0x18] sm:$0xf]
          %v2534 = vld [vmem:[#allocation14 + $0x1c] sm:$0xf]
          %v2535 = vld [vmem:[#allocation14 + $0x20] sm:$0xf]
          %v2536 = vld [vmem:[#allocation14 + $0x24] sm:$0xf]
          %v2537 = vld [vmem:[#allocation14 + $0x28] sm:$0xf]
          %v2538 = vld [vmem:[#allocation14 + $0x2c] sm:$0xf]
          %v2539 = vld [vmem:[#allocation14 + $0x30] sm:$0xf]
          %v2540 = vld [vmem:[#allocation14 + $0x34] sm:$0xf]
          %v2541 = vld [vmem:[#allocation14 + $0x38] sm:$0xf]
          %v2542 = vld [vmem:[#allocation14 + $0x3c] sm:$0xf]
          %v2543 = vld [vmem:[%s15] sm:$0x1]
          %v2560 = vunpack.c.l.b16 %v2527
          %v2561 = vunpack.c.l.b16 %v2528
          %v2562 = vunpack.c.l.b16 %v2529
          %v2563 = vunpack.c.l.b16 %v2530
          %v2564 = vunpack.c.l.b16 %v2531
          %v2565 = vunpack.c.l.b16 %v2532
          %v2566 = vunpack.c.l.b16 %v2533
          %v2567 = vunpack.c.l.b16 %v2534
          %v2568 = vunpack.c.l.b16 %v2535
          %v2569 = vunpack.c.l.b16 %v2536
          %v2570 = vunpack.c.l.b16 %v2537
          %v2571 = vunpack.c.l.b16 %v2538
          %v2572 = vunpack.c.l.b16 %v2539
          %v2573 = vunpack.c.l.b16 %v2540
          %v2574 = vunpack.c.l.b16 %v2541
          %v2575 = vunpack.c.l.b16 %v2542
          %v2576 = vpack.c.b16 %v2561, %v2560
          %v2577 = vpack.c.b16 %v2563, %v2562
          %v2578 = vpack.c.b16 %v2565, %v2564
          %v2579 = vpack.c.b16 %v2567, %v2566
          %v2580 = vpack.c.b16 %v2569, %v2568
          %v2581 = vpack.c.b16 %v2571, %v2570
          %v2582 = vpack.c.b16 %v2573, %v2572
          %v2583 = vpack.c.b16 %v2575, %v2574
          %2592 = vmatprep.subr.bf16.mxu0 0
          %2593 = vmatpush1.bf16.msra.mxu0 %v2576
          %2594 = vmatprep.subr.bf16.mxu0 0
          %2595 = vmatpush1.bf16.msra.mxu0 %v2577
          %2596 = vmatprep.subr.bf16.mxu0 0
          %2597 = vmatpush1.bf16.msra.mxu0 %v2578
          %2598 = vmatprep.subr.bf16.mxu0 0
          %2599 = vmatpush1.bf16.msra.mxu0 %v2579
          %2600 = vmatprep.subr.bf16.mxu0 0
          %2601 = vmatpush1.bf16.msra.mxu0 %v2580
          %2602 = vmatprep.subr.bf16.mxu0 0
          %2603 = vmatpush1.bf16.msra.mxu0 %v2581
          %2604 = vmatprep.subr.bf16.mxu0 0
          %2605 = vmatpush1.bf16.msra.mxu0 %v2582
          %2606 = vmatprep.subr.bf16.mxu0 0
          %2607 = vmatpush1.bf16.msra.mxu0 %v2583
          %2608 = vmatprep.subr.bf16.mxu0 0
          %2609 = vmatpush1.bf16.msra.mxu0 0
          %2610 = vmatprep.subr.bf16.mxu0 0
          %2611 = vmatpush1.bf16.msra.mxu0 0
          %2612 = vmatprep.subr.bf16.mxu0 0
          %2613 = vmatpush1.bf16.msra.mxu0 0
          %2614 = vmatprep.subr.bf16.mxu0 0
          %2615 = vmatpush1.bf16.msra.mxu0 0
          %2616 = vmatprep.subr.bf16.mxu0 0
          %2617 = vmatpush1.bf16.msra.mxu0 0
          %2618 = vmatprep.subr.bf16.mxu0 0
          %2619 = vmatpush1.bf16.msra.mxu0 0
          %2620 = vmatprep.subr.bf16.mxu0 0
          %2621 = vmatpush1.bf16.msra.mxu0 0
          %2622 = vmatprep.subr.bf16.mxu0 0
          %2623 = vmatpush1.bf16.msra.mxu0 0
          %2624 = vmatprep.mubr.bf16.mxu0 0
          %2625 = vmatmul.mubr.bf16.gmra.mrb[0].mxu0 %v2526
          %v2626 = vpop.f32.mrb[0].mxu0
          %v2627 = vadd.f32 %v2543, %v2626
          %v2628 = vpop.f32.mrb[0].mxu0
          %v2629 = vpop.f32.mrb[0].mxu0
          %v2630 = vpop.f32.mrb[0].mxu0
          %2631 = vdwg.mxu0
          %v2632 = vtanh.pop %v2627
          %v2633 = vpack.c.bf16 %v2632, %v2632
          %v2634 = vld [vmem:[#allocation15] sm:$0xff]
          %v2635 = vld [vmem:[#allocation15 + $0x8] sm:$0xff]
          %v2636 = vld [vmem:[#allocation15 + $0x10] sm:$0xff]
          %v2637 = vld [vmem:[#allocation15 + $0x18] sm:$0xff]
          %v2638 = vld [vmem:[#allocation15 + $0x20] sm:$0xff]
          %v2639 = vld [vmem:[#allocation15 + $0x28] sm:$0xff]
          %v2640 = vld [vmem:[#allocation15 + $0x30] sm:$0xff]
          %v2641 = vld [vmem:[#allocation15 + $0x38] sm:$0xff]
          %v2642 = vld [vmem:[#allocation15 + $0x40] sm:$0xff]
          %v2643 = vld [vmem:[#allocation15 + $0x48] sm:$0xff]
          %v2644 = vld [vmem:[#allocation15 + $0x50] sm:$0xff]
          %v2645 = vld [vmem:[#allocation15 + $0x58] sm:$0xff]
          %v2646 = vld [vmem:[#allocation15 + $0x60] sm:$0xff]
          %v2647 = vld [vmem:[#allocation15 + $0x68] sm:$0xff]
          %v2648 = vld [vmem:[#allocation15 + $0x70] sm:$0xff]
          %v2649 = vld [vmem:[#allocation15 + $0x78] sm:$0xff]
          %v2650 = vld [vmem:[%s17] sm:$0x3]
          %v2667 = vunpack.c.l.b16 %v2634
          %v2668 = vunpack.c.h.b16 %v2634
          %v2669 = vunpack.c.l.b16 %v2635
          %v2670 = vunpack.c.h.b16 %v2635
          %v2671 = vunpack.c.l.b16 %v2636
          %v2672 = vunpack.c.h.b16 %v2636
          %v2673 = vunpack.c.l.b16 %v2637
          %v2674 = vunpack.c.h.b16 %v2637
          %v2675 = vunpack.c.l.b16 %v2638
          %v2676 = vunpack.c.h.b16 %v2638
          %v2677 = vunpack.c.l.b16 %v2639
          %v2678 = vunpack.c.h.b16 %v2639
          %v2679 = vunpack.c.l.b16 %v2640
          %v2680 = vunpack.c.h.b16 %v2640
          %v2681 = vunpack.c.l.b16 %v2641
          %v2682 = vunpack.c.h.b16 %v2641
          %v2683 = vunpack.c.l.b16 %v2642
          %v2684 = vunpack.c.h.b16 %v2642
          %v2685 = vunpack.c.l.b16 %v2643
          %v2686 = vunpack.c.h.b16 %v2643
          %v2687 = vunpack.c.l.b16 %v2644
          %v2688 = vunpack.c.h.b16 %v2644
          %v2689 = vunpack.c.l.b16 %v2645
          %v2690 = vunpack.c.h.b16 %v2645
          %v2691 = vunpack.c.l.b16 %v2646
          %v2692 = vunpack.c.h.b16 %v2646
          %v2693 = vunpack.c.l.b16 %v2647
          %v2694 = vunpack.c.h.b16 %v2647
          %v2695 = vunpack.c.l.b16 %v2648
          %v2696 = vunpack.c.h.b16 %v2648
          %v2697 = vunpack.c.l.b16 %v2649
          %v2698 = vunpack.c.h.b16 %v2649
          %v2699 = vpack.c.b16 %v2669, %v2667
          %v2700 = vpack.c.b16 %v2670, %v2668
          %v2701 = vpack.c.b16 %v2673, %v2671
          %v2702 = vpack.c.b16 %v2674, %v2672
          %v2703 = vpack.c.b16 %v2677, %v2675
          %v2704 = vpack.c.b16 %v2678, %v2676
          %v2705 = vpack.c.b16 %v2681, %v2679
          %v2706 = vpack.c.b16 %v2682, %v2680
          %v2707 = vpack.c.b16 %v2685, %v2683
          %v2708 = vpack.c.b16 %v2686, %v2684
          %v2709 = vpack.c.b16 %v2689, %v2687
          %v2710 = vpack.c.b16 %v2690, %v2688
          %v2711 = vpack.c.b16 %v2693, %v2691
          %v2712 = vpack.c.b16 %v2694, %v2692
          %v2713 = vpack.c.b16 %v2697, %v2695
          %v2714 = vpack.c.b16 %v2698, %v2696
          %v2732 = vlaneseq
          %v2733 = vshrl.u32 %v2732, 7
          %v2734 = vsub.s32 0, %v2733
          %v2735 = vrot.slane %v2650, %v2734
          %v2736 = vlaneseq
          %v2737 = vshrl.u32 %v2736, 7
          %v2738 = vsub.s32 1, %v2737
          %v2739 = vrot.slane %v2650, %v2738
          %2742 = vmatprep.subr.bf16.mxu0 %v2700
          %2743 = vmatpush1.bf16.msra.mxu0 %v2699
          %2744 = vmatprep.subr.bf16.mxu0 %v2702
          %2745 = vmatpush1.bf16.msra.mxu0 %v2701
          %2746 = vmatprep.subr.bf16.mxu0 %v2704
          %2747 = vmatpush1.bf16.msra.mxu0 %v2703
          %2748 = vmatprep.subr.bf16.mxu0 %v2706
          %2749 = vmatpush1.bf16.msra.mxu0 %v2705
          %2750 = vmatprep.subr.bf16.mxu0 %v2708
          %2751 = vmatpush1.bf16.msra.mxu0 %v2707
          %2752 = vmatprep.subr.bf16.mxu0 %v2710
          %2753 = vmatpush1.bf16.msra.mxu0 %v2709
          %2754 = vmatprep.subr.bf16.mxu0 %v2712
          %2755 = vmatpush1.bf16.msra.mxu0 %v2711
          %2756 = vmatprep.subr.bf16.mxu0 %v2714
          %2757 = vmatpush1.bf16.msra.mxu0 %v2713
          %2758 = vmatprep.subr.bf16.mxu0 0
          %2759 = vmatpush1.bf16.msra.mxu0 0
          %2760 = vmatprep.subr.bf16.mxu0 0
          %2761 = vmatpush1.bf16.msra.mxu0 0
          %2762 = vmatprep.subr.bf16.mxu0 0
          %2763 = vmatpush1.bf16.msra.mxu0 0
          %2764 = vmatprep.subr.bf16.mxu0 0
          %2765 = vmatpush1.bf16.msra.mxu0 0
          %2766 = vmatprep.subr.bf16.mxu0 0
          %2767 = vmatpush1.bf16.msra.mxu0 0
          %2768 = vmatprep.subr.bf16.mxu0 0
          %2769 = vmatpush1.bf16.msra.mxu0 0
          %2770 = vmatprep.subr.bf16.mxu0 0
          %2771 = vmatpush1.bf16.msra.mxu0 0
          %2772 = vmatprep.subr.bf16.mxu0 0
          %2773 = vmatpush1.bf16.msra.mxu0 0
          %2774 = vmatprep.mubr.bf16.mxu0 0
          %2775 = vmatmul.mubr.bf16.gmra.mrb[0].mxu0 %v2633
          %v2776 = vpop.f32.mrb[0].mxu0
          %v2777 = vadd.f32 %v2735, %v2776
          %v2778 = vpop.f32.mrb[0].mxu0
          %v2779 = vadd.f32 %v2739, %v2778
          %v2780 = vpop.f32.mrb[0].mxu0
          %v2781 = vpop.f32.mrb[0].mxu0
          %2782 = vdwg.mxu0
          %v2785 = vcombine.low %v2777, %v2779
          %v2787 = vunpack.c.l.s4 1966171168
          %v2788 = vunpack.c.0.s8 %v2787
          %v2789 = vlaneseq
          %v2790 = vshrl.u32 %v2789, 7
          %v2791 = vsub.s32 %v2788, %v2790
          %v2792 = vrot.slane %v2785, %v2791
          %v2794 = vunpack.c.l.s4 1966171168
          %v2795 = vunpack.c.0.s8 %v2794
          %v2796 = vlaneseq
          %v2797 = vshrl.u32 %v2796, 7
          %v2798 = vsub.s32 %v2795, %v2797
          %v2799 = vrot.slane %v2792, %v2798
          %v2801 = vlaneseq
          %vm2802 = vcmp.ge.s32.totalorder %v2801, 0
          %vm2803 = vcmp.lt.s32.totalorder %v2801, 256
          %vm2804 = vmand %vm2802, %vm2803
          %2805 = vst.msk [vmem:[%s911] sm:$0x3] %vm2804, %v2799
        $region132: #{tpu_custom_call.1} parent=91 // pred_fallthru
          _
        %s2806 = sand.u32 %s513, 1
        %s2807 = scalar_lea.sflag [#allocation5], %s2806
        %s2808 = sand.u32 %s513, 1
        %s2809 = smul.addr %s2808, 2
        %s2810 = scalar_lea.vmem [#allocation17], %s2809
        // Predicated region
        $region133: #{tpu_custom_call.1} parent=91 // pred_check
          %p2811 = pneg %p523
        $region134: #{tpu_custom_call.1} parent=91 // pred_check_branch
          %2813 = sbr.rel (%p2811) target = $region136
        $region135: #{tpu_custom_call.1} parent=91 // pred_region
          %s2815 = ssub.s32 32, 32
          %2816 = vsyncadd %s2807, %s2815
          %s2817 = smul.addr %s49, 2
          %s2818 = smul.addr %s2817, 16
          %s2819 = scalar_lea.hbm %s18, %s2818
          %s2821 = sshll.u32 %s2810, 4
          %s2822 = int_to_ptr.vmem [resolvable:$true] %s2821
          %2824 = dma.vmem_to_hbm [thread:$0]  %s2822, 32, %s2819, %s2807
        $region136: #{tpu_custom_call.1} parent=91 // pred_fallthru
          _
      $region92: #{tpu_custom_call.1} parent=5 // pred_fallthru
        _
      %p2825 = scmp.le.s32.totalorder 2, %s40
      // Predicated region
      $region137: #{tpu_custom_call.1} parent=5 // pred_check
        %p2826 = pneg %p2825
      $region138: #{tpu_custom_call.1} parent=5 // pred_check_branch
        %2828 = sbr.rel (%p2826) target = $region140
      $region139: #{tpu_custom_call.1} parent=5 // pred_region
        %s2829 = ssub.s32 %s40, 2
        // Predicated region
        $region141: #{tpu_custom_call.1} parent=139 // pred_check
          %p2830 = pneg %p529
        $region142: #{tpu_custom_call.1} parent=139 // pred_check_branch
          %2832 = sbr.rel (%p2830) target = $region144
        $region143: #{tpu_custom_call.1} parent=139 // pred_region
          %s2833 = sand.u32 %s514, 1
          %s2834 = scalar_lea.sflag [#allocation5], %s2833
          %s2835 = sand.u32 %s514, 1
          %s2836 = smul.addr %s2835, 2
          %s2837 = scalar_lea.vmem [#allocation17], %s2836
          %2838 = dma.done %s2834, 32
        $region144: #{tpu_custom_call.1} parent=139 // pred_fallthru
          _
      $region140: #{tpu_custom_call.1} parent=5 // pred_fallthru
        _
    $region6: #{tpu_custom_call.1} parent=1 // loop_footer
      %s44 = sadd.s32 1, %s40
    $region7: #{tpu_custom_call.1} parent=1 // loop_footer_branch
      %39 = sbr.rel target = $region3
    $region8: #{tpu_custom_call.1} parent=1 // loop_exit
      _
    %2839 = vsyncpa [#allocation4], 1
    %s2840 = scalar_lea.sflag [#allocation4], 1
    %2841 = vsyncpa %s2840, 1
    %2842 = vsyncpa [#allocation7], 1
    %s2843 = scalar_lea.sflag [#allocation7], 1
    %2844 = vsyncpa %s2843, 1
    %2845 = vsyncpa [#allocation10], 1
    %s2846 = scalar_lea.sflag [#allocation10], 1
    %2847 = vsyncpa %s2846, 1
    %2848 = vsyncpa [#allocation13], 1
    %s2849 = scalar_lea.sflag [#allocation13], 1
    %2850 = vsyncpa %s2849, 1
    %2851 = vsyncpa [#allocation16], 1
    %2852 = vsyncpa [#allocation5], 1
    %s2853 = scalar_lea.sflag [#allocation5], 1
    %2854 = vsyncpa %s2853, 1

</llo_original>
